<compile_context>
chip_gen: v7x
topology: tpu7x:2x2x1
jax: 0.10.0
libtpu: 0.0.40
codegen_flags: <defaults>
</compile_context>

<pallas_src>
import functools

import jax
import jax.numpy as jnp
from jax.experimental import pallas as pl
from jax.experimental.pallas import tpu as pltpu

EPS = 1e-5
VMEM_LIMIT = 32 * 1024 * 1024  # comfortably under v7x's 64 MiB physical VMEM


# ----------------------------------------------------------------------------- kernels

def _colstats(z):
    """Per-channel [sum ; sum_of_squares] of z:(rows, C) -> (2, C) f32 (VPU/XLU path)."""
    ssum = jnp.sum(z, axis=0, keepdims=True)
    ssq = jnp.sum(z * z, axis=0, keepdims=True)
    return jnp.concatenate([ssum, ssq], axis=0)


def stage2_stats_kernel(x_ref, s1_ref, t1_ref, w1_ref, w2_ref, st2_ref):
    """x tile -> z1 -> bn1+relu -> z2 ; emit bn2 partial stats only (no z2 write)."""
    z1 = jnp.dot(x_ref[...], w1_ref[...], preferred_element_type=jnp.float32)
    h1 = jnp.maximum(z1 * s1_ref[...] + t1_ref[...], 0.0)
    z2 = jnp.dot(h1, w2_ref[...], preferred_element_type=jnp.float32)
    st2_ref[...] = _colstats(z2)[None]                        # (1, 2, 128)


def stage3_pool_kernel(x_ref, s1_ref, t1_ref, w1_ref, s2_ref, t2_ref, w2_ref, w3_ref,
                       st3_ref, zmax_ref, zmin_ref):
    """Replay x -> z1 -> h1 -> z2 -> h2 -> z3; emit bn3 partial stats + fused max-pool
    inputs (per-group pre-BN max and min of z3; groups are batch-element aligned)."""
    z1 = jnp.dot(x_ref[...], w1_ref[...], preferred_element_type=jnp.float32)
    h1 = jnp.maximum(z1 * s1_ref[...] + t1_ref[...], 0.0)
    z2 = jnp.dot(h1, w2_ref[...], preferred_element_type=jnp.float32)
    h2 = jnp.maximum(z2 * s2_ref[...] + t2_ref[...], 0.0)
    z3 = jnp.dot(h2, w3_ref[...], preferred_element_type=jnp.float32)

    st3_ref[...] = _colstats(z3)[None]                        # (1, 2, 1024)

    m = zmax_ref.shape[1]                                     # groups per tile (static)
    gsz = z3.shape[0] // m
    maxs, mins = [], []
    for g in range(m):                                        # static Python loop, m small
        blk = z3[g * gsz:(g + 1) * gsz, :]
        maxs.append(jnp.max(blk, axis=0, keepdims=True))
        mins.append(jnp.min(blk, axis=0, keepdims=True))
    zmax_ref[...] = jnp.concatenate(maxs, axis=0)[None]       # (1, m, 1024)
    zmin_ref[...] = jnp.concatenate(mins, axis=0)[None]


def _bn_relu_rows(z, gamma, beta):
    """Training-mode BN over rows (shifted two-pass stats; robust for tiny batch) + ReLU."""
    n = z.shape[0]
    mu = jnp.sum(z, axis=0, keepdims=True) * (1.0 / n)
    d = z - mu
    var = jnp.sum(d * d, axis=0, keepdims=True) * (1.0 / n)
    return jnp.maximum(d * (gamma * jax.lax.rsqrt(var + EPS)) + beta, 0.0)


def head_kernel(p_ref, f1_ref, g4_ref, be4_ref, f2_ref, g5_ref, be5_ref,
                f3_ref, c3_ref, eye_ref, out_ref):
    """Fused FC head on (bs, 1024) pooled features: fc1/bn4/relu, fc2/bn5/relu, fc3+eye."""
    y = jnp.dot(p_ref[...], f1_ref[...], preferred_element_type=jnp.float32)
    y = _bn_relu_rows(y, g4_ref[...], be4_ref[...])
    y = jnp.dot(y, f2_ref[...], preferred_element_type=jnp.float32)
    y = _bn_relu_rows(y, g5_ref[...], be5_ref[...])
    out_ref[...] = (jnp.dot(y, f3_ref[...], preferred_element_type=jnp.float32)
                    + c3_ref[...] + eye_ref[...])


# ----------------------------------------------------------------------------- wrappers

def _const_spec(shape):
    """Full-array block that stays resident across the grid (constant block index)."""
    zeros = (0,) * len(shape)
    return pl.BlockSpec(shape, lambda i: zeros)


def _stage2_stats(x, s1, t1, w1, w2, *, tm):
    rows, kp = x.shape
    c2 = w2.shape[1]
    nt = rows // tm
    return pl.pallas_call(
        stage2_stats_kernel,
        grid=(nt,),
        in_specs=[pl.BlockSpec((tm, kp), lambda i: (i, 0)),
                  _const_spec(s1.shape), _const_spec(t1.shape),
                  _const_spec(w1.shape), _const_spec(w2.shape)],
        out_specs=pl.BlockSpec((1, 2, c2), lambda i: (i, 0, 0)),
        out_shape=jax.ShapeDtypeStruct((nt, 2, c2), jnp.float32),
        compiler_params=pltpu.CompilerParams(
            dimension_semantics=("parallel",), vmem_limit_bytes=VMEM_LIMIT),
    )(x, s1, t1, w1, w2)


def _stage3_pool(x, s1, t1, w1, s2, t2, w2, w3, *, tm, m):
    rows, kp = x.shape
    c3 = w3.shape[1]
    nt = rows // tm
    return pl.pallas_call(
        stage3_pool_kernel,
        grid=(nt,),
        in_specs=[pl.BlockSpec((tm, kp), lambda i: (i, 0)),
                  _const_spec(s1.shape), _const_spec(t1.shape), _const_spec(w1.shape),
                  _const_spec(s2.shape), _const_spec(t2.shape), _const_spec(w2.shape),
                  _const_spec(w3.shape)],
        out_specs=(pl.BlockSpec((1, 2, c3), lambda i: (i, 0, 0)),
                   pl.BlockSpec((1, m, c3), lambda i: (i, 0, 0)),
                   pl.BlockSpec((1, m, c3), lambda i: (i, 0, 0))),
        out_shape=(jax.ShapeDtypeStruct((nt, 2, c3), jnp.float32),
                   jax.ShapeDtypeStruct((nt, m, c3), jnp.float32),
                   jax.ShapeDtypeStruct((nt, m, c3), jnp.float32)),
        compiler_params=pltpu.CompilerParams(
            dimension_semantics=("parallel",), vmem_limit_bytes=VMEM_LIMIT),
    )(x, s1, t1, w1, s2, t2, w2, w3)


def _head(pooled, f1, g4, be4, f2, g5, be5, f3, c3, eye_flat):
    bs = pooled.shape[0]
    kk = f3.shape[1]
    args = [pooled, f1, g4, be4, f2, g5, be5, f3, c3, eye_flat]
    return pl.pallas_call(
        head_kernel,
        in_specs=[pl.BlockSpec(memory_space=pltpu.MemorySpace.VMEM)] * len(args),
        out_specs=pl.BlockSpec(memory_space=pltpu.MemorySpace.VMEM),
        out_shape=jax.ShapeDtypeStruct((bs, kk), jnp.float32),
        compiler_params=pltpu.CompilerParams(vmem_limit_bytes=VMEM_LIMIT),
    )(*args)


# --------------------------------------------------------------------------- tiny glue

def _finalize_bn(stats, n_rows, gamma, beta):
    """O(C): partial [sum; sumsq] -> per-channel BN scale/shift (training-mode, biased var)."""
    tot = jnp.sum(stats, axis=0)                  # (2, C)
    mean = tot[0] / n_rows
    var = tot[1] / n_rows - mean * mean
    s = gamma.reshape(-1) * jax.lax.rsqrt(var + EPS)
    t = beta.reshape(-1) - mean * s
    return s.reshape(1, -1), t.reshape(1, -1)


def _bn1_from_moments(x_rows, w1p, gamma, beta):
    """Analytic bn1 scale/shift from x's tiny (kp x kp) moments: z1 never materialized."""
    rows = x_rows.shape[0]
    hp = jax.lax.Precision.HIGHEST
    xm = jnp.mean(x_rows, axis=0, keepdims=True)                       # (1, kp)
    xx = jnp.dot(x_rows.T, x_rows, precision=hp) * (1.0 / rows)        # (kp, kp)
    mean = jnp.dot(xm, w1p, precision=hp)                              # (1, 64)
    ez2 = jnp.sum(w1p * jnp.dot(xx, w1p, precision=hp), axis=0, keepdims=True)
    var = ez2 - mean * mean
    s = gamma.reshape(1, -1) * jax.lax.rsqrt(var + EPS)
    t = beta.reshape(1, -1) - mean * s
    return s, t


def _pick_tile(rows, npts):
    """Largest batch-aligned row tile; prefer >= 8 grid steps (v7x: 2 TCs + pipeline ramp)."""
    cands = [tm for tm in (1024, 512, 256, 128, 64, 32, 16, 8)
             if rows % tm == 0 and (tm % npts == 0 or npts % tm == 0)]
    if not cands:
        return npts
    for tm in cands:                      # big tile AND enough grid steps, if possible
        if rows // tm >= 8 and tm >= 256:
            return tm
    for tm in cands:                      # otherwise largest tile with >= 2 steps
        if rows // tm >= 2:
            return tm
    return cands[0]


# --------------------------------------------------------------------------- forward

def tnet_forward(x_bcn, params, k=3):
    """x_bcn: (B, k, N) float32 -- same convention as the PyTorch module."""
    (w1, _b1, g1, be1, w2, _b2, g2, be2, w3, _b3, g3, be3,
     f1, _c1, g4, be4, f2, _c2, g5, be5, f3, c3) = params
    # _b1.._b3 (conv biases) and _c1,_c2 (fc1/fc2 biases) feed training-mode BatchNorm,
    # which subtracts the batch mean -> they cancel exactly and are never loaded.
    bs, kk, npts = x_bcn.shape
    assert kk == k
    # TODO(synk): pad + mask N for point counts not divisible by 8 (e.g. 2500).
    assert npts % 8 == 0, "row tiling assumes npts is a multiple of 8"
    rows = bs * npts
    tm = _pick_tile(rows, npts)
    gsz = min(tm, npts)       # rows per pooling group (always inside one batch element)
    m = tm // gsz             # groups per tile
    gpb = npts // gsz         # groups per batch element

    # Channels-last points-as-rows; pad the tiny k-channel dim to 8 so the first matmul
    # is sublane-aligned (zero rows/cols contribute exactly zero).
    kp = 8
    x_rows = jnp.transpose(x_bcn, (0, 2, 1)).reshape(rows, k)
    x_rows = jnp.pad(x_rows, ((0, 0), (0, kp - k)))
    w1p = jnp.pad(w1, ((0, kp - k), (0, 0)))

    # bn1: analytic from x's moments -- the (rows, 64) conv1 output never hits HBM.
    s1, t1 = _bn1_from_moments(x_rows, w1p, g1, be1)

    # Pass A: bn2 partial stats only (recompute z1, z2 from the tiny x tile).
    st2 = _stage2_stats(x_rows, s1, t1, w1p, w2, tm=tm)
    s2, t2 = _finalize_bn(st2, rows, g2, be2)

    # Pass B: bn3 partial stats + fused max-pool (per-group pre-BN max/min of z3).
    st3, zmax, zmin = _stage3_pool(x_rows, s1, t1, w1p, s2, t2, w2, w3, tm=tm, m=m)
    s3, t3 = _finalize_bn(st3, rows, g3, be3)

    # O(groups x 1024) glue: bn3 affine on the pre-BN extrema (max where s3 >= 0, min
    # where s3 < 0 -- gamma can be negative), ReLU, then max across groups per batch.
    c = zmax.shape[-1]
    zext = jnp.where(s3 >= 0.0, zmax.reshape(-1, c), zmin.reshape(-1, c))
    pooled = jnp.max(jnp.maximum(zext * s3 + t3, 0.0).reshape(bs, gpb, c), axis=1)

    eye_flat = jnp.eye(k, dtype=jnp.float32).reshape(1, k * k)
    out_flat = _head(pooled, f1, g4, be4, f2, g5, be5, f3, c3, eye_flat)
    return out_flat.reshape(bs, k, k)


# --------------------------------------------------------------------------- reference

def tnet_reference(x_bcn, params, k=3):
    """Pure-JAX reference mirroring the PyTorch forward (training-mode BN, f32 matmuls)."""
    (w1, b1, g1, be1, w2, b2, g2, be2, w3, b3, g3, be3,
     f1, c1, g4, be4, f2, c2, g5, be5, f3, c3) = params
    bs, _, npts = x_bcn.shape
    hd = lambda a, b: jnp.dot(a, b, precision=jax.lax.Precision.HIGHEST)

    def bn_relu(z, g, b):
        mu = jnp.mean(z, axis=0, keepdims=True)
        var = jnp.mean(jnp.square(z - mu), axis=0, keepdims=True)
        return jnp.maximum((z - mu) * jax.lax.rsqrt(var + EPS) * g + b, 0.0)

    x = jnp.transpose(x_bcn, (0, 2, 1)).reshape(bs * npts, k)
    h = bn_relu(hd(x, w1) + b1, g1, be1)
    h = bn_relu(hd(h, w2) + b2, g2, be2)
    h = bn_relu(hd(h, w3) + b3, g3, be3)
    pooled = jnp.max(h.reshape(bs, npts, -1), axis=1)
    y = bn_relu(hd(pooled, f1) + c1, g4, be4)
    y = bn_relu(hd(y, f2) + c2, g5, be5)
    out = hd(y, f3) + c3 + jnp.eye(k, dtype=jnp.float32).reshape(1, k * k)
    return out.reshape(bs, k, k)


def init_params(key, k=3):
    """Deterministic synthetic parameters (PyTorch-style fan_in uniform bounds)."""
    layer_dims = [(k, 64), (64, 128), (128, 1024),        # conv1..conv3 (kernel_size=1)
                  (1024, 512), (512, 256), (256, k * k)]  # fc1..fc3
    has_bn = [True, True, True, True, True, False]
    params = []
    for (fan_in, fan_out), bn in zip(layer_dims, has_bn):
        key, kw, kb, kg, kbe = jax.random.split(key, 5)
        bound = 1.0 / (fan_in ** 0.5)
        w = jax.random.uniform(kw, (fan_in, fan_out), jnp.float32, -bound, bound)
        b = jax.random.uniform(kb, (1, fan_out), jnp.float32, -bound, bound)
        params += [w, b]
        if bn:
            gamma = 1.0 + 0.1 * jax.random.normal(kg, (1, fan_out), jnp.float32)
            beta = 0.1 * jax.random.normal(kbe, (1, fan_out), jnp.float32)
            params += [gamma, beta]
    return params


if __name__ == "__main__":
    k = 3
    bs, npts = 2, 128
    key = jax.random.PRNGKey(0)
    key, kx = jax.random.split(key)
    x = jax.random.normal(kx, (bs, k, npts), dtype=jnp.float32)   # (B, C=k, N) like PyTorch

    params = init_params(key, k=k)

    fwd = jax.jit(functools.partial(tnet_forward, k=k))
    out = jax.block_until_ready(fwd(x, params))
    ref = jax.block_until_ready(tnet_reference(x, params, k=k))

    max_err = float(jnp.max(jnp.abs(out - ref)))
    assert out.shape == (bs, k, k), out.shape
    # All-f32 MXU path + two-pass head BN: differences vs the HIGHEST-precision f32
    # reference are a few 1e-3 at worst (bs=2 training-mode BN amplifies tiny upstream
    # diffs), so 2e-2 is a safe-yet-meaningful bound (vs the 0.42 of the bf16 version).
    assert max_err < 2e-2, f"max abs error too large: {max_err}"

    print("KERNEL_OK")
</pallas_src>

<mosaic_0001>
module attributes {stable_mosaic.version = 11 : i64} {
  func.func @stage2_stats_kernel(%arg0: i32, %arg1: memref<128x8xf32, #tpu.memory_space<vmem>>, %arg2: memref<1x64xf32, #tpu.memory_space<vmem>>, %arg3: memref<1x64xf32, #tpu.memory_space<vmem>>, %arg4: memref<8x64xf32, #tpu.memory_space<vmem>>, %arg5: memref<64x128xf32, #tpu.memory_space<vmem>>, %arg6: memref<1x2x128xf32, #tpu.memory_space<vmem>>) attributes {dimension_semantics = [#tpu.dimension_semantics<parallel>], iteration_bounds = array<i64: 2>, scalar_prefetch = 0 : i64, scratch_operands = 0 : i64, tpu.core_type = #tpu.core_type<tc>, window_params = [{transform_indices = @transform_0, window_bounds = array<i64: 128, 8>}, {pipeline_mode = #tpu.pipeline_mode<synchronous>, transform_indices = @transform_1, window_bounds = array<i64: 1, 64>}, {pipeline_mode = #tpu.pipeline_mode<synchronous>, transform_indices = @transform_2, window_bounds = array<i64: 1, 64>}, {pipeline_mode = #tpu.pipeline_mode<synchronous>, transform_indices = @transform_3, window_bounds = array<i64: 8, 64>}, {pipeline_mode = #tpu.pipeline_mode<synchronous>, transform_indices = @transform_4, window_bounds = array<i64: 64, 128>}, {transform_indices = @transform_5, window_bounds = array<i64: 1, 2, 128>}]} {
    %c0 = arith.constant 0 : index
    %c0_0 = arith.constant 0 : index
    %0 = vector.load %arg1[%c0, %c0_0] : memref<128x8xf32, #tpu.memory_space<vmem>>, vector<128x8xf32>
    %c0_1 = arith.constant 0 : index
    %c0_2 = arith.constant 0 : index
    %1 = vector.load %arg4[%c0_1, %c0_2] : memref<8x64xf32, #tpu.memory_space<vmem>>, vector<8x64xf32>
    %cst = arith.constant dense<0.000000e+00> : vector<128x64xf32>
    %2 = tpu.matmul %0, %1, %cst {dimension_numbers = #tpu.dot_dimension_numbers<[1], [0], [0], [1], [0, 0, 1, 1], [], []>} : vector<128x8xf32>, vector<8x64xf32>, vector<128x64xf32> -> vector<128x64xf32>
    %c0_3 = arith.constant 0 : index
    %c0_4 = arith.constant 0 : index
    %3 = vector.load %arg2[%c0_3, %c0_4] : memref<1x64xf32, #tpu.memory_space<vmem>>, vector<1x64xf32>
    %4 = vector.broadcast %3 : vector<1x64xf32> to vector<128x64xf32>
    %5 = arith.mulf %2, %4 : vector<128x64xf32>
    %c0_5 = arith.constant 0 : index
    %c0_6 = arith.constant 0 : index
    %6 = vector.load %arg3[%c0_5, %c0_6] : memref<1x64xf32, #tpu.memory_space<vmem>>, vector<1x64xf32>
    %7 = vector.broadcast %6 : vector<1x64xf32> to vector<128x64xf32>
    %8 = arith.addf %5, %7 : vector<128x64xf32>
    %cst_7 = arith.constant 0.000000e+00 : f32
    %9 = vector.broadcast %cst_7 : f32 to vector<128x64xf32>
    %10 = arith.maximumf %8, %9 : vector<128x64xf32>
    %c0_8 = arith.constant 0 : index
    %c0_9 = arith.constant 0 : index
    %11 = vector.load %arg5[%c0_8, %c0_9] : memref<64x128xf32, #tpu.memory_space<vmem>>, vector<64x128xf32>
    %cst_10 = arith.constant dense<0.000000e+00> : vector<128x128xf32>
    %12 = tpu.matmul %10, %11, %cst_10 {dimension_numbers = #tpu.dot_dimension_numbers<[1], [0], [0], [1], [0, 0, 1, 1], [], []>} : vector<128x64xf32>, vector<64x128xf32>, vector<128x128xf32> -> vector<128x128xf32>
    %cst_11 = arith.constant dense<0.000000e+00> : vector<128xf32>
    %13 = vector.multi_reduction <add>, %12, %cst_11 [0] : vector<128x128xf32> to vector<128xf32>
    %14 = vector.shape_cast %13 : vector<128xf32> to vector<1x128xf32>
    %15 = arith.mulf %12, %12 : vector<128x128xf32>
    %cst_12 = arith.constant dense<0.000000e+00> : vector<128xf32>
    %16 = vector.multi_reduction <add>, %15, %cst_12 [0] : vector<128x128xf32> to vector<128xf32>
    %17 = vector.shape_cast %16 : vector<128xf32> to vector<1x128xf32>
    %18 = tpu.concatenate %14, %17 in 0 : vector<1x128xf32>, vector<1x128xf32> -> vector<2x128xf32>
    %19 = vector.shape_cast %18 : vector<2x128xf32> to vector<1x2x128xf32>
    %c0_13 = arith.constant 0 : index
    %c0_14 = arith.constant 0 : index
    %c0_15 = arith.constant 0 : index
    %20 = vector.load %arg6[%c0_13, %c0_14, %c0_15] : memref<1x2x128xf32, #tpu.memory_space<vmem>>, vector<1x2x128xf32>
    tpu.vector_store %arg6[%c0_13, %c0_14, %c0_15], %19 {strides = array<i32>} : memref<1x2x128xf32, #tpu.memory_space<vmem>>, vector<1x2x128xf32>,
    return
  }
  func.func @transform_0(%arg0: i32) -> (i32, i32) {
    %c0_i32 = arith.constant 0 : i32
    %c0_i32_0 = arith.constant 0 : i32
    return %arg0, %c0_i32 : i32, i32
  }
  func.func @transform_1(%arg0: i32) -> (i32, i32) {
    %c0_i32 = arith.constant 0 : i32
    %c0_i32_0 = arith.constant 0 : i32
    %c0_i32_1 = arith.constant 0 : i32
    return %c0_i32, %c0_i32_0 : i32, i32
  }
  func.func @transform_2(%arg0: i32) -> (i32, i32) {
    %c0_i32 = arith.constant 0 : i32
    %c0_i32_0 = arith.constant 0 : i32
    %c0_i32_1 = arith.constant 0 : i32
    return %c0_i32, %c0_i32_0 : i32, i32
  }
  func.func @transform_3(%arg0: i32) -> (i32, i32) {
    %c0_i32 = arith.constant 0 : i32
    %c0_i32_0 = arith.constant 0 : i32
    %c0_i32_1 = arith.constant 0 : i32
    return %c0_i32, %c0_i32_0 : i32, i32
  }
  func.func @transform_4(%arg0: i32) -> (i32, i32) {
    %c0_i32 = arith.constant 0 : i32
    %c0_i32_0 = arith.constant 0 : i32
    %c0_i32_1 = arith.constant 0 : i32
    return %c0_i32, %c0_i32_0 : i32, i32
  }
  func.func @transform_5(%arg0: i32) -> (i32, i32, i32) {
    %c0_i32 = arith.constant 0 : i32
    %c0_i32_0 = arith.constant 0 : i32
    %c0_i32_1 = arith.constant 0 : i32
    return %arg0, %c0_i32, %c0_i32_0 : i32, i32, i32
  }
}

module attributes {stable_mosaic.version = 11 : i64} {
  func.func @stage3_pool_kernel(%arg0: i32, %arg1: memref<128x8xf32, #tpu.memory_space<vmem>>, %arg2: memref<1x64xf32, #tpu.memory_space<vmem>>, %arg3: memref<1x64xf32, #tpu.memory_space<vmem>>, %arg4: memref<8x64xf32, #tpu.memory_space<vmem>>, %arg5: memref<1x128xf32, #tpu.memory_space<vmem>>, %arg6: memref<1x128xf32, #tpu.memory_space<vmem>>, %arg7: memref<64x128xf32, #tpu.memory_space<vmem>>, %arg8: memref<128x1024xf32, #tpu.memory_space<vmem>>, %arg9: memref<1x2x1024xf32, #tpu.memory_space<vmem>>, %arg10: memref<1x1x1024xf32, #tpu.memory_space<vmem>>, %arg11: memref<1x1x1024xf32, #tpu.memory_space<vmem>>) attributes {dimension_semantics = [#tpu.dimension_semantics<parallel>], iteration_bounds = array<i64: 2>, scalar_prefetch = 0 : i64, scratch_operands = 0 : i64, tpu.core_type = #tpu.core_type<tc>, window_params = [{transform_indices = @transform_0, window_bounds = array<i64: 128, 8>}, {pipeline_mode = #tpu.pipeline_mode<synchronous>, transform_indices = @transform_1, window_bounds = array<i64: 1, 64>}, {pipeline_mode = #tpu.pipeline_mode<synchronous>, transform_indices = @transform_2, window_bounds = array<i64: 1, 64>}, {pipeline_mode = #tpu.pipeline_mode<synchronous>, transform_indices = @transform_3, window_bounds = array<i64: 8, 64>}, {pipeline_mode = #tpu.pipeline_mode<synchronous>, transform_indices = @transform_4, window_bounds = array<i64: 1, 128>}, {pipeline_mode = #tpu.pipeline_mode<synchronous>, transform_indices = @transform_5, window_bounds = array<i64: 1, 128>}, {pipeline_mode = #tpu.pipeline_mode<synchronous>, transform_indices = @transform_6, window_bounds = array<i64: 64, 128>}, {pipeline_mode = #tpu.pipeline_mode<synchronous>, transform_indices = @transform_7, window_bounds = array<i64: 128, 1024>}, {transform_indices = @transform_8, window_bounds = array<i64: 1, 2, 1024>}, {transform_indices = @transform_9, window_bounds = array<i64: 1, 1, 1024>}, {transform_indices = @transform_10, window_bounds = array<i64: 1, 1, 1024>}]} {
    %c0 = arith.constant 0 : index
    %c0_0 = arith.constant 0 : index
    %0 = vector.load %arg1[%c0, %c0_0] : memref<128x8xf32, #tpu.memory_space<vmem>>, vector<128x8xf32>
    %c0_1 = arith.constant 0 : index
    %c0_2 = arith.constant 0 : index
    %1 = vector.load %arg4[%c0_1, %c0_2] : memref<8x64xf32, #tpu.memory_space<vmem>>, vector<8x64xf32>
    %cst = arith.constant dense<0.000000e+00> : vector<128x64xf32>
    %2 = tpu.matmul %0, %1, %cst {dimension_numbers = #tpu.dot_dimension_numbers<[1], [0], [0], [1], [0, 0, 1, 1], [], []>} : vector<128x8xf32>, vector<8x64xf32>, vector<128x64xf32> -> vector<128x64xf32>
    %c0_3 = arith.constant 0 : index
    %c0_4 = arith.constant 0 : index
    %3 = vector.load %arg2[%c0_3, %c0_4] : memref<1x64xf32, #tpu.memory_space<vmem>>, vector<1x64xf32>
    %4 = vector.broadcast %3 : vector<1x64xf32> to vector<128x64xf32>
    %5 = arith.mulf %2, %4 : vector<128x64xf32>
    %c0_5 = arith.constant 0 : index
    %c0_6 = arith.constant 0 : index
    %6 = vector.load %arg3[%c0_5, %c0_6] : memref<1x64xf32, #tpu.memory_space<vmem>>, vector<1x64xf32>
    %7 = vector.broadcast %6 : vector<1x64xf32> to vector<128x64xf32>
    %8 = arith.addf %5, %7 : vector<128x64xf32>
    %cst_7 = arith.constant 0.000000e+00 : f32
    %9 = vector.broadcast %cst_7 : f32 to vector<128x64xf32>
    %10 = arith.maximumf %8, %9 : vector<128x64xf32>
    %c0_8 = arith.constant 0 : index
    %c0_9 = arith.constant 0 : index
    %11 = vector.load %arg7[%c0_8, %c0_9] : memref<64x128xf32, #tpu.memory_space<vmem>>, vector<64x128xf32>
    %cst_10 = arith.constant dense<0.000000e+00> : vector<128x128xf32>
    %12 = tpu.matmul %10, %11, %cst_10 {dimension_numbers = #tpu.dot_dimension_numbers<[1], [0], [0], [1], [0, 0, 1, 1], [], []>} : vector<128x64xf32>, vector<64x128xf32>, vector<128x128xf32> -> vector<128x128xf32>
    %c0_11 = arith.constant 0 : index
    %c0_12 = arith.constant 0 : index
    %13 = vector.load %arg5[%c0_11, %c0_12] : memref<1x128xf32, #tpu.memory_space<vmem>>, vector<1x128xf32>
    %14 = vector.broadcast %13 : vector<1x128xf32> to vector<128x128xf32>
    %15 = arith.mulf %12, %14 : vector<128x128xf32>
    %c0_13 = arith.constant 0 : index
    %c0_14 = arith.constant 0 : index
    %16 = vector.load %arg6[%c0_13, %c0_14] : memref<1x128xf32, #tpu.memory_space<vmem>>, vector<1x128xf32>
    %17 = vector.broadcast %16 : vector<1x128xf32> to vector<128x128xf32>
    %18 = arith.addf %15, %17 : vector<128x128xf32>
    %cst_15 = arith.constant 0.000000e+00 : f32
    %19 = vector.broadcast %cst_15 : f32 to vector<128x128xf32>
    %20 = arith.maximumf %18, %19 : vector<128x128xf32>
    %c0_16 = arith.constant 0 : index
    %c0_17 = arith.constant 0 : index
    %21 = vector.load %arg8[%c0_16, %c0_17] : memref<128x1024xf32, #tpu.memory_space<vmem>>, vector<128x1024xf32>
    %cst_18 = arith.constant dense<0.000000e+00> : vector<128x1024xf32>
    %22 = tpu.matmul %20, %21, %cst_18 {dimension_numbers = #tpu.dot_dimension_numbers<[1], [0], [0], [1], [0, 0, 1, 1], [], []>} : vector<128x128xf32>, vector<128x1024xf32>, vector<128x1024xf32> -> vector<128x1024xf32>
    %cst_19 = arith.constant dense<0.000000e+00> : vector<1024xf32>
    %23 = vector.multi_reduction <add>, %22, %cst_19 [0] : vector<128x1024xf32> to vector<1024xf32>
    %24 = vector.shape_cast %23 : vector<1024xf32> to vector<1x1024xf32>
    %25 = arith.mulf %22, %22 : vector<128x1024xf32>
    %cst_20 = arith.constant dense<0.000000e+00> : vector<1024xf32>
    %26 = vector.multi_reduction <add>, %25, %cst_20 [0] : vector<128x1024xf32> to vector<1024xf32>
    %27 = vector.shape_cast %26 : vector<1024xf32> to vector<1x1024xf32>
    %28 = tpu.concatenate %24, %27 in 0 : vector<1x1024xf32>, vector<1x1024xf32> -> vector<2x1024xf32>
    %29 = vector.shape_cast %28 : vector<2x1024xf32> to vector<1x2x1024xf32>
    %c0_21 = arith.constant 0 : index
    %c0_22 = arith.constant 0 : index
    %c0_23 = arith.constant 0 : index
    %30 = vector.load %arg9[%c0_21, %c0_22, %c0_23] : memref<1x2x1024xf32, #tpu.memory_space<vmem>>, vector<1x2x1024xf32>
    tpu.vector_store %arg9[%c0_21, %c0_22, %c0_23], %29 {strides = array<i32>} : memref<1x2x1024xf32, #tpu.memory_space<vmem>>, vector<1x2x1024xf32>,
    %cst_24 = arith.constant dense<0xFF800000> : vector<1024xf32>
    %31 = vector.multi_reduction <maximumf>, %22, %cst_24 [0] : vector<128x1024xf32> to vector<1024xf32>
    %32 = vector.shape_cast %31 : vector<1024xf32> to vector<1x1024xf32>
    %cst_25 = arith.constant dense<0x7F800000> : vector<1024xf32>
    %33 = vector.multi_reduction <minimumf>, %22, %cst_25 [0] : vector<128x1024xf32> to vector<1024xf32>
    %34 = vector.shape_cast %33 : vector<1024xf32> to vector<1x1024xf32>
    %35 = vector.shape_cast %32 : vector<1x1024xf32> to vector<1x1x1024xf32>
    %c0_26 = arith.constant 0 : index
    %c0_27 = arith.constant 0 : index
    %c0_28 = arith.constant 0 : index
    %36 = vector.load %arg10[%c0_26, %c0_27, %c0_28] : memref<1x1x1024xf32, #tpu.memory_space<vmem>>, vector<1x1x1024xf32>
    tpu.vector_store %arg10[%c0_26, %c0_27, %c0_28], %35 {strides = array<i32>} : memref<1x1x1024xf32, #tpu.memory_space<vmem>>, vector<1x1x1024xf32>,
    %37 = vector.shape_cast %34 : vector<1x1024xf32> to vector<1x1x1024xf32>
    %c0_29 = arith.constant 0 : index
    %c0_30 = arith.constant 0 : index
    %c0_31 = arith.constant 0 : index
    %38 = vector.load %arg11[%c0_29, %c0_30, %c0_31] : memref<1x1x1024xf32, #tpu.memory_space<vmem>>, vector<1x1x1024xf32>
    tpu.vector_store %arg11[%c0_29, %c0_30, %c0_31], %37 {strides = array<i32>} : memref<1x1x1024xf32, #tpu.memory_space<vmem>>, vector<1x1x1024xf32>,
    return
  }
  func.func @transform_0(%arg0: i32) -> (i32, i32) {
    %c0_i32 = arith.constant 0 : i32
    %c0_i32_0 = arith.constant 0 : i32
    return %arg0, %c0_i32 : i32, i32
  }
  func.func @transform_1(%arg0: i32) -> (i32, i32) {
    %c0_i32 = arith.constant 0 : i32
    %c0_i32_0 = arith.constant 0 : i32
    %c0_i32_1 = arith.constant 0 : i32
    return %c0_i32, %c0_i32_0 : i32, i32
  }
  func.func @transform_2(%arg0: i32) -> (i32, i32) {
    %c0_i32 = arith.constant 0 : i32
    %c0_i32_0 = arith.constant 0 : i32
    %c0_i32_1 = arith.constant 0 : i32
    return %c0_i32, %c0_i32_0 : i32, i32
  }
  func.func @transform_3(%arg0: i32) -> (i32, i32) {
    %c0_i32 = arith.constant 0 : i32
    %c0_i32_0 = arith.constant 0 : i32
    %c0_i32_1 = arith.constant 0 : i32
    return %c0_i32, %c0_i32_0 : i32, i32
  }
  func.func @transform_4(%arg0: i32) -> (i32, i32) {
    %c0_i32 = arith.constant 0 : i32
    %c0_i32_0 = arith.constant 0 : i32
    %c0_i32_1 = arith.constant 0 : i32
    return %c0_i32, %c0_i32_0 : i32, i32
  }
  func.func @transform_5(%arg0: i32) -> (i32, i32) {
    %c0_i32 = arith.constant 0 : i32
    %c0_i32_0 = arith.constant 0 : i32
    %c0_i32_1 = arith.constant 0 : i32
    return %c0_i32, %c0_i32_0 : i32, i32
  }
  func.func @transform_6(%arg0: i32) -> (i32, i32) {
    %c0_i32 = arith.constant 0 : i32
    %c0_i32_0 = arith.constant 0 : i32
    %c0_i32_1 = arith.constant 0 : i32
    return %c0_i32, %c0_i32_0 : i32, i32
  }
  func.func @transform_7(%arg0: i32) -> (i32, i32) {
    %c0_i32 = arith.constant 0 : i32
    %c0_i32_0 = arith.constant 0 : i32
    %c0_i32_1 = arith.constant 0 : i32
    return %c0_i32, %c0_i32_0 : i32, i32
  }
  func.func @transform_8(%arg0: i32) -> (i32, i32, i32) {
    %c0_i32 = arith.constant 0 : i32
    %c0_i32_0 = arith.constant 0 : i32
    %c0_i32_1 = arith.constant 0 : i32
    return %arg0, %c0_i32, %c0_i32_0 : i32, i32, i32
  }
  func.func @transform_9(%arg0: i32) -> (i32, i32, i32) {
    %c0_i32 = arith.constant 0 : i32
    %c0_i32_0 = arith.constant 0 : i32
    %c0_i32_1 = arith.constant 0 : i32
    return %arg0, %c0_i32, %c0_i32_0 : i32, i32, i32
  }
  func.func @transform_10(%arg0: i32) -> (i32, i32, i32) {
    %c0_i32 = arith.constant 0 : i32
    %c0_i32_0 = arith.constant 0 : i32
    %c0_i32_1 = arith.constant 0 : i32
    return %arg0, %c0_i32, %c0_i32_0 : i32, i32, i32
  }
}

module attributes {stable_mosaic.version = 11 : i64} {
  func.func @head_kernel(%arg0: memref<2x1024xf32, #tpu.memory_space<vmem>>, %arg1: memref<1024x512xf32, #tpu.memory_space<vmem>>, %arg2: memref<1x512xf32, #tpu.memory_space<vmem>>, %arg3: memref<1x512xf32, #tpu.memory_space<vmem>>, %arg4: memref<512x256xf32, #tpu.memory_space<vmem>>, %arg5: memref<1x256xf32, #tpu.memory_space<vmem>>, %arg6: memref<1x256xf32, #tpu.memory_space<vmem>>, %arg7: memref<256x9xf32, #tpu.memory_space<vmem>>, %arg8: memref<1x9xf32, #tpu.memory_space<vmem>>, %arg9: memref<1x9xf32, #tpu.memory_space<vmem>>, %arg10: memref<2x9xf32, #tpu.memory_space<vmem>>) attributes {dimension_semantics = [], scalar_prefetch = 0 : i64, scratch_operands = 0 : i64, tpu.core_type = #tpu.core_type<tc>} {
    %c0 = arith.constant 0 : index
    %c0_0 = arith.constant 0 : index
    %0 = vector.load %arg0[%c0, %c0_0] : memref<2x1024xf32, #tpu.memory_space<vmem>>, vector<2x1024xf32>
    %c0_1 = arith.constant 0 : index
    %c0_2 = arith.constant 0 : index
    %1 = vector.load %arg1[%c0_1, %c0_2] : memref<1024x512xf32, #tpu.memory_space<vmem>>, vector<1024x512xf32>
    %cst = arith.constant dense<0.000000e+00> : vector<2x512xf32>
    %2 = tpu.matmul %0, %1, %cst {dimension_numbers = #tpu.dot_dimension_numbers<[1], [0], [0], [1], [0, 0, 1, 1], [], []>} : vector<2x1024xf32>, vector<1024x512xf32>, vector<2x512xf32> -> vector<2x512xf32>
    %c0_3 = arith.constant 0 : index
    %c0_4 = arith.constant 0 : index
    %3 = vector.load %arg2[%c0_3, %c0_4] : memref<1x512xf32, #tpu.memory_space<vmem>>, vector<1x512xf32>
    %c0_5 = arith.constant 0 : index
    %c0_6 = arith.constant 0 : index
    %4 = vector.load %arg3[%c0_5, %c0_6] : memref<1x512xf32, #tpu.memory_space<vmem>>, vector<1x512xf32>
    %cst_7 = arith.constant dense<0.000000e+00> : vector<512xf32>
    %5 = vector.multi_reduction <add>, %2, %cst_7 [0] : vector<2x512xf32> to vector<512xf32>
    %6 = vector.shape_cast %5 : vector<512xf32> to vector<1x512xf32>
    %cst_8 = arith.constant 5.000000e-01 : f32
    %7 = vector.broadcast %cst_8 : f32 to vector<1x512xf32>
    %8 = arith.mulf %6, %7 : vector<1x512xf32>
    %9 = vector.broadcast %8 : vector<1x512xf32> to vector<2x512xf32>
    %10 = arith.subf %2, %9 : vector<2x512xf32>
    %11 = arith.mulf %10, %10 : vector<2x512xf32>
    %cst_9 = arith.constant dense<0.000000e+00> : vector<512xf32>
    %12 = vector.multi_reduction <add>, %11, %cst_9 [0] : vector<2x512xf32> to vector<512xf32>
    %13 = vector.shape_cast %12 : vector<512xf32> to vector<1x512xf32>
    %cst_10 = arith.constant 5.000000e-01 : f32
    %14 = vector.broadcast %cst_10 : f32 to vector<1x512xf32>
    %15 = arith.mulf %13, %14 : vector<1x512xf32>
    %cst_11 = arith.constant 9.99999974E-6 : f32
    %16 = vector.broadcast %cst_11 : f32 to vector<1x512xf32>
    %17 = arith.addf %15, %16 : vector<1x512xf32>
    %18 = math.rsqrt %17 : vector<1x512xf32>
    %19 = arith.mulf %3, %18 : vector<1x512xf32>
    %20 = vector.broadcast %19 : vector<1x512xf32> to vector<2x512xf32>
    %21 = arith.mulf %10, %20 : vector<2x512xf32>
    %22 = vector.broadcast %4 : vector<1x512xf32> to vector<2x512xf32>
    %23 = arith.addf %21, %22 : vector<2x512xf32>
    %cst_12 = arith.constant 0.000000e+00 : f32
    %24 = vector.broadcast %cst_12 : f32 to vector<2x512xf32>
    %25 = arith.maximumf %23, %24 : vector<2x512xf32>
    %c0_13 = arith.constant 0 : index
    %c0_14 = arith.constant 0 : index
    %26 = vector.load %arg4[%c0_13, %c0_14] : memref<512x256xf32, #tpu.memory_space<vmem>>, vector<512x256xf32>
    %cst_15 = arith.constant dense<0.000000e+00> : vector<2x256xf32>
    %27 = tpu.matmul %25, %26, %cst_15 {dimension_numbers = #tpu.dot_dimension_numbers<[1], [0], [0], [1], [0, 0, 1, 1], [], []>} : vector<2x512xf32>, vector<512x256xf32>, vector<2x256xf32> -> vector<2x256xf32>
    %c0_16 = arith.constant 0 : index
    %c0_17 = arith.constant 0 : index
    %28 = vector.load %arg5[%c0_16, %c0_17] : memref<1x256xf32, #tpu.memory_space<vmem>>, vector<1x256xf32>
    %c0_18 = arith.constant 0 : index
    %c0_19 = arith.constant 0 : index
    %29 = vector.load %arg6[%c0_18, %c0_19] : memref<1x256xf32, #tpu.memory_space<vmem>>, vector<1x256xf32>
    %cst_20 = arith.constant dense<0.000000e+00> : vector<256xf32>
    %30 = vector.multi_reduction <add>, %27, %cst_20 [0] : vector<2x256xf32> to vector<256xf32>
    %31 = vector.shape_cast %30 : vector<256xf32> to vector<1x256xf32>
    %cst_21 = arith.constant 5.000000e-01 : f32
    %32 = vector.broadcast %cst_21 : f32 to vector<1x256xf32>
    %33 = arith.mulf %31, %32 : vector<1x256xf32>
    %34 = vector.broadcast %33 : vector<1x256xf32> to vector<2x256xf32>
    %35 = arith.subf %27, %34 : vector<2x256xf32>
    %36 = arith.mulf %35, %35 : vector<2x256xf32>
    %cst_22 = arith.constant dense<0.000000e+00> : vector<256xf32>
    %37 = vector.multi_reduction <add>, %36, %cst_22 [0] : vector<2x256xf32> to vector<256xf32>
    %38 = vector.shape_cast %37 : vector<256xf32> to vector<1x256xf32>
    %cst_23 = arith.constant 5.000000e-01 : f32
    %39 = vector.broadcast %cst_23 : f32 to vector<1x256xf32>
    %40 = arith.mulf %38, %39 : vector<1x256xf32>
    %cst_24 = arith.constant 9.99999974E-6 : f32
    %41 = vector.broadcast %cst_24 : f32 to vector<1x256xf32>
    %42 = arith.addf %40, %41 : vector<1x256xf32>
    %43 = math.rsqrt %42 : vector<1x256xf32>
    %44 = arith.mulf %28, %43 : vector<1x256xf32>
    %45 = vector.broadcast %44 : vector<1x256xf32> to vector<2x256xf32>
    %46 = arith.mulf %35, %45 : vector<2x256xf32>
    %47 = vector.broadcast %29 : vector<1x256xf32> to vector<2x256xf32>
    %48 = arith.addf %46, %47 : vector<2x256xf32>
    %cst_25 = arith.constant 0.000000e+00 : f32
    %49 = vector.broadcast %cst_25 : f32 to vector<2x256xf32>
    %50 = arith.maximumf %48, %49 : vector<2x256xf32>
    %c0_26 = arith.constant 0 : index
    %c0_27 = arith.constant 0 : index
    %51 = vector.load %arg7[%c0_26, %c0_27] : memref<256x9xf32, #tpu.memory_space<vmem>>, vector<256x9xf32>
    %cst_28 = arith.constant dense<0.000000e+00> : vector<2x9xf32>
    %52 = tpu.matmul %50, %51, %cst_28 {dimension_numbers = #tpu.dot_dimension_numbers<[1], [0], [0], [1], [0, 0, 1, 1], [], []>} : vector<2x256xf32>, vector<256x9xf32>, vector<2x9xf32> -> vector<2x9xf32>
    %c0_29 = arith.constant 0 : index
    %c0_30 = arith.constant 0 : index
    %53 = vector.load %arg8[%c0_29, %c0_30] : memref<1x9xf32, #tpu.memory_space<vmem>>, vector<1x9xf32>
    %54 = vector.broadcast %53 : vector<1x9xf32> to vector<2x9xf32>
    %55 = arith.addf %52, %54 : vector<2x9xf32>
    %c0_31 = arith.constant 0 : index
    %c0_32 = arith.constant 0 : index
    %56 = vector.load %arg9[%c0_31, %c0_32] : memref<1x9xf32, #tpu.memory_space<vmem>>, vector<1x9xf32>
    %57 = vector.broadcast %56 : vector<1x9xf32> to vector<2x9xf32>
    %58 = arith.addf %55, %57 : vector<2x9xf32>
    %c0_33 = arith.constant 0 : index
    %c0_34 = arith.constant 0 : index
    %59 = vector.load %arg10[%c0_33, %c0_34] : memref<2x9xf32, #tpu.memory_space<vmem>>, vector<2x9xf32>
    tpu.vector_store %arg10[%c0_33, %c0_34], %58 {strides = array<i32>} : memref<2x9xf32, #tpu.memory_space<vmem>>, vector<2x9xf32>,
    return
  }
}

</mosaic_0001>

<llo_original>
// kernel: tnet_forward.3
$region0: #{tnet_forward.3}
  #allocation0 [shape = 'u32[]', space=smem, size = 0x4, offset = 0x4, fixed_abs, tag = 'smem constant byte address 0x4 - core index']
  #allocation1 [shape = 'u32[144,128]{1,0:T(1,128)}', space=vmem, size = 0x12000, scoped, tag = 'internal scratch']
  %s0 = inlined_call_operand.vmem [shape: f32[256,8], index: 0, kind: input, shape index: {}]
  %s1 = inlined_call_operand.vmem [shape: f32[1,64], index: 1, kind: input, shape index: {}]
  %s2 = inlined_call_operand.vmem [shape: f32[1,64], index: 2, kind: input, shape index: {}]
  %s3 = inlined_call_operand.vmem [shape: f32[8,64], index: 3, kind: input, shape index: {}]
  %s4 = inlined_call_operand.hbm [shape: f32[64,128], index: 4, kind: input, shape index: {}]
  %s5 = inlined_call_operand.vmem [shape: f32[2,2,128], index: 5, kind: output, shape index: {}]
  %s6 = sld [smem:[#allocation0]]
  $region57: #{tnet_forward.3} parent=0
    _
  %s8 = ssub.s32 1, %s6
  %s9 = scalar_select 0, %s8, %s6
  $region1: #{tnet_forward.3} parent=0
    #allocation2 [shape = 'u8[32768]{0}', space=vmem, size = 0x8000, scoped, tag = 'input window, operand 4, single buffered']
    #allocation3 [shape = 's32[2]{0}', space=sflag, size = 0x8, scoped, tag = 'scoped memory for tnet_forward.3']
    %10 = vsyncpa [#allocation3], 0
    loop: start=0, step=1, limit=4
    $region2: #{tnet_forward.3} parent=1 // loop_pre_header
      _
    $region3: #{tnet_forward.3} parent=1 // loop_header
      %s12 = sphi 0, %s16
      %p13 = scmp.ge.s32.totalorder %s12, 4
      %s22 = sphi 0, %s24
      %s25 = sphi 0, %s22
      %s26 = sphi 0, %s25
      %s42 = sphi 0, %s26
      %s46 = sphi 0, %s46
      %s48 = sphi 0, %s46
      %s49 = sphi 0, %s48
      %s63 = sphi 0, %s49
      %s67 = sphi 0, %s67
      %s69 = sphi 0, %s67
      %s70 = sphi 0, %s69
      %s84 = sphi 0, %s70
      %s88 = sphi 0, %s88
      %s90 = sphi 0, %s88
      %s91 = sphi 0, %s90
      %s105 = sphi 0, %s91
      %s109 = sphi 0, %s109
      %s111 = sphi 0, %s109
      %s112 = sphi 0, %s111
      %s126 = sphi 0, %s112
      %s132 = sphi 0, %s134
      %s135 = sphi 0, %s132
      %s136 = sphi 0, %s135
      %s152 = sphi 0, %s136
    $region4: #{tnet_forward.3} parent=1 // loop_header_branch
      %15 = sbr.rel (%p13) target = $region8
    $region5: #{tnet_forward.3} parent=1 // loop_body
      %s17 = ssub.s32 %s12, 1
      %s18 = ssub.s32 %s12, 2
      %s19 = sadd.s32 %s12, 1
      %s20 = ssub.s32 %s12, %s19
      %p21 = scmp.eq.s32.totalorder %s20, 0
      %s23 = sadd.s32 %s22, 1
      %s24 = scalar_select %p21, %s22, %s23
      %p27 = pneg %p21
      %p28 = scmp.eq.s32.totalorder %s12, 1
      %p29 = por %p27, %p28
      %p30 = scmp.ne.s32.totalorder %s22, %s25
      %p31 = scmp.eq.s32.totalorder %s12, 0
      %p32 = por %p30, %p31
      %p33 = scmp.ne.s32.totalorder %s22, %s25
      %p34 = scmp.eq.s32.totalorder %s17, 1
      %p35 = por %p33, %p34
      %p36 = scmp.ne.s32.totalorder %s25, %s26
      %p37 = scmp.eq.s32.totalorder %s17, 0
      %p38 = por %p36, %p37
      %p39 = scmp.ne.s32.totalorder %s25, %s26
      %p40 = scmp.eq.s32.totalorder %s18, 1
      %p41 = por %p39, %p40
      %p43 = scmp.ne.s32.totalorder %s26, %s42
      %p44 = scmp.eq.s32.totalorder %s18, 0
      %p45 = por %p43, %p44
      %s47 = sadd.s32 %s46, 1
      %p50 = scmp.eq.s32.totalorder %s12, 1
      %p51 = scmp.ne.s32.totalorder %s46, %s48
      %p52 = scmp.eq.s32.totalorder %s12, 0
      %p53 = por %p51, %p52
      %p54 = scmp.ne.s32.totalorder %s46, %s48
      %p55 = scmp.eq.s32.totalorder %s17, 1
      %p56 = por %p54, %p55
      %p57 = scmp.ne.s32.totalorder %s48, %s49
      %p58 = scmp.eq.s32.totalorder %s17, 0
      %p59 = por %p57, %p58
      %p60 = scmp.ne.s32.totalorder %s48, %s49
      %p61 = scmp.eq.s32.totalorder %s18, 1
      %p62 = por %p60, %p61
      %p64 = scmp.ne.s32.totalorder %s49, %s63
      %p65 = scmp.eq.s32.totalorder %s18, 0
      %p66 = por %p64, %p65
      %s68 = sadd.s32 %s67, 1
      %p71 = scmp.eq.s32.totalorder %s12, 1
      %p72 = scmp.ne.s32.totalorder %s67, %s69
      %p73 = scmp.eq.s32.totalorder %s12, 0
      %p74 = por %p72, %p73
      %p75 = scmp.ne.s32.totalorder %s67, %s69
      %p76 = scmp.eq.s32.totalorder %s17, 1
      %p77 = por %p75, %p76
      %p78 = scmp.ne.s32.totalorder %s69, %s70
      %p79 = scmp.eq.s32.totalorder %s17, 0
      %p80 = por %p78, %p79
      %p81 = scmp.ne.s32.totalorder %s69, %s70
      %p82 = scmp.eq.s32.totalorder %s18, 1
      %p83 = por %p81, %p82
      %p85 = scmp.ne.s32.totalorder %s70, %s84
      %p86 = scmp.eq.s32.totalorder %s18, 0
      %p87 = por %p85, %p86
      %s89 = sadd.s32 %s88, 1
      %p92 = scmp.eq.s32.totalorder %s12, 1
      %p93 = scmp.ne.s32.totalorder %s88, %s90
      %p94 = scmp.eq.s32.totalorder %s12, 0
      %p95 = por %p93, %p94
      %p96 = scmp.ne.s32.totalorder %s88, %s90
      %p97 = scmp.eq.s32.totalorder %s17, 1
      %p98 = por %p96, %p97
      %p99 = scmp.ne.s32.totalorder %s90, %s91
      %p100 = scmp.eq.s32.totalorder %s17, 0
      %p101 = por %p99, %p100
      %p102 = scmp.ne.s32.totalorder %s90, %s91
      %p103 = scmp.eq.s32.totalorder %s18, 1
      %p104 = por %p102, %p103
      %p106 = scmp.ne.s32.totalorder %s91, %s105
      %p107 = scmp.eq.s32.totalorder %s18, 0
      %p108 = por %p106, %p107
      %s110 = sadd.s32 %s109, 1
      %p113 = scmp.eq.s32.totalorder %s12, 1
      %p114 = scmp.ne.s32.totalorder %s109, %s111
      %p115 = scmp.eq.s32.totalorder %s12, 0
      %p116 = por %p114, %p115
      %p117 = scmp.ne.s32.totalorder %s109, %s111
      %p118 = scmp.eq.s32.totalorder %s17, 1
      %p119 = por %p117, %p118
      %p120 = scmp.ne.s32.totalorder %s111, %s112
      %p121 = scmp.eq.s32.totalorder %s17, 0
      %p122 = por %p120, %p121
      %p123 = scmp.ne.s32.totalorder %s111, %s112
      %p124 = scmp.eq.s32.totalorder %s18, 1
      %p125 = por %p123, %p124
      %p127 = scmp.ne.s32.totalorder %s112, %s126
      %p128 = scmp.eq.s32.totalorder %s18, 0
      %p129 = por %p127, %p128
      %s130 = ssub.s32 %s12, %s19
      %p131 = scmp.eq.s32.totalorder %s130, 0
      %s133 = sadd.s32 %s132, 1
      %s134 = scalar_select %p131, %s132, %s133
      %p137 = pneg %p131
      %p138 = scmp.eq.s32.totalorder %s12, 1
      %p139 = por %p137, %p138
      %p140 = scmp.ne.s32.totalorder %s132, %s135
      %p141 = scmp.eq.s32.totalorder %s12, 0
      %p142 = por %p140, %p141
      %p143 = scmp.ne.s32.totalorder %s132, %s135
      %p144 = scmp.eq.s32.totalorder %s17, 1
      %p145 = por %p143, %p144
      %p146 = scmp.ne.s32.totalorder %s135, %s136
      %p147 = scmp.eq.s32.totalorder %s17, 0
      %p148 = por %p146, %p147
      %p149 = scmp.ne.s32.totalorder %s135, %s136
      %p150 = scmp.eq.s32.totalorder %s18, 1
      %p151 = por %p149, %p150
      %p153 = scmp.ne.s32.totalorder %s136, %s152
      %p154 = scmp.eq.s32.totalorder %s18, 0
      %p155 = por %p153, %p154
      %p156 = scmp.le.s32.totalorder 1, %s12
      %p157 = scmp.lt.s32.totalorder %s12, 3
      %p158 = pnand %p156, %p157
      %p159 = pneg %p158
      // Predicated region
      $region9: #{tnet_forward.3} parent=5 // pred_check
        _
      $region10: #{tnet_forward.3} parent=5 // pred_check_branch
        %161 = sbr.rel (%p158) target = $region12
      $region11: #{tnet_forward.3} parent=5 // pred_region
        %s162 = ssub.s32 %s12, 1
        // Predicated region
        $region13: #{tnet_forward.3} parent=11 // pred_check
          %p163 = pneg %p59
        $region14: #{tnet_forward.3} parent=11 // pred_check_branch
          %165 = sbr.rel (%p163) target = $region16
        $region15: #{tnet_forward.3} parent=11 // pred_region
          _
        $region16: #{tnet_forward.3} parent=11 // pred_fallthru
          _
        // Predicated region
        $region17: #{tnet_forward.3} parent=11 // pred_check
          %p166 = pneg %p80
        $region18: #{tnet_forward.3} parent=11 // pred_check_branch
          %168 = sbr.rel (%p166) target = $region20
        $region19: #{tnet_forward.3} parent=11 // pred_region
          _
        $region20: #{tnet_forward.3} parent=11 // pred_fallthru
          _
        // Predicated region
        $region21: #{tnet_forward.3} parent=11 // pred_check
          %p169 = pneg %p101
        $region22: #{tnet_forward.3} parent=11 // pred_check_branch
          %171 = sbr.rel (%p169) target = $region24
        $region23: #{tnet_forward.3} parent=11 // pred_region
          _
        $region24: #{tnet_forward.3} parent=11 // pred_fallthru
          _
        // Predicated region
        $region25: #{tnet_forward.3} parent=11 // pred_check
          %p172 = pneg %p122
        $region26: #{tnet_forward.3} parent=11 // pred_check_branch
          %174 = sbr.rel (%p172) target = $region28
        $region27: #{tnet_forward.3} parent=11 // pred_region
          %s176 = ssub.s32 1024, 1024
          %177 = vsyncadd [#allocation3], %s176
          %s178 = sshll.u32 [#allocation2], 4
          %s179 = int_to_ptr.vmem [resolvable:$true] %s178
          %184 = dma.hbm_to_vmem [thread:$0]  %s4, 1024, %s179, [#allocation3], 128, 128, 8
        $region28: #{tnet_forward.3} parent=11 // pred_fallthru
          _
      $region12: #{tnet_forward.3} parent=5 // pred_fallthru
        _
      %p185 = scmp.lt.s32.totalorder %s12, 2
      // Predicated region
      $region29: #{tnet_forward.3} parent=5 // pred_check
        %p186 = pneg %p185
      $region30: #{tnet_forward.3} parent=5 // pred_check_branch
        %188 = sbr.rel (%p186) target = $region32
      $region31: #{tnet_forward.3} parent=5 // pred_region
        // Predicated region
        $region33: #{tnet_forward.3} parent=31 // pred_check
          %p189 = pneg %p32
        $region34: #{tnet_forward.3} parent=31 // pred_check_branch
          %191 = sbr.rel (%p189) target = $region36
        $region35: #{tnet_forward.3} parent=31 // pred_region
          %s192 = smul.u32 16, %s12
          %p193 = scmp.lt.s32.totalorder %s192, 31
          %s194 = scalar_select %p193, %s192, 31
          %s195 = smul.addr %s194, 8
          %s196 = scalar_lea.vmem %s0, %s195
          %s197 = smul.u32 16, %s12
        $region36: #{tnet_forward.3} parent=31 // pred_fallthru
          _
      $region32: #{tnet_forward.3} parent=5 // pred_fallthru
        _
      %p198 = scmp.le.s32.totalorder 1, %s12
      %p199 = scmp.lt.s32.totalorder %s12, 3
      %p200 = pnand %p198, %p199
      %p201 = pneg %p200
      // Predicated region
      $region37: #{tnet_forward.3} parent=5 // pred_check
        _
      $region38: #{tnet_forward.3} parent=5 // pred_check_branch
        %203 = sbr.rel (%p200) target = $region40
      $region39: #{tnet_forward.3} parent=5 // pred_region
        %s204 = ssub.s32 %s12, 1
        // Predicated region
        $region41: #{tnet_forward.3} parent=39 // pred_check
          %p205 = pneg %p122
        $region42: #{tnet_forward.3} parent=39 // pred_check_branch
          %207 = sbr.rel (%p205) target = $region44
        $region43: #{tnet_forward.3} parent=39 // pred_region
          %208 = dma.done [#allocation3], 1024
        $region44: #{tnet_forward.3} parent=39 // pred_fallthru
          _
        %s209 = smul.u32 16, %s17
        %p210 = scmp.lt.s32.totalorder %s209, 31
        %s211 = scalar_select %p210, %s209, 31
        %s212 = smul.addr %s211, 8
        %s213 = scalar_lea.vmem %s0, %s212
        %p214 = pneg %p38
        %p215 = pneg %p35
        %p216 = pneg %p59
        %p217 = pneg %p56
        %p218 = pneg %p80
        %p219 = pneg %p77
        %p220 = pneg %p101
        %p221 = pneg %p98
        %p222 = pneg %p122
        %p223 = pneg %p119
        %p224 = pneg %p148
        %p225 = pneg %p145
        %p226 = scmp.lt.s32.totalorder %s17, 1
        %s227 = scalar_select %p226, %s17, 1
        %s228 = smul.addr %s227, 2
        %s229 = scalar_lea.vmem %s5, %s228
        %s230 = smul.u32 16, %s17
        %p231 = scmp.lt.s32.totalorder %s230, 31
        %s232 = scalar_select %p231, %s230, 31
        %s233 = smul.addr %s232, 8
        %s234 = scalar_lea.vmem %s0, %s233
        %s235 = smul.u32 16, %s17
        %p236 = scmp.lt.s32.totalorder %s17, 1
        %s237 = scalar_select %p236, %s17, 1
        %s238 = smul.addr %s237, 2
        %s239 = scalar_lea.vmem %s5, %s238
        %v240 = vld [vmem:[%s234] sm:$0xff]
        %v241 = vld [vmem:[%s234 + $0x8] sm:$0xff]
        %v242 = vld [vmem:[%s234 + $0x10] sm:$0xff]
        %v243 = vld [vmem:[%s234 + $0x18] sm:$0xff]
        %v244 = vld [vmem:[%s234 + $0x20] sm:$0xff]
        %v245 = vld [vmem:[%s234 + $0x28] sm:$0xff]
        %v246 = vld [vmem:[%s234 + $0x30] sm:$0xff]
        %v247 = vld [vmem:[%s234 + $0x38] sm:$0xff]
        %v248 = vld [vmem:[%s234 + $0x40] sm:$0xff]
        %v249 = vld [vmem:[%s234 + $0x48] sm:$0xff]
        %v250 = vld [vmem:[%s234 + $0x50] sm:$0xff]
        %v251 = vld [vmem:[%s234 + $0x58] sm:$0xff]
        %v252 = vld [vmem:[%s234 + $0x60] sm:$0xff]
        %v253 = vld [vmem:[%s234 + $0x68] sm:$0xff]
        %v254 = vld [vmem:[%s234 + $0x70] sm:$0xff]
        %v255 = vld [vmem:[%s234 + $0x78] sm:$0xff]
        %v256 = vld [vmem:[%s3] sm:$0xff]
        %vm257 = vcmask 64512
        %v259 = vsel %vm257, %v240, 0
        %v262 = vsel %vm257, %v241, 0
        %v265 = vsel %vm257, %v242, 0
        %v268 = vsel %vm257, %v243, 0
        %v271 = vsel %vm257, %v244, 0
        %v274 = vsel %vm257, %v245, 0
        %v277 = vsel %vm257, %v246, 0
        %v280 = vsel %vm257, %v247, 0
        %v283 = vsel %vm257, %v248, 0
        %v286 = vsel %vm257, %v249, 0
        %v289 = vsel %vm257, %v250, 0
        %v292 = vsel %vm257, %v251, 0
        %v295 = vsel %vm257, %v252, 0
        %v298 = vsel %vm257, %v253, 0
        %v301 = vsel %vm257, %v254, 0
        %v304 = vsel %vm257, %v255, 0
        %306 = vmatprep.subr.mxu0 0.0
        %307 = vmatpush1.msra.mxu0 %v256
        %308 = vmatprep.subr.mxu0 0.0
        %309 = vmatpush1.msra.mxu0 0.0
        %310 = vmatprep.subr.mxu0 0.0
        %311 = vmatpush1.msra.mxu0 0.0
        %312 = vmatprep.subr.mxu0 0.0
        %313 = vmatpush1.msra.mxu0 0.0
        %314 = vmatprep.subr.mxu0 0.0
        %315 = vmatpush1.msra.mxu0 0.0
        %316 = vmatprep.subr.mxu0 0.0
        %317 = vmatpush1.msra.mxu0 0.0
        %318 = vmatprep.subr.mxu0 0.0
        %319 = vmatpush1.msra.mxu0 0.0
        %320 = vmatprep.subr.mxu0 0.0
        %321 = vmatpush1.msra.mxu0 0.0
        %322 = vmatprep.subr.mxu0 0.0
        %323 = vmatpush1.msra.mxu0 0.0
        %324 = vmatprep.subr.mxu0 0.0
        %325 = vmatpush1.msra.mxu0 0.0
        %326 = vmatprep.subr.mxu0 0.0
        %327 = vmatpush1.msra.mxu0 0.0
        %328 = vmatprep.subr.mxu0 0.0
        %329 = vmatpush1.msra.mxu0 0.0
        %330 = vmatprep.subr.mxu0 0.0
        %331 = vmatpush1.msra.mxu0 0.0
        %332 = vmatprep.subr.mxu0 0.0
        %333 = vmatpush1.msra.mxu0 0.0
        %334 = vmatprep.subr.mxu0 0.0
        %335 = vmatpush1.msra.mxu0 0.0
        %336 = vmatprep.subr.mxu0 0.0
        %337 = vmatpush1.msra.mxu0 0.0
        %338 = vmatprep.subr.mxu0 0.0
        %339 = vmatpush1.msra.mxu0 0.0
        %340 = vmatprep.subr.mxu0 0.0
        %341 = vmatpush1.msra.mxu0 0.0
        %342 = vmatprep.subr.mxu0 0.0
        %343 = vmatpush1.msra.mxu0 0.0
        %344 = vmatprep.subr.mxu0 0.0
        %345 = vmatpush1.msra.mxu0 0.0
        %346 = vmatprep.subr.mxu0 0.0
        %347 = vmatpush1.msra.mxu0 0.0
        %348 = vmatprep.subr.mxu0 0.0
        %349 = vmatpush1.msra.mxu0 0.0
        %350 = vmatprep.subr.mxu0 0.0
        %351 = vmatpush1.msra.mxu0 0.0
        %352 = vmatprep.subr.mxu0 0.0
        %353 = vmatpush1.msra.mxu0 0.0
        %354 = vmatprep.subr.mxu0 0.0
        %355 = vmatpush1.msra.mxu0 0.0
        %356 = vmatprep.subr.mxu0 0.0
        %357 = vmatpush1.msra.mxu0 0.0
        %358 = vmatprep.subr.mxu0 0.0
        %359 = vmatpush1.msra.mxu0 0.0
        %360 = vmatprep.subr.mxu0 0.0
        %361 = vmatpush1.msra.mxu0 0.0
        %362 = vmatprep.subr.mxu0 0.0
        %363 = vmatpush1.msra.mxu0 0.0
        %364 = vmatprep.subr.mxu0 0.0
        %365 = vmatpush1.msra.mxu0 0.0
        %366 = vmatprep.subr.mxu0 0.0
        %367 = vmatpush1.msra.mxu0 0.0
        %368 = vmatprep.subr.mxu0 0.0
        %369 = vmatpush1.msra.mxu0 0.0
        %370 = vmatprep.mubr.f32.mxu0 0.0
        %371 = vmatmul.mubr.f32.gmra.mrb[0].mxu0 %v259
        %v372 = vpop.f32.mrb[0].mxu0
        %v373 = vadd.f32 0.0, %v372
        %v374 = vpop.f32.mrb[0].mxu0
        %375 = vmatprep.mubr.f32.mxu0 0.0
        %376 = vmatmul.mubr.f32.gmra.mrb[0].mxu0 %v262
        %v377 = vpop.f32.mrb[0].mxu0
        %v378 = vadd.f32 0.0, %v377
        %v379 = vpop.f32.mrb[0].mxu0
        %380 = vmatprep.mubr.f32.mxu0 0.0
        %381 = vmatmul.mubr.f32.gmra.mrb[0].mxu0 %v265
        %v382 = vpop.f32.mrb[0].mxu0
        %v383 = vadd.f32 0.0, %v382
        %v384 = vpop.f32.mrb[0].mxu0
        %385 = vmatprep.mubr.f32.mxu0 0.0
        %386 = vmatmul.mubr.f32.gmra.mrb[0].mxu0 %v268
        %v387 = vpop.f32.mrb[0].mxu0
        %v388 = vadd.f32 0.0, %v387
        %v389 = vpop.f32.mrb[0].mxu0
        %390 = vmatprep.mubr.f32.mxu0 0.0
        %391 = vmatmul.mubr.f32.gmra.mrb[0].mxu0 %v271
        %v392 = vpop.f32.mrb[0].mxu0
        %v393 = vadd.f32 0.0, %v392
        %v394 = vpop.f32.mrb[0].mxu0
        %395 = vmatprep.mubr.f32.mxu0 0.0
        %396 = vmatmul.mubr.f32.gmra.mrb[0].mxu0 %v274
        %v397 = vpop.f32.mrb[0].mxu0
        %v398 = vadd.f32 0.0, %v397
        %v399 = vpop.f32.mrb[0].mxu0
        %400 = vmatprep.mubr.f32.mxu0 0.0
        %401 = vmatmul.mubr.f32.gmra.mrb[0].mxu0 %v277
        %v402 = vpop.f32.mrb[0].mxu0
        %v403 = vadd.f32 0.0, %v402
        %v404 = vpop.f32.mrb[0].mxu0
        %405 = vmatprep.mubr.f32.mxu0 0.0
        %406 = vmatmul.mubr.f32.gmra.mrb[0].mxu0 %v280
        %v407 = vpop.f32.mrb[0].mxu0
        %v408 = vadd.f32 0.0, %v407
        %v409 = vpop.f32.mrb[0].mxu0
        %410 = vmatprep.mubr.f32.mxu0 0.0
        %411 = vmatmul.mubr.f32.gmra.mrb[0].mxu0 %v283
        %v412 = vpop.f32.mrb[0].mxu0
        %v413 = vadd.f32 0.0, %v412
        %v414 = vpop.f32.mrb[0].mxu0
        %415 = vmatprep.mubr.f32.mxu0 0.0
        %416 = vmatmul.mubr.f32.gmra.mrb[0].mxu0 %v286
        %v417 = vpop.f32.mrb[0].mxu0
        %v418 = vadd.f32 0.0, %v417
        %v419 = vpop.f32.mrb[0].mxu0
        %420 = vmatprep.mubr.f32.mxu0 0.0
        %421 = vmatmul.mubr.f32.gmra.mrb[0].mxu0 %v289
        %v422 = vpop.f32.mrb[0].mxu0
        %v423 = vadd.f32 0.0, %v422
        %v424 = vpop.f32.mrb[0].mxu0
        %425 = vmatprep.mubr.f32.mxu0 0.0
        %426 = vmatmul.mubr.f32.gmra.mrb[0].mxu0 %v292
        %v427 = vpop.f32.mrb[0].mxu0
        %v428 = vadd.f32 0.0, %v427
        %v429 = vpop.f32.mrb[0].mxu0
        %430 = vmatprep.mubr.f32.mxu0 0.0
        %431 = vmatmul.mubr.f32.gmra.mrb[0].mxu0 %v295
        %v432 = vpop.f32.mrb[0].mxu0
        %v433 = vadd.f32 0.0, %v432
        %v434 = vpop.f32.mrb[0].mxu0
        %435 = vmatprep.mubr.f32.mxu0 0.0
        %436 = vmatmul.mubr.f32.gmra.mrb[0].mxu0 %v298
        %v437 = vpop.f32.mrb[0].mxu0
        %v438 = vadd.f32 0.0, %v437
        %v439 = vpop.f32.mrb[0].mxu0
        %440 = vmatprep.mubr.f32.mxu0 0.0
        %441 = vmatmul.mubr.f32.gmra.mrb[0].mxu0 %v301
        %v442 = vpop.f32.mrb[0].mxu0
        %v443 = vadd.f32 0.0, %v442
        %v444 = vpop.f32.mrb[0].mxu0
        %445 = vmatprep.mubr.f32.mxu0 0.0
        %446 = vmatmul.mubr.f32.gmra.mrb[0].mxu0 %v304
        %v447 = vpop.f32.mrb[0].mxu0
        %v448 = vadd.f32 0.0, %v447
        %v449 = vpop.f32.mrb[0].mxu0
        %450 = vdwg.mxu0
        %v451 = vld [vmem:[%s1] sm:$0x1]
        %v453 = vlaneseq
        %v454 = vshrl.u32 %v453, 7
        %v455 = vsub.s32 0, %v454
        %v456 = vrot.slane %v451, %v455
        %v458 = vmul.f32 %v373, %v456
        %v459 = vmul.f32 %v378, %v456
        %v460 = vmul.f32 %v383, %v456
        %v461 = vmul.f32 %v388, %v456
        %v462 = vmul.f32 %v393, %v456
        %v463 = vmul.f32 %v398, %v456
        %v464 = vmul.f32 %v403, %v456
        %v465 = vmul.f32 %v408, %v456
        %v466 = vmul.f32 %v413, %v456
        %v467 = vmul.f32 %v418, %v456
        %v468 = vmul.f32 %v423, %v456
        %v469 = vmul.f32 %v428, %v456
        %v470 = vmul.f32 %v433, %v456
        %v471 = vmul.f32 %v438, %v456
        %v472 = vmul.f32 %v443, %v456
        %v473 = vmul.f32 %v448, %v456
        %v474 = vld [vmem:[%s2] sm:$0x1]
        %v476 = vlaneseq
        %v477 = vshrl.u32 %v476, 7
        %v478 = vsub.s32 0, %v477
        %v479 = vrot.slane %v474, %v478
        %v481 = vadd.f32 %v458, %v479
        %v482 = vadd.f32 %v459, %v479
        %v483 = vadd.f32 %v460, %v479
        %v484 = vadd.f32 %v461, %v479
        %v485 = vadd.f32 %v462, %v479
        %v486 = vadd.f32 %v463, %v479
        %v487 = vadd.f32 %v464, %v479
        %v488 = vadd.f32 %v465, %v479
        %v489 = vadd.f32 %v466, %v479
        %v490 = vadd.f32 %v467, %v479
        %v491 = vadd.f32 %v468, %v479
        %v492 = vadd.f32 %v469, %v479
        %v493 = vadd.f32 %v470, %v479
        %v494 = vadd.f32 %v471, %v479
        %v495 = vadd.f32 %v472, %v479
        %v496 = vadd.f32 %v473, %v479
        %v497 = vmax.f32 %v481, 0.0
        %v498 = vmax.f32 %v482, 0.0
        %v499 = vmax.f32 %v483, 0.0
        %v500 = vmax.f32 %v484, 0.0
        %v501 = vmax.f32 %v485, 0.0
        %v502 = vmax.f32 %v486, 0.0
        %v503 = vmax.f32 %v487, 0.0
        %v504 = vmax.f32 %v488, 0.0
        %v505 = vmax.f32 %v489, 0.0
        %v506 = vmax.f32 %v490, 0.0
        %v507 = vmax.f32 %v491, 0.0
        %v508 = vmax.f32 %v492, 0.0
        %v509 = vmax.f32 %v493, 0.0
        %v510 = vmax.f32 %v494, 0.0
        %v511 = vmax.f32 %v495, 0.0
        %v512 = vmax.f32 %v496, 0.0
        %v513 = vld [vmem:[#allocation2] sm:$0xff]
        %v514 = vld [vmem:[#allocation2 + $0x8] sm:$0xff]
        %v515 = vld [vmem:[#allocation2 + $0x10] sm:$0xff]
        %v516 = vld [vmem:[#allocation2 + $0x18] sm:$0xff]
        %v517 = vld [vmem:[#allocation2 + $0x20] sm:$0xff]
        %v518 = vld [vmem:[#allocation2 + $0x28] sm:$0xff]
        %v519 = vld [vmem:[#allocation2 + $0x30] sm:$0xff]
        %v520 = vld [vmem:[#allocation2 + $0x38] sm:$0xff]
        %vm521 = vcmask 523264
        %v523 = vsel %vm521, %v497, 0
        %v526 = vsel %vm521, %v498, 0
        %v529 = vsel %vm521, %v499, 0
        %v532 = vsel %vm521, %v500, 0
        %v535 = vsel %vm521, %v501, 0
        %v538 = vsel %vm521, %v502, 0
        %v541 = vsel %vm521, %v503, 0
        %v544 = vsel %vm521, %v504, 0
        %v547 = vsel %vm521, %v505, 0
        %v550 = vsel %vm521, %v506, 0
        %v553 = vsel %vm521, %v507, 0
        %v556 = vsel %vm521, %v508, 0
        %v559 = vsel %vm521, %v509, 0
        %v562 = vsel %vm521, %v510, 0
        %v565 = vsel %vm521, %v511, 0
        %v568 = vsel %vm521, %v512, 0
        %570 = vmatprep.subr.mxu0 0.0
        %571 = vmatpush1.msra.mxu0 %v513
        %572 = vmatprep.subr.mxu0 0.0
        %573 = vmatpush1.msra.mxu0 %v514
        %574 = vmatprep.subr.mxu0 0.0
        %575 = vmatpush1.msra.mxu0 %v515
        %576 = vmatprep.subr.mxu0 0.0
        %577 = vmatpush1.msra.mxu0 %v516
        %578 = vmatprep.subr.mxu0 0.0
        %579 = vmatpush1.msra.mxu0 %v517
        %580 = vmatprep.subr.mxu0 0.0
        %581 = vmatpush1.msra.mxu0 %v518
        %582 = vmatprep.subr.mxu0 0.0
        %583 = vmatpush1.msra.mxu0 %v519
        %584 = vmatprep.subr.mxu0 0.0
        %585 = vmatpush1.msra.mxu0 %v520
        %586 = vmatprep.subr.mxu0 0.0
        %587 = vmatpush1.msra.mxu0 0.0
        %588 = vmatprep.subr.mxu0 0.0
        %589 = vmatpush1.msra.mxu0 0.0
        %590 = vmatprep.subr.mxu0 0.0
        %591 = vmatpush1.msra.mxu0 0.0
        %592 = vmatprep.subr.mxu0 0.0
        %593 = vmatpush1.msra.mxu0 0.0
        %594 = vmatprep.subr.mxu0 0.0
        %595 = vmatpush1.msra.mxu0 0.0
        %596 = vmatprep.subr.mxu0 0.0
        %597 = vmatpush1.msra.mxu0 0.0
        %598 = vmatprep.subr.mxu0 0.0
        %599 = vmatpush1.msra.mxu0 0.0
        %600 = vmatprep.subr.mxu0 0.0
        %601 = vmatpush1.msra.mxu0 0.0
        %602 = vmatprep.subr.mxu0 0.0
        %603 = vmatpush1.msra.mxu0 0.0
        %604 = vmatprep.subr.mxu0 0.0
        %605 = vmatpush1.msra.mxu0 0.0
        %606 = vmatprep.subr.mxu0 0.0
        %607 = vmatpush1.msra.mxu0 0.0
        %608 = vmatprep.subr.mxu0 0.0
        %609 = vmatpush1.msra.mxu0 0.0
        %610 = vmatprep.subr.mxu0 0.0
        %611 = vmatpush1.msra.mxu0 0.0
        %612 = vmatprep.subr.mxu0 0.0
        %613 = vmatpush1.msra.mxu0 0.0
        %614 = vmatprep.subr.mxu0 0.0
        %615 = vmatpush1.msra.mxu0 0.0
        %616 = vmatprep.subr.mxu0 0.0
        %617 = vmatpush1.msra.mxu0 0.0
        %618 = vmatprep.subr.mxu0 0.0
        %619 = vmatpush1.msra.mxu0 0.0
        %620 = vmatprep.subr.mxu0 0.0
        %621 = vmatpush1.msra.mxu0 0.0
        %622 = vmatprep.subr.mxu0 0.0
        %623 = vmatpush1.msra.mxu0 0.0
        %624 = vmatprep.subr.mxu0 0.0
        %625 = vmatpush1.msra.mxu0 0.0
        %626 = vmatprep.subr.mxu0 0.0
        %627 = vmatpush1.msra.mxu0 0.0
        %628 = vmatprep.subr.mxu0 0.0
        %629 = vmatpush1.msra.mxu0 0.0
        %630 = vmatprep.subr.mxu0 0.0
        %631 = vmatpush1.msra.mxu0 0.0
        %632 = vmatprep.subr.mxu0 0.0
        %633 = vmatpush1.msra.mxu0 0.0
        %634 = vmatprep.mubr.f32.mxu0 0.0
        %635 = vmatmul.mubr.f32.gmra.mrb[0].mxu0 %v523
        %v636 = vpop.f32.mrb[0].mxu0
        %v637 = vadd.f32 0.0, %v636
        %v638 = vpop.f32.mrb[0].mxu0
        %639 = vmatprep.mubr.f32.mxu0 0.0
        %640 = vmatmul.mubr.f32.gmra.mrb[0].mxu0 %v526
        %v641 = vpop.f32.mrb[0].mxu0
        %v642 = vadd.f32 0.0, %v641
        %v643 = vpop.f32.mrb[0].mxu0
        %644 = vmatprep.mubr.f32.mxu0 0.0
        %645 = vmatmul.mubr.f32.gmra.mrb[0].mxu0 %v529
        %v646 = vpop.f32.mrb[0].mxu0
        %v647 = vadd.f32 0.0, %v646
        %v648 = vpop.f32.mrb[0].mxu0
        %649 = vmatprep.mubr.f32.mxu0 0.0
        %650 = vmatmul.mubr.f32.gmra.mrb[0].mxu0 %v532
        %v651 = vpop.f32.mrb[0].mxu0
        %v652 = vadd.f32 0.0, %v651
        %v653 = vpop.f32.mrb[0].mxu0
        %654 = vmatprep.mubr.f32.mxu0 0.0
        %655 = vmatmul.mubr.f32.gmra.mrb[0].mxu0 %v535
        %v656 = vpop.f32.mrb[0].mxu0
        %v657 = vadd.f32 0.0, %v656
        %v658 = vpop.f32.mrb[0].mxu0
        %659 = vmatprep.mubr.f32.mxu0 0.0
        %660 = vmatmul.mubr.f32.gmra.mrb[0].mxu0 %v538
        %v661 = vpop.f32.mrb[0].mxu0
        %v662 = vadd.f32 0.0, %v661
        %v663 = vpop.f32.mrb[0].mxu0
        %664 = vmatprep.mubr.f32.mxu0 0.0
        %665 = vmatmul.mubr.f32.gmra.mrb[0].mxu0 %v541
        %v666 = vpop.f32.mrb[0].mxu0
        %v667 = vadd.f32 0.0, %v666
        %v668 = vpop.f32.mrb[0].mxu0
        %669 = vmatprep.mubr.f32.mxu0 0.0
        %670 = vmatmul.mubr.f32.gmra.mrb[0].mxu0 %v544
        %v671 = vpop.f32.mrb[0].mxu0
        %v672 = vadd.f32 0.0, %v671
        %v673 = vpop.f32.mrb[0].mxu0
        %674 = vmatprep.mubr.f32.mxu0 0.0
        %675 = vmatmul.mubr.f32.gmra.mrb[0].mxu0 %v547
        %v676 = vpop.f32.mrb[0].mxu0
        %v677 = vadd.f32 0.0, %v676
        %v678 = vpop.f32.mrb[0].mxu0
        %679 = vmatprep.mubr.f32.mxu0 0.0
        %680 = vmatmul.mubr.f32.gmra.mrb[0].mxu0 %v550
        %v681 = vpop.f32.mrb[0].mxu0
        %v682 = vadd.f32 0.0, %v681
        %v683 = vpop.f32.mrb[0].mxu0
        %684 = vmatprep.mubr.f32.mxu0 0.0
        %685 = vmatmul.mubr.f32.gmra.mrb[0].mxu0 %v553
        %v686 = vpop.f32.mrb[0].mxu0
        %v687 = vadd.f32 0.0, %v686
        %v688 = vpop.f32.mrb[0].mxu0
        %689 = vmatprep.mubr.f32.mxu0 0.0
        %690 = vmatmul.mubr.f32.gmra.mrb[0].mxu0 %v556
        %v691 = vpop.f32.mrb[0].mxu0
        %v692 = vadd.f32 0.0, %v691
        %v693 = vpop.f32.mrb[0].mxu0
        %694 = vmatprep.mubr.f32.mxu0 0.0
        %695 = vmatmul.mubr.f32.gmra.mrb[0].mxu0 %v559
        %v696 = vpop.f32.mrb[0].mxu0
        %v697 = vadd.f32 0.0, %v696
        %v698 = vpop.f32.mrb[0].mxu0
        %699 = vmatprep.mubr.f32.mxu0 0.0
        %700 = vmatmul.mubr.f32.gmra.mrb[0].mxu0 %v562
        %v701 = vpop.f32.mrb[0].mxu0
        %v702 = vadd.f32 0.0, %v701
        %v703 = vpop.f32.mrb[0].mxu0
        %704 = vmatprep.mubr.f32.mxu0 0.0
        %705 = vmatmul.mubr.f32.gmra.mrb[0].mxu0 %v565
        %v706 = vpop.f32.mrb[0].mxu0
        %v707 = vadd.f32 0.0, %v706
        %v708 = vpop.f32.mrb[0].mxu0
        %709 = vmatprep.mubr.f32.mxu0 0.0
        %710 = vmatmul.mubr.f32.gmra.mrb[0].mxu0 %v568
        %v711 = vpop.f32.mrb[0].mxu0
        %v712 = vadd.f32 0.0, %v711
        %v713 = vpop.f32.mrb[0].mxu0
        %714 = vdwg.mxu0
        %v715 = vadd.f32 %v637, %v642
        %v716 = vadd.f32 %v715, %v647
        %v717 = vadd.f32 %v716, %v652
        %v718 = vadd.f32 %v717, %v657
        %v719 = vadd.f32 %v718, %v662
        %v720 = vadd.f32 %v719, %v667
        %v721 = vadd.f32 %v720, %v672
        %v722 = vadd.f32 %v721, %v677
        %v723 = vadd.f32 %v722, %v682
        %v724 = vadd.f32 %v723, %v687
        %v725 = vadd.f32 %v724, %v692
        %v726 = vadd.f32 %v725, %v697
        %v727 = vadd.f32 %v726, %v702
        %v728 = vadd.f32 %v727, %v707
        %v729 = vadd.f32 %v728, %v712
        %v730 = vrot.slane %v729, 4
        %v731 = vadd.f32 %v729, %v730
        %v732 = vrot.slane %v731, 2
        %v733 = vadd.f32 %v731, %v732
        %v734 = vrot.slane %v733, 1
        %v735 = vadd.f32 %v733, %v734
        %v736 = vmul.f32 %v637, %v637
        %v737 = vmul.f32 %v642, %v642
        %v738 = vmul.f32 %v647, %v647
        %v739 = vmul.f32 %v652, %v652
        %v740 = vmul.f32 %v657, %v657
        %v741 = vmul.f32 %v662, %v662
        %v742 = vmul.f32 %v667, %v667
        %v743 = vmul.f32 %v672, %v672
        %v744 = vmul.f32 %v677, %v677
        %v745 = vmul.f32 %v682, %v682
        %v746 = vmul.f32 %v687, %v687
        %v747 = vmul.f32 %v692, %v692
        %v748 = vmul.f32 %v697, %v697
        %v749 = vmul.f32 %v702, %v702
        %v750 = vmul.f32 %v707, %v707
        %v751 = vmul.f32 %v712, %v712
        %v752 = vadd.f32 %v736, %v737
        %v753 = vadd.f32 %v752, %v738
        %v754 = vadd.f32 %v753, %v739
        %v755 = vadd.f32 %v754, %v740
        %v756 = vadd.f32 %v755, %v741
        %v757 = vadd.f32 %v756, %v742
        %v758 = vadd.f32 %v757, %v743
        %v759 = vadd.f32 %v758, %v744
        %v760 = vadd.f32 %v759, %v745
        %v761 = vadd.f32 %v760, %v746
        %v762 = vadd.f32 %v761, %v747
        %v763 = vadd.f32 %v762, %v748
        %v764 = vadd.f32 %v763, %v749
        %v765 = vadd.f32 %v764, %v750
        %v766 = vadd.f32 %v765, %v751
        %v767 = vrot.slane %v766, 4
        %v768 = vadd.f32 %v766, %v767
        %v769 = vrot.slane %v768, 2
        %v770 = vadd.f32 %v768, %v769
        %v771 = vrot.slane %v770, 1
        %v772 = vadd.f32 %v770, %v771
        %vm773 = vcmask 1040384
        %v774 = vsel %vm773, %v735, %v772
        %775 = vst [vmem:[%s239] sm:$0x3] %v774
        %p776 = scmp.lt.s32.totalorder %s17, 1
        %s777 = scalar_select %p776, %s17, 1
        %s778 = smul.addr %s777, 2
        %s779 = scalar_lea.vmem %s5, %s778
        // Predicated region
        $region45: #{tnet_forward.3} parent=39 // pred_check
          %p780 = pneg %p145
        $region46: #{tnet_forward.3} parent=39 // pred_check_branch
          %782 = sbr.rel (%p780) target = $region48
        $region47: #{tnet_forward.3} parent=39 // pred_region
          _
        $region48: #{tnet_forward.3} parent=39 // pred_fallthru
          _
      $region40: #{tnet_forward.3} parent=5 // pred_fallthru
        _
      %p783 = scmp.le.s32.totalorder 2, %s12
      // Predicated region
      $region49: #{tnet_forward.3} parent=5 // pred_check
        %p784 = pneg %p783
      $region50: #{tnet_forward.3} parent=5 // pred_check_branch
        %786 = sbr.rel (%p784) target = $region52
      $region51: #{tnet_forward.3} parent=5 // pred_region
        %s787 = ssub.s32 %s12, 2
        // Predicated region
        $region53: #{tnet_forward.3} parent=51 // pred_check
          %p788 = pneg %p151
        $region54: #{tnet_forward.3} parent=51 // pred_check_branch
          %790 = sbr.rel (%p788) target = $region56
        $region55: #{tnet_forward.3} parent=51 // pred_region
          %p791 = scmp.lt.s32.totalorder %s18, 1
          %s792 = scalar_select %p791, %s18, 1
          %s793 = smul.addr %s792, 2
          %s794 = scalar_lea.vmem %s5, %s793
        $region56: #{tnet_forward.3} parent=51 // pred_fallthru
          _
      $region52: #{tnet_forward.3} parent=5 // pred_fallthru
        _
    $region6: #{tnet_forward.3} parent=1 // loop_footer
      %s16 = sadd.s32 1, %s12
    $region7: #{tnet_forward.3} parent=1 // loop_footer_branch
      %11 = sbr.rel target = $region3
    $region8: #{tnet_forward.3} parent=1 // loop_exit
      _
    %795 = vsyncpa [#allocation3], 1
    %s796 = scalar_lea.sflag [#allocation3], 1
    %797 = vsyncpa %s796, 1

// kernel: tnet_forward.4
$region0: #{tnet_forward.4}
  #allocation0 [shape = 'u32[]', space=smem, size = 0x4, offset = 0x4, fixed_abs, tag = 'smem constant byte address 0x4 - core index']
  #allocation1 [shape = 'u32[144,128]{1,0:T(1,128)}', space=vmem, size = 0x12000, scoped, tag = 'internal scratch']
  %s0 = inlined_call_operand.vmem [shape: f32[256,8], index: 0, kind: input, shape index: {}]
  %s1 = inlined_call_operand.vmem [shape: f32[1,64], index: 1, kind: input, shape index: {}]
  %s2 = inlined_call_operand.vmem [shape: f32[1,64], index: 2, kind: input, shape index: {}]
  %s3 = inlined_call_operand.vmem [shape: f32[8,64], index: 3, kind: input, shape index: {}]
  %s4 = inlined_call_operand.vmem [shape: f32[1,128], index: 4, kind: input, shape index: {}]
  %s5 = inlined_call_operand.vmem [shape: f32[1,128], index: 5, kind: input, shape index: {}]
  %s6 = inlined_call_operand.hbm [shape: f32[64,128], index: 6, kind: input, shape index: {}]
  %s7 = inlined_call_operand.hbm [shape: f32[128,1024], index: 7, kind: input, shape index: {}]
  %s8 = inlined_call_operand.vmem [shape: f32[2,2,1024], index: 8, kind: output, shape index: {0}]
  %s9 = inlined_call_operand.vmem [shape: f32[2,1,1024], index: 9, kind: output, shape index: {1}]
  %s10 = inlined_call_operand.vmem [shape: f32[2,1,1024], index: 10, kind: output, shape index: {2}]
  %11 = xla_tuple %s8, %s9, %s10
  %s12 = sld [smem:[#allocation0]]
  $region89: #{tnet_forward.4} parent=0
    _
  %s14 = ssub.s32 1, %s12
  %s15 = scalar_select 0, %s14, %s12
  $region1: #{tnet_forward.4} parent=0
    #allocation2 [shape = 'u8[32768]{0}', space=vmem, size = 0x8000, scoped, tag = 'input window, operand 6, single buffered']
    #allocation3 [shape = 's32[2]{0}', space=sflag, size = 0x8, scoped, tag = 'scoped memory for tnet_forward.4']
    #allocation4 [shape = 'u8[524288]{0}', space=vmem, size = 0x80000, scoped, tag = 'input window, operand 7, single buffered']
    #allocation5 [shape = 's32[1]{0}', space=sflag, size = 0x4, scoped, tag = 'scoped memory for tnet_forward.4']
    %16 = vsyncpa [#allocation3], 0
    %17 = vsyncpa [#allocation5], 0
    loop: start=0, step=1, limit=4
    $region2: #{tnet_forward.4} parent=1 // loop_pre_header
      _
    $region3: #{tnet_forward.4} parent=1 // loop_header
      %s19 = sphi 0, %s23
      %p20 = scmp.ge.s32.totalorder %s19, 4
      %s29 = sphi 0, %s31
      %s32 = sphi 0, %s29
      %s33 = sphi 0, %s32
      %s49 = sphi 0, %s33
      %s53 = sphi 0, %s53
      %s55 = sphi 0, %s53
      %s56 = sphi 0, %s55
      %s70 = sphi 0, %s56
      %s74 = sphi 0, %s74
      %s76 = sphi 0, %s74
      %s77 = sphi 0, %s76
      %s91 = sphi 0, %s77
      %s95 = sphi 0, %s95
      %s97 = sphi 0, %s95
      %s98 = sphi 0, %s97
      %s112 = sphi 0, %s98
      %s116 = sphi 0, %s116
      %s118 = sphi 0, %s116
      %s119 = sphi 0, %s118
      %s133 = sphi 0, %s119
      %s137 = sphi 0, %s137
      %s139 = sphi 0, %s137
      %s140 = sphi 0, %s139
      %s154 = sphi 0, %s140
      %s158 = sphi 0, %s158
      %s160 = sphi 0, %s158
      %s161 = sphi 0, %s160
      %s175 = sphi 0, %s161
      %s179 = sphi 0, %s179
      %s181 = sphi 0, %s179
      %s182 = sphi 0, %s181
      %s196 = sphi 0, %s182
      %s202 = sphi 0, %s204
      %s205 = sphi 0, %s202
      %s206 = sphi 0, %s205
      %s222 = sphi 0, %s206
      %s228 = sphi 0, %s230
      %s231 = sphi 0, %s228
      %s232 = sphi 0, %s231
      %s248 = sphi 0, %s232
      %s254 = sphi 0, %s256
      %s257 = sphi 0, %s254
      %s258 = sphi 0, %s257
      %s274 = sphi 0, %s258
    $region4: #{tnet_forward.4} parent=1 // loop_header_branch
      %22 = sbr.rel (%p20) target = $region8
    $region5: #{tnet_forward.4} parent=1 // loop_body
      %s24 = ssub.s32 %s19, 1
      %s25 = ssub.s32 %s19, 2
      %s26 = sadd.s32 %s19, 1
      %s27 = ssub.s32 %s19, %s26
      %p28 = scmp.eq.s32.totalorder %s27, 0
      %s30 = sadd.s32 %s29, 1
      %s31 = scalar_select %p28, %s29, %s30
      %p34 = pneg %p28
      %p35 = scmp.eq.s32.totalorder %s19, 1
      %p36 = por %p34, %p35
      %p37 = scmp.ne.s32.totalorder %s29, %s32
      %p38 = scmp.eq.s32.totalorder %s19, 0
      %p39 = por %p37, %p38
      %p40 = scmp.ne.s32.totalorder %s29, %s32
      %p41 = scmp.eq.s32.totalorder %s24, 1
      %p42 = por %p40, %p41
      %p43 = scmp.ne.s32.totalorder %s32, %s33
      %p44 = scmp.eq.s32.totalorder %s24, 0
      %p45 = por %p43, %p44
      %p46 = scmp.ne.s32.totalorder %s32, %s33
      %p47 = scmp.eq.s32.totalorder %s25, 1
      %p48 = por %p46, %p47
      %p50 = scmp.ne.s32.totalorder %s33, %s49
      %p51 = scmp.eq.s32.totalorder %s25, 0
      %p52 = por %p50, %p51
      %s54 = sadd.s32 %s53, 1
      %p57 = scmp.eq.s32.totalorder %s19, 1
      %p58 = scmp.ne.s32.totalorder %s53, %s55
      %p59 = scmp.eq.s32.totalorder %s19, 0
      %p60 = por %p58, %p59
      %p61 = scmp.ne.s32.totalorder %s53, %s55
      %p62 = scmp.eq.s32.totalorder %s24, 1
      %p63 = por %p61, %p62
      %p64 = scmp.ne.s32.totalorder %s55, %s56
      %p65 = scmp.eq.s32.totalorder %s24, 0
      %p66 = por %p64, %p65
      %p67 = scmp.ne.s32.totalorder %s55, %s56
      %p68 = scmp.eq.s32.totalorder %s25, 1
      %p69 = por %p67, %p68
      %p71 = scmp.ne.s32.totalorder %s56, %s70
      %p72 = scmp.eq.s32.totalorder %s25, 0
      %p73 = por %p71, %p72
      %s75 = sadd.s32 %s74, 1
      %p78 = scmp.eq.s32.totalorder %s19, 1
      %p79 = scmp.ne.s32.totalorder %s74, %s76
      %p80 = scmp.eq.s32.totalorder %s19, 0
      %p81 = por %p79, %p80
      %p82 = scmp.ne.s32.totalorder %s74, %s76
      %p83 = scmp.eq.s32.totalorder %s24, 1
      %p84 = por %p82, %p83
      %p85 = scmp.ne.s32.totalorder %s76, %s77
      %p86 = scmp.eq.s32.totalorder %s24, 0
      %p87 = por %p85, %p86
      %p88 = scmp.ne.s32.totalorder %s76, %s77
      %p89 = scmp.eq.s32.totalorder %s25, 1
      %p90 = por %p88, %p89
      %p92 = scmp.ne.s32.totalorder %s77, %s91
      %p93 = scmp.eq.s32.totalorder %s25, 0
      %p94 = por %p92, %p93
      %s96 = sadd.s32 %s95, 1
      %p99 = scmp.eq.s32.totalorder %s19, 1
      %p100 = scmp.ne.s32.totalorder %s95, %s97
      %p101 = scmp.eq.s32.totalorder %s19, 0
      %p102 = por %p100, %p101
      %p103 = scmp.ne.s32.totalorder %s95, %s97
      %p104 = scmp.eq.s32.totalorder %s24, 1
      %p105 = por %p103, %p104
      %p106 = scmp.ne.s32.totalorder %s97, %s98
      %p107 = scmp.eq.s32.totalorder %s24, 0
      %p108 = por %p106, %p107
      %p109 = scmp.ne.s32.totalorder %s97, %s98
      %p110 = scmp.eq.s32.totalorder %s25, 1
      %p111 = por %p109, %p110
      %p113 = scmp.ne.s32.totalorder %s98, %s112
      %p114 = scmp.eq.s32.totalorder %s25, 0
      %p115 = por %p113, %p114
      %s117 = sadd.s32 %s116, 1
      %p120 = scmp.eq.s32.totalorder %s19, 1
      %p121 = scmp.ne.s32.totalorder %s116, %s118
      %p122 = scmp.eq.s32.totalorder %s19, 0
      %p123 = por %p121, %p122
      %p124 = scmp.ne.s32.totalorder %s116, %s118
      %p125 = scmp.eq.s32.totalorder %s24, 1
      %p126 = por %p124, %p125
      %p127 = scmp.ne.s32.totalorder %s118, %s119
      %p128 = scmp.eq.s32.totalorder %s24, 0
      %p129 = por %p127, %p128
      %p130 = scmp.ne.s32.totalorder %s118, %s119
      %p131 = scmp.eq.s32.totalorder %s25, 1
      %p132 = por %p130, %p131
      %p134 = scmp.ne.s32.totalorder %s119, %s133
      %p135 = scmp.eq.s32.totalorder %s25, 0
      %p136 = por %p134, %p135
      %s138 = sadd.s32 %s137, 1
      %p141 = scmp.eq.s32.totalorder %s19, 1
      %p142 = scmp.ne.s32.totalorder %s137, %s139
      %p143 = scmp.eq.s32.totalorder %s19, 0
      %p144 = por %p142, %p143
      %p145 = scmp.ne.s32.totalorder %s137, %s139
      %p146 = scmp.eq.s32.totalorder %s24, 1
      %p147 = por %p145, %p146
      %p148 = scmp.ne.s32.totalorder %s139, %s140
      %p149 = scmp.eq.s32.totalorder %s24, 0
      %p150 = por %p148, %p149
      %p151 = scmp.ne.s32.totalorder %s139, %s140
      %p152 = scmp.eq.s32.totalorder %s25, 1
      %p153 = por %p151, %p152
      %p155 = scmp.ne.s32.totalorder %s140, %s154
      %p156 = scmp.eq.s32.totalorder %s25, 0
      %p157 = por %p155, %p156
      %s159 = sadd.s32 %s158, 1
      %p162 = scmp.eq.s32.totalorder %s19, 1
      %p163 = scmp.ne.s32.totalorder %s158, %s160
      %p164 = scmp.eq.s32.totalorder %s19, 0
      %p165 = por %p163, %p164
      %p166 = scmp.ne.s32.totalorder %s158, %s160
      %p167 = scmp.eq.s32.totalorder %s24, 1
      %p168 = por %p166, %p167
      %p169 = scmp.ne.s32.totalorder %s160, %s161
      %p170 = scmp.eq.s32.totalorder %s24, 0
      %p171 = por %p169, %p170
      %p172 = scmp.ne.s32.totalorder %s160, %s161
      %p173 = scmp.eq.s32.totalorder %s25, 1
      %p174 = por %p172, %p173
      %p176 = scmp.ne.s32.totalorder %s161, %s175
      %p177 = scmp.eq.s32.totalorder %s25, 0
      %p178 = por %p176, %p177
      %s180 = sadd.s32 %s179, 1
      %p183 = scmp.eq.s32.totalorder %s19, 1
      %p184 = scmp.ne.s32.totalorder %s179, %s181
      %p185 = scmp.eq.s32.totalorder %s19, 0
      %p186 = por %p184, %p185
      %p187 = scmp.ne.s32.totalorder %s179, %s181
      %p188 = scmp.eq.s32.totalorder %s24, 1
      %p189 = por %p187, %p188
      %p190 = scmp.ne.s32.totalorder %s181, %s182
      %p191 = scmp.eq.s32.totalorder %s24, 0
      %p192 = por %p190, %p191
      %p193 = scmp.ne.s32.totalorder %s181, %s182
      %p194 = scmp.eq.s32.totalorder %s25, 1
      %p195 = por %p193, %p194
      %p197 = scmp.ne.s32.totalorder %s182, %s196
      %p198 = scmp.eq.s32.totalorder %s25, 0
      %p199 = por %p197, %p198
      %s200 = ssub.s32 %s19, %s26
      %p201 = scmp.eq.s32.totalorder %s200, 0
      %s203 = sadd.s32 %s202, 1
      %s204 = scalar_select %p201, %s202, %s203
      %p207 = pneg %p201
      %p208 = scmp.eq.s32.totalorder %s19, 1
      %p209 = por %p207, %p208
      %p210 = scmp.ne.s32.totalorder %s202, %s205
      %p211 = scmp.eq.s32.totalorder %s19, 0
      %p212 = por %p210, %p211
      %p213 = scmp.ne.s32.totalorder %s202, %s205
      %p214 = scmp.eq.s32.totalorder %s24, 1
      %p215 = por %p213, %p214
      %p216 = scmp.ne.s32.totalorder %s205, %s206
      %p217 = scmp.eq.s32.totalorder %s24, 0
      %p218 = por %p216, %p217
      %p219 = scmp.ne.s32.totalorder %s205, %s206
      %p220 = scmp.eq.s32.totalorder %s25, 1
      %p221 = por %p219, %p220
      %p223 = scmp.ne.s32.totalorder %s206, %s222
      %p224 = scmp.eq.s32.totalorder %s25, 0
      %p225 = por %p223, %p224
      %s226 = ssub.s32 %s19, %s26
      %p227 = scmp.eq.s32.totalorder %s226, 0
      %s229 = sadd.s32 %s228, 1
      %s230 = scalar_select %p227, %s228, %s229
      %p233 = pneg %p227
      %p234 = scmp.eq.s32.totalorder %s19, 1
      %p235 = por %p233, %p234
      %p236 = scmp.ne.s32.totalorder %s228, %s231
      %p237 = scmp.eq.s32.totalorder %s19, 0
      %p238 = por %p236, %p237
      %p239 = scmp.ne.s32.totalorder %s228, %s231
      %p240 = scmp.eq.s32.totalorder %s24, 1
      %p241 = por %p239, %p240
      %p242 = scmp.ne.s32.totalorder %s231, %s232
      %p243 = scmp.eq.s32.totalorder %s24, 0
      %p244 = por %p242, %p243
      %p245 = scmp.ne.s32.totalorder %s231, %s232
      %p246 = scmp.eq.s32.totalorder %s25, 1
      %p247 = por %p245, %p246
      %p249 = scmp.ne.s32.totalorder %s232, %s248
      %p250 = scmp.eq.s32.totalorder %s25, 0
      %p251 = por %p249, %p250
      %s252 = ssub.s32 %s19, %s26
      %p253 = scmp.eq.s32.totalorder %s252, 0
      %s255 = sadd.s32 %s254, 1
      %s256 = scalar_select %p253, %s254, %s255
      %p259 = pneg %p253
      %p260 = scmp.eq.s32.totalorder %s19, 1
      %p261 = por %p259, %p260
      %p262 = scmp.ne.s32.totalorder %s254, %s257
      %p263 = scmp.eq.s32.totalorder %s19, 0
      %p264 = por %p262, %p263
      %p265 = scmp.ne.s32.totalorder %s254, %s257
      %p266 = scmp.eq.s32.totalorder %s24, 1
      %p267 = por %p265, %p266
      %p268 = scmp.ne.s32.totalorder %s257, %s258
      %p269 = scmp.eq.s32.totalorder %s24, 0
      %p270 = por %p268, %p269
      %p271 = scmp.ne.s32.totalorder %s257, %s258
      %p272 = scmp.eq.s32.totalorder %s25, 1
      %p273 = por %p271, %p272
      %p275 = scmp.ne.s32.totalorder %s258, %s274
      %p276 = scmp.eq.s32.totalorder %s25, 0
      %p277 = por %p275, %p276
      %p278 = scmp.le.s32.totalorder 1, %s19
      %p279 = scmp.lt.s32.totalorder %s19, 3
      %p280 = pnand %p278, %p279
      %p281 = pneg %p280
      // Predicated region
      $region9: #{tnet_forward.4} parent=5 // pred_check
        _
      $region10: #{tnet_forward.4} parent=5 // pred_check_branch
        %283 = sbr.rel (%p280) target = $region12
      $region11: #{tnet_forward.4} parent=5 // pred_region
        %s284 = ssub.s32 %s19, 1
        // Predicated region
        $region13: #{tnet_forward.4} parent=11 // pred_check
          %p285 = pneg %p66
        $region14: #{tnet_forward.4} parent=11 // pred_check_branch
          %287 = sbr.rel (%p285) target = $region16
        $region15: #{tnet_forward.4} parent=11 // pred_region
          _
        $region16: #{tnet_forward.4} parent=11 // pred_fallthru
          _
        // Predicated region
        $region17: #{tnet_forward.4} parent=11 // pred_check
          %p288 = pneg %p87
        $region18: #{tnet_forward.4} parent=11 // pred_check_branch
          %290 = sbr.rel (%p288) target = $region20
        $region19: #{tnet_forward.4} parent=11 // pred_region
          _
        $region20: #{tnet_forward.4} parent=11 // pred_fallthru
          _
        // Predicated region
        $region21: #{tnet_forward.4} parent=11 // pred_check
          %p291 = pneg %p108
        $region22: #{tnet_forward.4} parent=11 // pred_check_branch
          %293 = sbr.rel (%p291) target = $region24
        $region23: #{tnet_forward.4} parent=11 // pred_region
          _
        $region24: #{tnet_forward.4} parent=11 // pred_fallthru
          _
        // Predicated region
        $region25: #{tnet_forward.4} parent=11 // pred_check
          %p294 = pneg %p129
        $region26: #{tnet_forward.4} parent=11 // pred_check_branch
          %296 = sbr.rel (%p294) target = $region28
        $region27: #{tnet_forward.4} parent=11 // pred_region
          _
        $region28: #{tnet_forward.4} parent=11 // pred_fallthru
          _
        // Predicated region
        $region29: #{tnet_forward.4} parent=11 // pred_check
          %p297 = pneg %p150
        $region30: #{tnet_forward.4} parent=11 // pred_check_branch
          %299 = sbr.rel (%p297) target = $region32
        $region31: #{tnet_forward.4} parent=11 // pred_region
          _
        $region32: #{tnet_forward.4} parent=11 // pred_fallthru
          _
        // Predicated region
        $region33: #{tnet_forward.4} parent=11 // pred_check
          %p300 = pneg %p171
        $region34: #{tnet_forward.4} parent=11 // pred_check_branch
          %302 = sbr.rel (%p300) target = $region36
        $region35: #{tnet_forward.4} parent=11 // pred_region
          %s304 = ssub.s32 1024, 1024
          %305 = vsyncadd [#allocation3], %s304
          %s306 = sshll.u32 [#allocation2], 4
          %s307 = int_to_ptr.vmem [resolvable:$true] %s306
          %312 = dma.hbm_to_vmem [thread:$0]  %s6, 1024, %s307, [#allocation3], 128, 128, 8
        $region36: #{tnet_forward.4} parent=11 // pred_fallthru
          _
        // Predicated region
        $region37: #{tnet_forward.4} parent=11 // pred_check
          %p313 = pneg %p192
        $region38: #{tnet_forward.4} parent=11 // pred_check_branch
          %315 = sbr.rel (%p313) target = $region40
        $region39: #{tnet_forward.4} parent=11 // pred_region
          %s317 = ssub.s32 16384, 16384
          %318 = vsyncadd [#allocation5], %s317
          %s319 = sshll.u32 [#allocation4], 4
          %s320 = int_to_ptr.vmem [resolvable:$true] %s319
          %325 = dma.hbm_to_vmem [thread:$0]  %s7, 16384, %s320, [#allocation5], 1024, 1024, 64
        $region40: #{tnet_forward.4} parent=11 // pred_fallthru
          _
      $region12: #{tnet_forward.4} parent=5 // pred_fallthru
        _
      %p326 = scmp.lt.s32.totalorder %s19, 2
      // Predicated region
      $region41: #{tnet_forward.4} parent=5 // pred_check
        %p327 = pneg %p326
      $region42: #{tnet_forward.4} parent=5 // pred_check_branch
        %329 = sbr.rel (%p327) target = $region44
      $region43: #{tnet_forward.4} parent=5 // pred_region
        // Predicated region
        $region45: #{tnet_forward.4} parent=43 // pred_check
          %p330 = pneg %p39
        $region46: #{tnet_forward.4} parent=43 // pred_check_branch
          %332 = sbr.rel (%p330) target = $region48
        $region47: #{tnet_forward.4} parent=43 // pred_region
          %s333 = smul.u32 16, %s19
          %p334 = scmp.lt.s32.totalorder %s333, 31
          %s335 = scalar_select %p334, %s333, 31
          %s336 = smul.addr %s335, 8
          %s337 = scalar_lea.vmem %s0, %s336
          %s338 = smul.u32 16, %s19
        $region48: #{tnet_forward.4} parent=43 // pred_fallthru
          _
      $region44: #{tnet_forward.4} parent=5 // pred_fallthru
        _
      %p339 = scmp.le.s32.totalorder 1, %s19
      %p340 = scmp.lt.s32.totalorder %s19, 3
      %p341 = pnand %p339, %p340
      %p342 = pneg %p341
      // Predicated region
      $region49: #{tnet_forward.4} parent=5 // pred_check
        _
      $region50: #{tnet_forward.4} parent=5 // pred_check_branch
        %344 = sbr.rel (%p341) target = $region52
      $region51: #{tnet_forward.4} parent=5 // pred_region
        %s345 = ssub.s32 %s19, 1
        // Predicated region
        $region53: #{tnet_forward.4} parent=51 // pred_check
          %p346 = pneg %p171
        $region54: #{tnet_forward.4} parent=51 // pred_check_branch
          %348 = sbr.rel (%p346) target = $region56
        $region55: #{tnet_forward.4} parent=51 // pred_region
          %349 = dma.done [#allocation3], 1024
        $region56: #{tnet_forward.4} parent=51 // pred_fallthru
          _
        // Predicated region
        $region57: #{tnet_forward.4} parent=51 // pred_check
          %p350 = pneg %p192
        $region58: #{tnet_forward.4} parent=51 // pred_check_branch
          %352 = sbr.rel (%p350) target = $region60
        $region59: #{tnet_forward.4} parent=51 // pred_region
          %353 = dma.done [#allocation5], 16384
        $region60: #{tnet_forward.4} parent=51 // pred_fallthru
          _
        %s354 = smul.u32 16, %s24
        %p355 = scmp.lt.s32.totalorder %s354, 31
        %s356 = scalar_select %p355, %s354, 31
        %s357 = smul.addr %s356, 8
        %s358 = scalar_lea.vmem %s0, %s357
        %p359 = pneg %p45
        %p360 = pneg %p42
        %p361 = pneg %p66
        %p362 = pneg %p63
        %p363 = pneg %p87
        %p364 = pneg %p84
        %p365 = pneg %p108
        %p366 = pneg %p105
        %p367 = pneg %p129
        %p368 = pneg %p126
        %p369 = pneg %p150
        %p370 = pneg %p147
        %p371 = pneg %p171
        %p372 = pneg %p168
        %p373 = pneg %p192
        %p374 = pneg %p189
        %p375 = pneg %p218
        %p376 = pneg %p215
        %p377 = scmp.lt.s32.totalorder %s24, 1
        %s378 = scalar_select %p377, %s24, 1
        %s379 = smul.addr %s378, 8
        %s380 = smul.addr %s379, 2
        %s381 = scalar_lea.vmem %s8, %s380
        %p382 = pneg %p244
        %p383 = pneg %p241
        %p384 = scmp.lt.s32.totalorder %s24, 1
        %s385 = scalar_select %p384, %s24, 1
        %s386 = smul.addr %s385, 8
        %s387 = scalar_lea.vmem %s9, %s386
        %p388 = pneg %p270
        %p389 = pneg %p267
        %p390 = scmp.lt.s32.totalorder %s24, 1
        %s391 = scalar_select %p390, %s24, 1
        %s392 = smul.addr %s391, 8
        %s393 = scalar_lea.vmem %s10, %s392
        %s394 = smul.u32 16, %s24
        %p395 = scmp.lt.s32.totalorder %s394, 31
        %s396 = scalar_select %p395, %s394, 31
        %s397 = smul.addr %s396, 8
        %s398 = scalar_lea.vmem %s0, %s397
        %s399 = smul.u32 16, %s24
        %p400 = scmp.lt.s32.totalorder %s24, 1
        %s401 = scalar_select %p400, %s24, 1
        %s402 = smul.addr %s401, 8
        %s403 = smul.addr %s402, 2
        %s404 = scalar_lea.vmem %s8, %s403
        %p405 = scmp.lt.s32.totalorder %s24, 1
        %s406 = scalar_select %p405, %s24, 1
        %s407 = smul.addr %s406, 8
        %s408 = scalar_lea.vmem %s9, %s407
        %p409 = scmp.lt.s32.totalorder %s24, 1
        %s410 = scalar_select %p409, %s24, 1
        %s411 = smul.addr %s410, 8
        %s412 = scalar_lea.vmem %s10, %s411
        %v413 = vld [vmem:[%s398] sm:$0xff]
        %v414 = vld [vmem:[%s398 + $0x8] sm:$0xff]
        %v415 = vld [vmem:[%s398 + $0x10] sm:$0xff]
        %v416 = vld [vmem:[%s398 + $0x18] sm:$0xff]
        %v417 = vld [vmem:[%s398 + $0x20] sm:$0xff]
        %v418 = vld [vmem:[%s398 + $0x28] sm:$0xff]
        %v419 = vld [vmem:[%s398 + $0x30] sm:$0xff]
        %v420 = vld [vmem:[%s398 + $0x38] sm:$0xff]
        %v421 = vld [vmem:[%s398 + $0x40] sm:$0xff]
        %v422 = vld [vmem:[%s398 + $0x48] sm:$0xff]
        %v423 = vld [vmem:[%s398 + $0x50] sm:$0xff]
        %v424 = vld [vmem:[%s398 + $0x58] sm:$0xff]
        %v425 = vld [vmem:[%s398 + $0x60] sm:$0xff]
        %v426 = vld [vmem:[%s398 + $0x68] sm:$0xff]
        %v427 = vld [vmem:[%s398 + $0x70] sm:$0xff]
        %v428 = vld [vmem:[%s398 + $0x78] sm:$0xff]
        %v429 = vld [vmem:[%s3] sm:$0xff]
        %vm430 = vcmask 64512
        %v432 = vsel %vm430, %v413, 0
        %v435 = vsel %vm430, %v414, 0
        %v438 = vsel %vm430, %v415, 0
        %v441 = vsel %vm430, %v416, 0
        %v444 = vsel %vm430, %v417, 0
        %v447 = vsel %vm430, %v418, 0
        %v450 = vsel %vm430, %v419, 0
        %v453 = vsel %vm430, %v420, 0
        %v456 = vsel %vm430, %v421, 0
        %v459 = vsel %vm430, %v422, 0
        %v462 = vsel %vm430, %v423, 0
        %v465 = vsel %vm430, %v424, 0
        %v468 = vsel %vm430, %v425, 0
        %v471 = vsel %vm430, %v426, 0
        %v474 = vsel %vm430, %v427, 0
        %v477 = vsel %vm430, %v428, 0
        %479 = vmatprep.subr.mxu0 0.0
        %480 = vmatpush1.msra.mxu0 %v429
        %481 = vmatprep.subr.mxu0 0.0
        %482 = vmatpush1.msra.mxu0 0.0
        %483 = vmatprep.subr.mxu0 0.0
        %484 = vmatpush1.msra.mxu0 0.0
        %485 = vmatprep.subr.mxu0 0.0
        %486 = vmatpush1.msra.mxu0 0.0
        %487 = vmatprep.subr.mxu0 0.0
        %488 = vmatpush1.msra.mxu0 0.0
        %489 = vmatprep.subr.mxu0 0.0
        %490 = vmatpush1.msra.mxu0 0.0
        %491 = vmatprep.subr.mxu0 0.0
        %492 = vmatpush1.msra.mxu0 0.0
        %493 = vmatprep.subr.mxu0 0.0
        %494 = vmatpush1.msra.mxu0 0.0
        %495 = vmatprep.subr.mxu0 0.0
        %496 = vmatpush1.msra.mxu0 0.0
        %497 = vmatprep.subr.mxu0 0.0
        %498 = vmatpush1.msra.mxu0 0.0
        %499 = vmatprep.subr.mxu0 0.0
        %500 = vmatpush1.msra.mxu0 0.0
        %501 = vmatprep.subr.mxu0 0.0
        %502 = vmatpush1.msra.mxu0 0.0
        %503 = vmatprep.subr.mxu0 0.0
        %504 = vmatpush1.msra.mxu0 0.0
        %505 = vmatprep.subr.mxu0 0.0
        %506 = vmatpush1.msra.mxu0 0.0
        %507 = vmatprep.subr.mxu0 0.0
        %508 = vmatpush1.msra.mxu0 0.0
        %509 = vmatprep.subr.mxu0 0.0
        %510 = vmatpush1.msra.mxu0 0.0
        %511 = vmatprep.subr.mxu0 0.0
        %512 = vmatpush1.msra.mxu0 0.0
        %513 = vmatprep.subr.mxu0 0.0
        %514 = vmatpush1.msra.mxu0 0.0
        %515 = vmatprep.subr.mxu0 0.0
        %516 = vmatpush1.msra.mxu0 0.0
        %517 = vmatprep.subr.mxu0 0.0
        %518 = vmatpush1.msra.mxu0 0.0
        %519 = vmatprep.subr.mxu0 0.0
        %520 = vmatpush1.msra.mxu0 0.0
        %521 = vmatprep.subr.mxu0 0.0
        %522 = vmatpush1.msra.mxu0 0.0
        %523 = vmatprep.subr.mxu0 0.0
        %524 = vmatpush1.msra.mxu0 0.0
        %525 = vmatprep.subr.mxu0 0.0
        %526 = vmatpush1.msra.mxu0 0.0
        %527 = vmatprep.subr.mxu0 0.0
        %528 = vmatpush1.msra.mxu0 0.0
        %529 = vmatprep.subr.mxu0 0.0
        %530 = vmatpush1.msra.mxu0 0.0
        %531 = vmatprep.subr.mxu0 0.0
        %532 = vmatpush1.msra.mxu0 0.0
        %533 = vmatprep.subr.mxu0 0.0
        %534 = vmatpush1.msra.mxu0 0.0
        %535 = vmatprep.subr.mxu0 0.0
        %536 = vmatpush1.msra.mxu0 0.0
        %537 = vmatprep.subr.mxu0 0.0
        %538 = vmatpush1.msra.mxu0 0.0
        %539 = vmatprep.subr.mxu0 0.0
        %540 = vmatpush1.msra.mxu0 0.0
        %541 = vmatprep.subr.mxu0 0.0
        %542 = vmatpush1.msra.mxu0 0.0
        %543 = vmatprep.mubr.f32.mxu0 0.0
        %544 = vmatmul.mubr.f32.gmra.mrb[0].mxu0 %v432
        %v545 = vpop.f32.mrb[0].mxu0
        %v546 = vadd.f32 0.0, %v545
        %v547 = vpop.f32.mrb[0].mxu0
        %548 = vmatprep.mubr.f32.mxu0 0.0
        %549 = vmatmul.mubr.f32.gmra.mrb[0].mxu0 %v435
        %v550 = vpop.f32.mrb[0].mxu0
        %v551 = vadd.f32 0.0, %v550
        %v552 = vpop.f32.mrb[0].mxu0
        %553 = vmatprep.mubr.f32.mxu0 0.0
        %554 = vmatmul.mubr.f32.gmra.mrb[0].mxu0 %v438
        %v555 = vpop.f32.mrb[0].mxu0
        %v556 = vadd.f32 0.0, %v555
        %v557 = vpop.f32.mrb[0].mxu0
        %558 = vmatprep.mubr.f32.mxu0 0.0
        %559 = vmatmul.mubr.f32.gmra.mrb[0].mxu0 %v441
        %v560 = vpop.f32.mrb[0].mxu0
        %v561 = vadd.f32 0.0, %v560
        %v562 = vpop.f32.mrb[0].mxu0
        %563 = vmatprep.mubr.f32.mxu0 0.0
        %564 = vmatmul.mubr.f32.gmra.mrb[0].mxu0 %v444
        %v565 = vpop.f32.mrb[0].mxu0
        %v566 = vadd.f32 0.0, %v565
        %v567 = vpop.f32.mrb[0].mxu0
        %568 = vmatprep.mubr.f32.mxu0 0.0
        %569 = vmatmul.mubr.f32.gmra.mrb[0].mxu0 %v447
        %v570 = vpop.f32.mrb[0].mxu0
        %v571 = vadd.f32 0.0, %v570
        %v572 = vpop.f32.mrb[0].mxu0
        %573 = vmatprep.mubr.f32.mxu0 0.0
        %574 = vmatmul.mubr.f32.gmra.mrb[0].mxu0 %v450
        %v575 = vpop.f32.mrb[0].mxu0
        %v576 = vadd.f32 0.0, %v575
        %v577 = vpop.f32.mrb[0].mxu0
        %578 = vmatprep.mubr.f32.mxu0 0.0
        %579 = vmatmul.mubr.f32.gmra.mrb[0].mxu0 %v453
        %v580 = vpop.f32.mrb[0].mxu0
        %v581 = vadd.f32 0.0, %v580
        %v582 = vpop.f32.mrb[0].mxu0
        %583 = vmatprep.mubr.f32.mxu0 0.0
        %584 = vmatmul.mubr.f32.gmra.mrb[0].mxu0 %v456
        %v585 = vpop.f32.mrb[0].mxu0
        %v586 = vadd.f32 0.0, %v585
        %v587 = vpop.f32.mrb[0].mxu0
        %588 = vmatprep.mubr.f32.mxu0 0.0
        %589 = vmatmul.mubr.f32.gmra.mrb[0].mxu0 %v459
        %v590 = vpop.f32.mrb[0].mxu0
        %v591 = vadd.f32 0.0, %v590
        %v592 = vpop.f32.mrb[0].mxu0
        %593 = vmatprep.mubr.f32.mxu0 0.0
        %594 = vmatmul.mubr.f32.gmra.mrb[0].mxu0 %v462
        %v595 = vpop.f32.mrb[0].mxu0
        %v596 = vadd.f32 0.0, %v595
        %v597 = vpop.f32.mrb[0].mxu0
        %598 = vmatprep.mubr.f32.mxu0 0.0
        %599 = vmatmul.mubr.f32.gmra.mrb[0].mxu0 %v465
        %v600 = vpop.f32.mrb[0].mxu0
        %v601 = vadd.f32 0.0, %v600
        %v602 = vpop.f32.mrb[0].mxu0
        %603 = vmatprep.mubr.f32.mxu0 0.0
        %604 = vmatmul.mubr.f32.gmra.mrb[0].mxu0 %v468
        %v605 = vpop.f32.mrb[0].mxu0
        %v606 = vadd.f32 0.0, %v605
        %v607 = vpop.f32.mrb[0].mxu0
        %608 = vmatprep.mubr.f32.mxu0 0.0
        %609 = vmatmul.mubr.f32.gmra.mrb[0].mxu0 %v471
        %v610 = vpop.f32.mrb[0].mxu0
        %v611 = vadd.f32 0.0, %v610
        %v612 = vpop.f32.mrb[0].mxu0
        %613 = vmatprep.mubr.f32.mxu0 0.0
        %614 = vmatmul.mubr.f32.gmra.mrb[0].mxu0 %v474
        %v615 = vpop.f32.mrb[0].mxu0
        %v616 = vadd.f32 0.0, %v615
        %v617 = vpop.f32.mrb[0].mxu0
        %618 = vmatprep.mubr.f32.mxu0 0.0
        %619 = vmatmul.mubr.f32.gmra.mrb[0].mxu0 %v477
        %v620 = vpop.f32.mrb[0].mxu0
        %v621 = vadd.f32 0.0, %v620
        %v622 = vpop.f32.mrb[0].mxu0
        %623 = vdwg.mxu0
        %v624 = vld [vmem:[%s1] sm:$0x1]
        %v626 = vlaneseq
        %v627 = vshrl.u32 %v626, 7
        %v628 = vsub.s32 0, %v627
        %v629 = vrot.slane %v624, %v628
        %v631 = vmul.f32 %v546, %v629
        %v632 = vmul.f32 %v551, %v629
        %v633 = vmul.f32 %v556, %v629
        %v634 = vmul.f32 %v561, %v629
        %v635 = vmul.f32 %v566, %v629
        %v636 = vmul.f32 %v571, %v629
        %v637 = vmul.f32 %v576, %v629
        %v638 = vmul.f32 %v581, %v629
        %v639 = vmul.f32 %v586, %v629
        %v640 = vmul.f32 %v591, %v629
        %v641 = vmul.f32 %v596, %v629
        %v642 = vmul.f32 %v601, %v629
        %v643 = vmul.f32 %v606, %v629
        %v644 = vmul.f32 %v611, %v629
        %v645 = vmul.f32 %v616, %v629
        %v646 = vmul.f32 %v621, %v629
        %v647 = vld [vmem:[%s2] sm:$0x1]
        %v649 = vlaneseq
        %v650 = vshrl.u32 %v649, 7
        %v651 = vsub.s32 0, %v650
        %v652 = vrot.slane %v647, %v651
        %v654 = vadd.f32 %v631, %v652
        %v655 = vadd.f32 %v632, %v652
        %v656 = vadd.f32 %v633, %v652
        %v657 = vadd.f32 %v634, %v652
        %v658 = vadd.f32 %v635, %v652
        %v659 = vadd.f32 %v636, %v652
        %v660 = vadd.f32 %v637, %v652
        %v661 = vadd.f32 %v638, %v652
        %v662 = vadd.f32 %v639, %v652
        %v663 = vadd.f32 %v640, %v652
        %v664 = vadd.f32 %v641, %v652
        %v665 = vadd.f32 %v642, %v652
        %v666 = vadd.f32 %v643, %v652
        %v667 = vadd.f32 %v644, %v652
        %v668 = vadd.f32 %v645, %v652
        %v669 = vadd.f32 %v646, %v652
        %v670 = vmax.f32 %v654, 0.0
        %v671 = vmax.f32 %v655, 0.0
        %v672 = vmax.f32 %v656, 0.0
        %v673 = vmax.f32 %v657, 0.0
        %v674 = vmax.f32 %v658, 0.0
        %v675 = vmax.f32 %v659, 0.0
        %v676 = vmax.f32 %v660, 0.0
        %v677 = vmax.f32 %v661, 0.0
        %v678 = vmax.f32 %v662, 0.0
        %v679 = vmax.f32 %v663, 0.0
        %v680 = vmax.f32 %v664, 0.0
        %v681 = vmax.f32 %v665, 0.0
        %v682 = vmax.f32 %v666, 0.0
        %v683 = vmax.f32 %v667, 0.0
        %v684 = vmax.f32 %v668, 0.0
        %v685 = vmax.f32 %v669, 0.0
        %v686 = vld [vmem:[#allocation2] sm:$0xff]
        %v687 = vld [vmem:[#allocation2 + $0x8] sm:$0xff]
        %v688 = vld [vmem:[#allocation2 + $0x10] sm:$0xff]
        %v689 = vld [vmem:[#allocation2 + $0x18] sm:$0xff]
        %v690 = vld [vmem:[#allocation2 + $0x20] sm:$0xff]
        %v691 = vld [vmem:[#allocation2 + $0x28] sm:$0xff]
        %v692 = vld [vmem:[#allocation2 + $0x30] sm:$0xff]
        %v693 = vld [vmem:[#allocation2 + $0x38] sm:$0xff]
        %vm694 = vcmask 523264
        %v696 = vsel %vm694, %v670, 0
        %v699 = vsel %vm694, %v671, 0
        %v702 = vsel %vm694, %v672, 0
        %v705 = vsel %vm694, %v673, 0
        %v708 = vsel %vm694, %v674, 0
        %v711 = vsel %vm694, %v675, 0
        %v714 = vsel %vm694, %v676, 0
        %v717 = vsel %vm694, %v677, 0
        %v720 = vsel %vm694, %v678, 0
        %v723 = vsel %vm694, %v679, 0
        %v726 = vsel %vm694, %v680, 0
        %v729 = vsel %vm694, %v681, 0
        %v732 = vsel %vm694, %v682, 0
        %v735 = vsel %vm694, %v683, 0
        %v738 = vsel %vm694, %v684, 0
        %v741 = vsel %vm694, %v685, 0
        %743 = vmatprep.subr.mxu0 0.0
        %744 = vmatpush1.msra.mxu0 %v686
        %745 = vmatprep.subr.mxu0 0.0
        %746 = vmatpush1.msra.mxu0 %v687
        %747 = vmatprep.subr.mxu0 0.0
        %748 = vmatpush1.msra.mxu0 %v688
        %749 = vmatprep.subr.mxu0 0.0
        %750 = vmatpush1.msra.mxu0 %v689
        %751 = vmatprep.subr.mxu0 0.0
        %752 = vmatpush1.msra.mxu0 %v690
        %753 = vmatprep.subr.mxu0 0.0
        %754 = vmatpush1.msra.mxu0 %v691
        %755 = vmatprep.subr.mxu0 0.0
        %756 = vmatpush1.msra.mxu0 %v692
        %757 = vmatprep.subr.mxu0 0.0
        %758 = vmatpush1.msra.mxu0 %v693
        %759 = vmatprep.subr.mxu0 0.0
        %760 = vmatpush1.msra.mxu0 0.0
        %761 = vmatprep.subr.mxu0 0.0
        %762 = vmatpush1.msra.mxu0 0.0
        %763 = vmatprep.subr.mxu0 0.0
        %764 = vmatpush1.msra.mxu0 0.0
        %765 = vmatprep.subr.mxu0 0.0
        %766 = vmatpush1.msra.mxu0 0.0
        %767 = vmatprep.subr.mxu0 0.0
        %768 = vmatpush1.msra.mxu0 0.0
        %769 = vmatprep.subr.mxu0 0.0
        %770 = vmatpush1.msra.mxu0 0.0
        %771 = vmatprep.subr.mxu0 0.0
        %772 = vmatpush1.msra.mxu0 0.0
        %773 = vmatprep.subr.mxu0 0.0
        %774 = vmatpush1.msra.mxu0 0.0
        %775 = vmatprep.subr.mxu0 0.0
        %776 = vmatpush1.msra.mxu0 0.0
        %777 = vmatprep.subr.mxu0 0.0
        %778 = vmatpush1.msra.mxu0 0.0
        %779 = vmatprep.subr.mxu0 0.0
        %780 = vmatpush1.msra.mxu0 0.0
        %781 = vmatprep.subr.mxu0 0.0
        %782 = vmatpush1.msra.mxu0 0.0
        %783 = vmatprep.subr.mxu0 0.0
        %784 = vmatpush1.msra.mxu0 0.0
        %785 = vmatprep.subr.mxu0 0.0
        %786 = vmatpush1.msra.mxu0 0.0
        %787 = vmatprep.subr.mxu0 0.0
        %788 = vmatpush1.msra.mxu0 0.0
        %789 = vmatprep.subr.mxu0 0.0
        %790 = vmatpush1.msra.mxu0 0.0
        %791 = vmatprep.subr.mxu0 0.0
        %792 = vmatpush1.msra.mxu0 0.0
        %793 = vmatprep.subr.mxu0 0.0
        %794 = vmatpush1.msra.mxu0 0.0
        %795 = vmatprep.subr.mxu0 0.0
        %796 = vmatpush1.msra.mxu0 0.0
        %797 = vmatprep.subr.mxu0 0.0
        %798 = vmatpush1.msra.mxu0 0.0
        %799 = vmatprep.subr.mxu0 0.0
        %800 = vmatpush1.msra.mxu0 0.0
        %801 = vmatprep.subr.mxu0 0.0
        %802 = vmatpush1.msra.mxu0 0.0
        %803 = vmatprep.subr.mxu0 0.0
        %804 = vmatpush1.msra.mxu0 0.0
        %805 = vmatprep.subr.mxu0 0.0
        %806 = vmatpush1.msra.mxu0 0.0
        %807 = vmatprep.mubr.f32.mxu0 0.0
        %808 = vmatmul.mubr.f32.gmra.mrb[0].mxu0 %v696
        %v809 = vpop.f32.mrb[0].mxu0
        %v810 = vadd.f32 0.0, %v809
        %v811 = vpop.f32.mrb[0].mxu0
        %812 = vmatprep.mubr.f32.mxu0 0.0
        %813 = vmatmul.mubr.f32.gmra.mrb[0].mxu0 %v699
        %v814 = vpop.f32.mrb[0].mxu0
        %v815 = vadd.f32 0.0, %v814
        %v816 = vpop.f32.mrb[0].mxu0
        %817 = vmatprep.mubr.f32.mxu0 0.0
        %818 = vmatmul.mubr.f32.gmra.mrb[0].mxu0 %v702
        %v819 = vpop.f32.mrb[0].mxu0
        %v820 = vadd.f32 0.0, %v819
        %v821 = vpop.f32.mrb[0].mxu0
        %822 = vmatprep.mubr.f32.mxu0 0.0
        %823 = vmatmul.mubr.f32.gmra.mrb[0].mxu0 %v705
        %v824 = vpop.f32.mrb[0].mxu0
        %v825 = vadd.f32 0.0, %v824
        %v826 = vpop.f32.mrb[0].mxu0
        %827 = vmatprep.mubr.f32.mxu0 0.0
        %828 = vmatmul.mubr.f32.gmra.mrb[0].mxu0 %v708
        %v829 = vpop.f32.mrb[0].mxu0
        %v830 = vadd.f32 0.0, %v829
        %v831 = vpop.f32.mrb[0].mxu0
        %832 = vmatprep.mubr.f32.mxu0 0.0
        %833 = vmatmul.mubr.f32.gmra.mrb[0].mxu0 %v711
        %v834 = vpop.f32.mrb[0].mxu0
        %v835 = vadd.f32 0.0, %v834
        %v836 = vpop.f32.mrb[0].mxu0
        %837 = vmatprep.mubr.f32.mxu0 0.0
        %838 = vmatmul.mubr.f32.gmra.mrb[0].mxu0 %v714
        %v839 = vpop.f32.mrb[0].mxu0
        %v840 = vadd.f32 0.0, %v839
        %v841 = vpop.f32.mrb[0].mxu0
        %842 = vmatprep.mubr.f32.mxu0 0.0
        %843 = vmatmul.mubr.f32.gmra.mrb[0].mxu0 %v717
        %v844 = vpop.f32.mrb[0].mxu0
        %v845 = vadd.f32 0.0, %v844
        %v846 = vpop.f32.mrb[0].mxu0
        %847 = vmatprep.mubr.f32.mxu0 0.0
        %848 = vmatmul.mubr.f32.gmra.mrb[0].mxu0 %v720
        %v849 = vpop.f32.mrb[0].mxu0
        %v850 = vadd.f32 0.0, %v849
        %v851 = vpop.f32.mrb[0].mxu0
        %852 = vmatprep.mubr.f32.mxu0 0.0
        %853 = vmatmul.mubr.f32.gmra.mrb[0].mxu0 %v723
        %v854 = vpop.f32.mrb[0].mxu0
        %v855 = vadd.f32 0.0, %v854
        %v856 = vpop.f32.mrb[0].mxu0
        %857 = vmatprep.mubr.f32.mxu0 0.0
        %858 = vmatmul.mubr.f32.gmra.mrb[0].mxu0 %v726
        %v859 = vpop.f32.mrb[0].mxu0
        %v860 = vadd.f32 0.0, %v859
        %v861 = vpop.f32.mrb[0].mxu0
        %862 = vmatprep.mubr.f32.mxu0 0.0
        %863 = vmatmul.mubr.f32.gmra.mrb[0].mxu0 %v729
        %v864 = vpop.f32.mrb[0].mxu0
        %v865 = vadd.f32 0.0, %v864
        %v866 = vpop.f32.mrb[0].mxu0
        %867 = vmatprep.mubr.f32.mxu0 0.0
        %868 = vmatmul.mubr.f32.gmra.mrb[0].mxu0 %v732
        %v869 = vpop.f32.mrb[0].mxu0
        %v870 = vadd.f32 0.0, %v869
        %v871 = vpop.f32.mrb[0].mxu0
        %872 = vmatprep.mubr.f32.mxu0 0.0
        %873 = vmatmul.mubr.f32.gmra.mrb[0].mxu0 %v735
        %v874 = vpop.f32.mrb[0].mxu0
        %v875 = vadd.f32 0.0, %v874
        %v876 = vpop.f32.mrb[0].mxu0
        %877 = vmatprep.mubr.f32.mxu0 0.0
        %878 = vmatmul.mubr.f32.gmra.mrb[0].mxu0 %v738
        %v879 = vpop.f32.mrb[0].mxu0
        %v880 = vadd.f32 0.0, %v879
        %v881 = vpop.f32.mrb[0].mxu0
        %882 = vmatprep.mubr.f32.mxu0 0.0
        %883 = vmatmul.mubr.f32.gmra.mrb[0].mxu0 %v741
        %v884 = vpop.f32.mrb[0].mxu0
        %v885 = vadd.f32 0.0, %v884
        %v886 = vpop.f32.mrb[0].mxu0
        %887 = vdwg.mxu0
        %v888 = vld [vmem:[%s4] sm:$0x1]
        %v890 = vlaneseq
        %v891 = vshrl.u32 %v890, 7
        %v892 = vsub.s32 0, %v891
        %v893 = vrot.slane %v888, %v892
        %v895 = vmul.f32 %v810, %v893
        %v896 = vmul.f32 %v815, %v893
        %v897 = vmul.f32 %v820, %v893
        %v898 = vmul.f32 %v825, %v893
        %v899 = vmul.f32 %v830, %v893
        %v900 = vmul.f32 %v835, %v893
        %v901 = vmul.f32 %v840, %v893
        %v902 = vmul.f32 %v845, %v893
        %v903 = vmul.f32 %v850, %v893
        %v904 = vmul.f32 %v855, %v893
        %v905 = vmul.f32 %v860, %v893
        %v906 = vmul.f32 %v865, %v893
        %v907 = vmul.f32 %v870, %v893
        %v908 = vmul.f32 %v875, %v893
        %v909 = vmul.f32 %v880, %v893
        %v910 = vmul.f32 %v885, %v893
        %v911 = vld [vmem:[%s5] sm:$0x1]
        %v913 = vlaneseq
        %v914 = vshrl.u32 %v913, 7
        %v915 = vsub.s32 0, %v914
        %v916 = vrot.slane %v911, %v915
        %v918 = vadd.f32 %v895, %v916
        %v919 = vadd.f32 %v896, %v916
        %v920 = vadd.f32 %v897, %v916
        %v921 = vadd.f32 %v898, %v916
        %v922 = vadd.f32 %v899, %v916
        %v923 = vadd.f32 %v900, %v916
        %v924 = vadd.f32 %v901, %v916
        %v925 = vadd.f32 %v902, %v916
        %v926 = vadd.f32 %v903, %v916
        %v927 = vadd.f32 %v904, %v916
        %v928 = vadd.f32 %v905, %v916
        %v929 = vadd.f32 %v906, %v916
        %v930 = vadd.f32 %v907, %v916
        %v931 = vadd.f32 %v908, %v916
        %v932 = vadd.f32 %v909, %v916
        %v933 = vadd.f32 %v910, %v916
        %v934 = vmax.f32 %v918, 0.0
        %v935 = vmax.f32 %v919, 0.0
        %v936 = vmax.f32 %v920, 0.0
        %v937 = vmax.f32 %v921, 0.0
        %v938 = vmax.f32 %v922, 0.0
        %v939 = vmax.f32 %v923, 0.0
        %v940 = vmax.f32 %v924, 0.0
        %v941 = vmax.f32 %v925, 0.0
        %v942 = vmax.f32 %v926, 0.0
        %v943 = vmax.f32 %v927, 0.0
        %v944 = vmax.f32 %v928, 0.0
        %v945 = vmax.f32 %v929, 0.0
        %v946 = vmax.f32 %v930, 0.0
        %v947 = vmax.f32 %v931, 0.0
        %v948 = vmax.f32 %v932, 0.0
        %v949 = vmax.f32 %v933, 0.0
        %v950 = vld [vmem:[#allocation4] sm:$0xff]
        %v951 = vld [vmem:[#allocation4 + $0x8] sm:$0xff]
        %v952 = vld [vmem:[#allocation4 + $0x10] sm:$0xff]
        %v953 = vld [vmem:[#allocation4 + $0x18] sm:$0xff]
        %v954 = vld [vmem:[#allocation4 + $0x20] sm:$0xff]
        %v955 = vld [vmem:[#allocation4 + $0x28] sm:$0xff]
        %v956 = vld [vmem:[#allocation4 + $0x30] sm:$0xff]
        %v957 = vld [vmem:[#allocation4 + $0x38] sm:$0xff]
        %v958 = vld [vmem:[#allocation4 + $0x40] sm:$0xff]
        %v959 = vld [vmem:[#allocation4 + $0x48] sm:$0xff]
        %v960 = vld [vmem:[#allocation4 + $0x50] sm:$0xff]
        %v961 = vld [vmem:[#allocation4 + $0x58] sm:$0xff]
        %v962 = vld [vmem:[#allocation4 + $0x60] sm:$0xff]
        %v963 = vld [vmem:[#allocation4 + $0x68] sm:$0xff]
        %v964 = vld [vmem:[#allocation4 + $0x70] sm:$0xff]
        %v965 = vld [vmem:[#allocation4 + $0x78] sm:$0xff]
        %v966 = vld [vmem:[#allocation4 + $0x80] sm:$0xff]
        %v967 = vld [vmem:[#allocation4 + $0x88] sm:$0xff]
        %v968 = vld [vmem:[#allocation4 + $0x90] sm:$0xff]
        %v969 = vld [vmem:[#allocation4 + $0x98] sm:$0xff]
        %v970 = vld [vmem:[#allocation4 + $0xa0] sm:$0xff]
        %v971 = vld [vmem:[#allocation4 + $0xa8] sm:$0xff]
        %v972 = vld [vmem:[#allocation4 + $0xb0] sm:$0xff]
        %v973 = vld [vmem:[#allocation4 + $0xb8] sm:$0xff]
        %v974 = vld [vmem:[#allocation4 + $0xc0] sm:$0xff]
        %v975 = vld [vmem:[#allocation4 + $0xc8] sm:$0xff]
        %v976 = vld [vmem:[#allocation4 + $0xd0] sm:$0xff]
        %v977 = vld [vmem:[#allocation4 + $0xd8] sm:$0xff]
        %v978 = vld [vmem:[#allocation4 + $0xe0] sm:$0xff]
        %v979 = vld [vmem:[#allocation4 + $0xe8] sm:$0xff]
        %v980 = vld [vmem:[#allocation4 + $0xf0] sm:$0xff]
        %v981 = vld [vmem:[#allocation4 + $0xf8] sm:$0xff]
        %v982 = vld [vmem:[#allocation4 + $0x100] sm:$0xff]
        %v983 = vld [vmem:[#allocation4 + $0x108] sm:$0xff]
        %v984 = vld [vmem:[#allocation4 + $0x110] sm:$0xff]
        %v985 = vld [vmem:[#allocation4 + $0x118] sm:$0xff]
        %v986 = vld [vmem:[#allocation4 + $0x120] sm:$0xff]
        %v987 = vld [vmem:[#allocation4 + $0x128] sm:$0xff]
        %v988 = vld [vmem:[#allocation4 + $0x130] sm:$0xff]
        %v989 = vld [vmem:[#allocation4 + $0x138] sm:$0xff]
        %v990 = vld [vmem:[#allocation4 + $0x140] sm:$0xff]
        %v991 = vld [vmem:[#allocation4 + $0x148] sm:$0xff]
        %v992 = vld [vmem:[#allocation4 + $0x150] sm:$0xff]
        %v993 = vld [vmem:[#allocation4 + $0x158] sm:$0xff]
        %v994 = vld [vmem:[#allocation4 + $0x160] sm:$0xff]
        %v995 = vld [vmem:[#allocation4 + $0x168] sm:$0xff]
        %v996 = vld [vmem:[#allocation4 + $0x170] sm:$0xff]
        %v997 = vld [vmem:[#allocation4 + $0x178] sm:$0xff]
        %v998 = vld [vmem:[#allocation4 + $0x180] sm:$0xff]
        %v999 = vld [vmem:[#allocation4 + $0x188] sm:$0xff]
        %v1000 = vld [vmem:[#allocation4 + $0x190] sm:$0xff]
        %v1001 = vld [vmem:[#allocation4 + $0x198] sm:$0xff]
        %v1002 = vld [vmem:[#allocation4 + $0x1a0] sm:$0xff]
        %v1003 = vld [vmem:[#allocation4 + $0x1a8] sm:$0xff]
        %v1004 = vld [vmem:[#allocation4 + $0x1b0] sm:$0xff]
        %v1005 = vld [vmem:[#allocation4 + $0x1b8] sm:$0xff]
        %v1006 = vld [vmem:[#allocation4 + $0x1c0] sm:$0xff]
        %v1007 = vld [vmem:[#allocation4 + $0x1c8] sm:$0xff]
        %v1008 = vld [vmem:[#allocation4 + $0x1d0] sm:$0xff]
        %v1009 = vld [vmem:[#allocation4 + $0x1d8] sm:$0xff]
        %v1010 = vld [vmem:[#allocation4 + $0x1e0] sm:$0xff]
        %v1011 = vld [vmem:[#allocation4 + $0x1e8] sm:$0xff]
        %v1012 = vld [vmem:[#allocation4 + $0x1f0] sm:$0xff]
        %v1013 = vld [vmem:[#allocation4 + $0x1f8] sm:$0xff]
        %v1014 = vld [vmem:[#allocation4 + $0x200] sm:$0xff]
        %v1015 = vld [vmem:[#allocation4 + $0x208] sm:$0xff]
        %v1016 = vld [vmem:[#allocation4 + $0x210] sm:$0xff]
        %v1017 = vld [vmem:[#allocation4 + $0x218] sm:$0xff]
        %v1018 = vld [vmem:[#allocation4 + $0x220] sm:$0xff]
        %v1019 = vld [vmem:[#allocation4 + $0x228] sm:$0xff]
        %v1020 = vld [vmem:[#allocation4 + $0x230] sm:$0xff]
        %v1021 = vld [vmem:[#allocation4 + $0x238] sm:$0xff]
        %v1022 = vld [vmem:[#allocation4 + $0x240] sm:$0xff]
        %v1023 = vld [vmem:[#allocation4 + $0x248] sm:$0xff]
        %v1024 = vld [vmem:[#allocation4 + $0x250] sm:$0xff]
        %v1025 = vld [vmem:[#allocation4 + $0x258] sm:$0xff]
        %v1026 = vld [vmem:[#allocation4 + $0x260] sm:$0xff]
        %v1027 = vld [vmem:[#allocation4 + $0x268] sm:$0xff]
        %v1028 = vld [vmem:[#allocation4 + $0x270] sm:$0xff]
        %v1029 = vld [vmem:[#allocation4 + $0x278] sm:$0xff]
        %v1030 = vld [vmem:[#allocation4 + $0x280] sm:$0xff]
        %v1031 = vld [vmem:[#allocation4 + $0x288] sm:$0xff]
        %v1032 = vld [vmem:[#allocation4 + $0x290] sm:$0xff]
        %v1033 = vld [vmem:[#allocation4 + $0x298] sm:$0xff]
        %v1034 = vld [vmem:[#allocation4 + $0x2a0] sm:$0xff]
        %v1035 = vld [vmem:[#allocation4 + $0x2a8] sm:$0xff]
        %v1036 = vld [vmem:[#allocation4 + $0x2b0] sm:$0xff]
        %v1037 = vld [vmem:[#allocation4 + $0x2b8] sm:$0xff]
        %v1038 = vld [vmem:[#allocation4 + $0x2c0] sm:$0xff]
        %v1039 = vld [vmem:[#allocation4 + $0x2c8] sm:$0xff]
        %v1040 = vld [vmem:[#allocation4 + $0x2d0] sm:$0xff]
        %v1041 = vld [vmem:[#allocation4 + $0x2d8] sm:$0xff]
        %v1042 = vld [vmem:[#allocation4 + $0x2e0] sm:$0xff]
        %v1043 = vld [vmem:[#allocation4 + $0x2e8] sm:$0xff]
        %v1044 = vld [vmem:[#allocation4 + $0x2f0] sm:$0xff]
        %v1045 = vld [vmem:[#allocation4 + $0x2f8] sm:$0xff]
        %v1046 = vld [vmem:[#allocation4 + $0x300] sm:$0xff]
        %v1047 = vld [vmem:[#allocation4 + $0x308] sm:$0xff]
        %v1048 = vld [vmem:[#allocation4 + $0x310] sm:$0xff]
        %v1049 = vld [vmem:[#allocation4 + $0x318] sm:$0xff]
        %v1050 = vld [vmem:[#allocation4 + $0x320] sm:$0xff]
        %v1051 = vld [vmem:[#allocation4 + $0x328] sm:$0xff]
        %v1052 = vld [vmem:[#allocation4 + $0x330] sm:$0xff]
        %v1053 = vld [vmem:[#allocation4 + $0x338] sm:$0xff]
        %v1054 = vld [vmem:[#allocation4 + $0x340] sm:$0xff]
        %v1055 = vld [vmem:[#allocation4 + $0x348] sm:$0xff]
        %v1056 = vld [vmem:[#allocation4 + $0x350] sm:$0xff]
        %v1057 = vld [vmem:[#allocation4 + $0x358] sm:$0xff]
        %v1058 = vld [vmem:[#allocation4 + $0x360] sm:$0xff]
        %v1059 = vld [vmem:[#allocation4 + $0x368] sm:$0xff]
        %v1060 = vld [vmem:[#allocation4 + $0x370] sm:$0xff]
        %v1061 = vld [vmem:[#allocation4 + $0x378] sm:$0xff]
        %v1062 = vld [vmem:[#allocation4 + $0x380] sm:$0xff]
        %v1063 = vld [vmem:[#allocation4 + $0x388] sm:$0xff]
        %v1064 = vld [vmem:[#allocation4 + $0x390] sm:$0xff]
        %v1065 = vld [vmem:[#allocation4 + $0x398] sm:$0xff]
        %v1066 = vld [vmem:[#allocation4 + $0x3a0] sm:$0xff]
        %v1067 = vld [vmem:[#allocation4 + $0x3a8] sm:$0xff]
        %v1068 = vld [vmem:[#allocation4 + $0x3b0] sm:$0xff]
        %v1069 = vld [vmem:[#allocation4 + $0x3b8] sm:$0xff]
        %v1070 = vld [vmem:[#allocation4 + $0x3c0] sm:$0xff]
        %v1071 = vld [vmem:[#allocation4 + $0x3c8] sm:$0xff]
        %v1072 = vld [vmem:[#allocation4 + $0x3d0] sm:$0xff]
        %v1073 = vld [vmem:[#allocation4 + $0x3d8] sm:$0xff]
        %v1074 = vld [vmem:[#allocation4 + $0x3e0] sm:$0xff]
        %v1075 = vld [vmem:[#allocation4 + $0x3e8] sm:$0xff]
        %v1076 = vld [vmem:[#allocation4 + $0x3f0] sm:$0xff]
        %v1077 = vld [vmem:[#allocation4 + $0x3f8] sm:$0xff]
        %1078 = vmatprep.subr.mxu0 %v951
        %1079 = vmatpush1.msra.mxu0 %v950
        %1080 = vmatprep.subr.mxu0 %v959
        %1081 = vmatpush1.msra.mxu0 %v958
        %1082 = vmatprep.subr.mxu0 %v967
        %1083 = vmatpush1.msra.mxu0 %v966
        %1084 = vmatprep.subr.mxu0 %v975
        %1085 = vmatpush1.msra.mxu0 %v974
        %1086 = vmatprep.subr.mxu0 %v983
        %1087 = vmatpush1.msra.mxu0 %v982
        %1088 = vmatprep.subr.mxu0 %v991
        %1089 = vmatpush1.msra.mxu0 %v990
        %1090 = vmatprep.subr.mxu0 %v999
        %1091 = vmatpush1.msra.mxu0 %v998
        %1092 = vmatprep.subr.mxu0 %v1007
        %1093 = vmatpush1.msra.mxu0 %v1006
        %1094 = vmatprep.subr.mxu0 %v1015
        %1095 = vmatpush1.msra.mxu0 %v1014
        %1096 = vmatprep.subr.mxu0 %v1023
        %1097 = vmatpush1.msra.mxu0 %v1022
        %1098 = vmatprep.subr.mxu0 %v1031
        %1099 = vmatpush1.msra.mxu0 %v1030
        %1100 = vmatprep.subr.mxu0 %v1039
        %1101 = vmatpush1.msra.mxu0 %v1038
        %1102 = vmatprep.subr.mxu0 %v1047
        %1103 = vmatpush1.msra.mxu0 %v1046
        %1104 = vmatprep.subr.mxu0 %v1055
        %1105 = vmatpush1.msra.mxu0 %v1054
        %1106 = vmatprep.subr.mxu0 %v1063
        %1107 = vmatpush1.msra.mxu0 %v1062
        %1108 = vmatprep.subr.mxu0 %v1071
        %1109 = vmatpush1.msra.mxu0 %v1070
        %1110 = vmatprep.subr.mxu0 0.0
        %1111 = vmatpush1.msra.mxu0 0.0
        %1112 = vmatprep.subr.mxu0 0.0
        %1113 = vmatpush1.msra.mxu0 0.0
        %1114 = vmatprep.subr.mxu0 0.0
        %1115 = vmatpush1.msra.mxu0 0.0
        %1116 = vmatprep.subr.mxu0 0.0
        %1117 = vmatpush1.msra.mxu0 0.0
        %1118 = vmatprep.subr.mxu0 0.0
        %1119 = vmatpush1.msra.mxu0 0.0
        %1120 = vmatprep.subr.mxu0 0.0
        %1121 = vmatpush1.msra.mxu0 0.0
        %1122 = vmatprep.subr.mxu0 0.0
        %1123 = vmatpush1.msra.mxu0 0.0
        %1124 = vmatprep.subr.mxu0 0.0
        %1125 = vmatpush1.msra.mxu0 0.0
        %1126 = vmatprep.subr.mxu0 0.0
        %1127 = vmatpush1.msra.mxu0 0.0
        %1128 = vmatprep.subr.mxu0 0.0
        %1129 = vmatpush1.msra.mxu0 0.0
        %1130 = vmatprep.subr.mxu0 0.0
        %1131 = vmatpush1.msra.mxu0 0.0
        %1132 = vmatprep.subr.mxu0 0.0
        %1133 = vmatpush1.msra.mxu0 0.0
        %1134 = vmatprep.subr.mxu0 0.0
        %1135 = vmatpush1.msra.mxu0 0.0
        %1136 = vmatprep.subr.mxu0 0.0
        %1137 = vmatpush1.msra.mxu0 0.0
        %1138 = vmatprep.subr.mxu0 0.0
        %1139 = vmatpush1.msra.mxu0 0.0
        %1140 = vmatprep.subr.mxu0 0.0
        %1141 = vmatpush1.msra.mxu0 0.0
        %1142 = vmatprep.mubr.f32.mxu0 0.0
        %1143 = vmatmul.mubr.f32.gmra.mrb[0].mxu0 %v934
        %v1144 = vpop.f32.mrb[0].mxu0
        %v1145 = vadd.f32 0.0, %v1144
        %v1146 = vpop.f32.mrb[0].mxu0
        %v1147 = vadd.f32 0.0, %v1146
        %1148 = vmatprep.mubr.f32.mxu0 0.0
        %1149 = vmatmul.mubr.f32.gmra.mrb[0].mxu0 %v935
        %v1150 = vpop.f32.mrb[0].mxu0
        %v1151 = vadd.f32 0.0, %v1150
        %v1152 = vpop.f32.mrb[0].mxu0
        %v1153 = vadd.f32 0.0, %v1152
        %1154 = vmatprep.mubr.f32.mxu0 0.0
        %1155 = vmatmul.mubr.f32.gmra.mrb[0].mxu0 %v936
        %v1156 = vpop.f32.mrb[0].mxu0
        %v1157 = vadd.f32 0.0, %v1156
        %v1158 = vpop.f32.mrb[0].mxu0
        %v1159 = vadd.f32 0.0, %v1158
        %1160 = vmatprep.mubr.f32.mxu0 0.0
        %1161 = vmatmul.mubr.f32.gmra.mrb[0].mxu0 %v937
        %v1162 = vpop.f32.mrb[0].mxu0
        %v1163 = vadd.f32 0.0, %v1162
        %v1164 = vpop.f32.mrb[0].mxu0
        %v1165 = vadd.f32 0.0, %v1164
        %1166 = vmatprep.mubr.f32.mxu0 0.0
        %1167 = vmatmul.mubr.f32.gmra.mrb[0].mxu0 %v938
        %v1168 = vpop.f32.mrb[0].mxu0
        %v1169 = vadd.f32 0.0, %v1168
        %v1170 = vpop.f32.mrb[0].mxu0
        %v1171 = vadd.f32 0.0, %v1170
        %1172 = vmatprep.mubr.f32.mxu0 0.0
        %1173 = vmatmul.mubr.f32.gmra.mrb[0].mxu0 %v939
        %v1174 = vpop.f32.mrb[0].mxu0
        %v1175 = vadd.f32 0.0, %v1174
        %v1176 = vpop.f32.mrb[0].mxu0
        %v1177 = vadd.f32 0.0, %v1176
        %1178 = vmatprep.mubr.f32.mxu0 0.0
        %1179 = vmatmul.mubr.f32.gmra.mrb[0].mxu0 %v940
        %v1180 = vpop.f32.mrb[0].mxu0
        %v1181 = vadd.f32 0.0, %v1180
        %v1182 = vpop.f32.mrb[0].mxu0
        %v1183 = vadd.f32 0.0, %v1182
        %1184 = vmatprep.mubr.f32.mxu0 0.0
        %1185 = vmatmul.mubr.f32.gmra.mrb[0].mxu0 %v941
        %v1186 = vpop.f32.mrb[0].mxu0
        %v1187 = vadd.f32 0.0, %v1186
        %v1188 = vpop.f32.mrb[0].mxu0
        %v1189 = vadd.f32 0.0, %v1188
        %1190 = vmatprep.mubr.f32.mxu0 0.0
        %1191 = vmatmul.mubr.f32.gmra.mrb[0].mxu0 %v942
        %v1192 = vpop.f32.mrb[0].mxu0
        %v1193 = vadd.f32 0.0, %v1192
        %v1194 = vpop.f32.mrb[0].mxu0
        %v1195 = vadd.f32 0.0, %v1194
        %1196 = vmatprep.mubr.f32.mxu0 0.0
        %1197 = vmatmul.mubr.f32.gmra.mrb[0].mxu0 %v943
        %v1198 = vpop.f32.mrb[0].mxu0
        %v1199 = vadd.f32 0.0, %v1198
        %v1200 = vpop.f32.mrb[0].mxu0
        %v1201 = vadd.f32 0.0, %v1200
        %1202 = vmatprep.mubr.f32.mxu0 0.0
        %1203 = vmatmul.mubr.f32.gmra.mrb[0].mxu0 %v944
        %v1204 = vpop.f32.mrb[0].mxu0
        %v1205 = vadd.f32 0.0, %v1204
        %v1206 = vpop.f32.mrb[0].mxu0
        %v1207 = vadd.f32 0.0, %v1206
        %1208 = vmatprep.mubr.f32.mxu0 0.0
        %1209 = vmatmul.mubr.f32.gmra.mrb[0].mxu0 %v945
        %v1210 = vpop.f32.mrb[0].mxu0
        %v1211 = vadd.f32 0.0, %v1210
        %v1212 = vpop.f32.mrb[0].mxu0
        %v1213 = vadd.f32 0.0, %v1212
        %1214 = vmatprep.mubr.f32.mxu0 0.0
        %1215 = vmatmul.mubr.f32.gmra.mrb[0].mxu0 %v946
        %v1216 = vpop.f32.mrb[0].mxu0
        %v1217 = vadd.f32 0.0, %v1216
        %v1218 = vpop.f32.mrb[0].mxu0
        %v1219 = vadd.f32 0.0, %v1218
        %1220 = vmatprep.mubr.f32.mxu0 0.0
        %1221 = vmatmul.mubr.f32.gmra.mrb[0].mxu0 %v947
        %v1222 = vpop.f32.mrb[0].mxu0
        %v1223 = vadd.f32 0.0, %v1222
        %v1224 = vpop.f32.mrb[0].mxu0
        %v1225 = vadd.f32 0.0, %v1224
        %1226 = vmatprep.mubr.f32.mxu0 0.0
        %1227 = vmatmul.mubr.f32.gmra.mrb[0].mxu0 %v948
        %v1228 = vpop.f32.mrb[0].mxu0
        %v1229 = vadd.f32 0.0, %v1228
        %v1230 = vpop.f32.mrb[0].mxu0
        %v1231 = vadd.f32 0.0, %v1230
        %1232 = vmatprep.mubr.f32.mxu0 0.0
        %1233 = vmatmul.mubr.f32.gmra.mrb[0].mxu0 %v949
        %v1234 = vpop.f32.mrb[0].mxu0
        %v1235 = vadd.f32 0.0, %v1234
        %v1236 = vpop.f32.mrb[0].mxu0
        %v1237 = vadd.f32 0.0, %v1236
        %1238 = vdwg.mxu0
        %1239 = vmatprep.subr.mxu0 %v953
        %1240 = vmatpush1.msra.mxu0 %v952
        %1241 = vmatprep.subr.mxu0 %v961
        %1242 = vmatpush1.msra.mxu0 %v960
        %1243 = vmatprep.subr.mxu0 %v969
        %1244 = vmatpush1.msra.mxu0 %v968
        %1245 = vmatprep.subr.mxu0 %v977
        %1246 = vmatpush1.msra.mxu0 %v976
        %1247 = vmatprep.subr.mxu0 %v985
        %1248 = vmatpush1.msra.mxu0 %v984
        %1249 = vmatprep.subr.mxu0 %v993
        %1250 = vmatpush1.msra.mxu0 %v992
        %1251 = vmatprep.subr.mxu0 %v1001
        %1252 = vmatpush1.msra.mxu0 %v1000
        %1253 = vmatprep.subr.mxu0 %v1009
        %1254 = vmatpush1.msra.mxu0 %v1008
        %1255 = vmatprep.subr.mxu0 %v1017
        %1256 = vmatpush1.msra.mxu0 %v1016
        %1257 = vmatprep.subr.mxu0 %v1025
        %1258 = vmatpush1.msra.mxu0 %v1024
        %1259 = vmatprep.subr.mxu0 %v1033
        %1260 = vmatpush1.msra.mxu0 %v1032
        %1261 = vmatprep.subr.mxu0 %v1041
        %1262 = vmatpush1.msra.mxu0 %v1040
        %1263 = vmatprep.subr.mxu0 %v1049
        %1264 = vmatpush1.msra.mxu0 %v1048
        %1265 = vmatprep.subr.mxu0 %v1057
        %1266 = vmatpush1.msra.mxu0 %v1056
        %1267 = vmatprep.subr.mxu0 %v1065
        %1268 = vmatpush1.msra.mxu0 %v1064
        %1269 = vmatprep.subr.mxu0 %v1073
        %1270 = vmatpush1.msra.mxu0 %v1072
        %1271 = vmatprep.subr.mxu0 0.0
        %1272 = vmatpush1.msra.mxu0 0.0
        %1273 = vmatprep.subr.mxu0 0.0
        %1274 = vmatpush1.msra.mxu0 0.0
        %1275 = vmatprep.subr.mxu0 0.0
        %1276 = vmatpush1.msra.mxu0 0.0
        %1277 = vmatprep.subr.mxu0 0.0
        %1278 = vmatpush1.msra.mxu0 0.0
        %1279 = vmatprep.subr.mxu0 0.0
        %1280 = vmatpush1.msra.mxu0 0.0
        %1281 = vmatprep.subr.mxu0 0.0
        %1282 = vmatpush1.msra.mxu0 0.0
        %1283 = vmatprep.subr.mxu0 0.0
        %1284 = vmatpush1.msra.mxu0 0.0
        %1285 = vmatprep.subr.mxu0 0.0
        %1286 = vmatpush1.msra.mxu0 0.0
        %1287 = vmatprep.subr.mxu0 0.0
        %1288 = vmatpush1.msra.mxu0 0.0
        %1289 = vmatprep.subr.mxu0 0.0
        %1290 = vmatpush1.msra.mxu0 0.0
        %1291 = vmatprep.subr.mxu0 0.0
        %1292 = vmatpush1.msra.mxu0 0.0
        %1293 = vmatprep.subr.mxu0 0.0
        %1294 = vmatpush1.msra.mxu0 0.0
        %1295 = vmatprep.subr.mxu0 0.0
        %1296 = vmatpush1.msra.mxu0 0.0
        %1297 = vmatprep.subr.mxu0 0.0
        %1298 = vmatpush1.msra.mxu0 0.0
        %1299 = vmatprep.subr.mxu0 0.0
        %1300 = vmatpush1.msra.mxu0 0.0
        %1301 = vmatprep.subr.mxu0 0.0
        %1302 = vmatpush1.msra.mxu0 0.0
        %1303 = vmatprep.mubr.f32.mxu0 0.0
        %1304 = vmatmul.mubr.f32.gmra.mrb[0].mxu0 %v934
        %v1305 = vpop.f32.mrb[0].mxu0
        %v1306 = vadd.f32 0.0, %v1305
        %v1307 = vpop.f32.mrb[0].mxu0
        %v1308 = vadd.f32 0.0, %v1307
        %1309 = vmatprep.mubr.f32.mxu0 0.0
        %1310 = vmatmul.mubr.f32.gmra.mrb[0].mxu0 %v935
        %v1311 = vpop.f32.mrb[0].mxu0
        %v1312 = vadd.f32 0.0, %v1311
        %v1313 = vpop.f32.mrb[0].mxu0
        %v1314 = vadd.f32 0.0, %v1313
        %1315 = vmatprep.mubr.f32.mxu0 0.0
        %1316 = vmatmul.mubr.f32.gmra.mrb[0].mxu0 %v936
        %v1317 = vpop.f32.mrb[0].mxu0
        %v1318 = vadd.f32 0.0, %v1317
        %v1319 = vpop.f32.mrb[0].mxu0
        %v1320 = vadd.f32 0.0, %v1319
        %1321 = vmatprep.mubr.f32.mxu0 0.0
        %1322 = vmatmul.mubr.f32.gmra.mrb[0].mxu0 %v937
        %v1323 = vpop.f32.mrb[0].mxu0
        %v1324 = vadd.f32 0.0, %v1323
        %v1325 = vpop.f32.mrb[0].mxu0
        %v1326 = vadd.f32 0.0, %v1325
        %1327 = vmatprep.mubr.f32.mxu0 0.0
        %1328 = vmatmul.mubr.f32.gmra.mrb[0].mxu0 %v938
        %v1329 = vpop.f32.mrb[0].mxu0
        %v1330 = vadd.f32 0.0, %v1329
        %v1331 = vpop.f32.mrb[0].mxu0
        %v1332 = vadd.f32 0.0, %v1331
        %1333 = vmatprep.mubr.f32.mxu0 0.0
        %1334 = vmatmul.mubr.f32.gmra.mrb[0].mxu0 %v939
        %v1335 = vpop.f32.mrb[0].mxu0
        %v1336 = vadd.f32 0.0, %v1335
        %v1337 = vpop.f32.mrb[0].mxu0
        %v1338 = vadd.f32 0.0, %v1337
        %1339 = vmatprep.mubr.f32.mxu0 0.0
        %1340 = vmatmul.mubr.f32.gmra.mrb[0].mxu0 %v940
        %v1341 = vpop.f32.mrb[0].mxu0
        %v1342 = vadd.f32 0.0, %v1341
        %v1343 = vpop.f32.mrb[0].mxu0
        %v1344 = vadd.f32 0.0, %v1343
        %1345 = vmatprep.mubr.f32.mxu0 0.0
        %1346 = vmatmul.mubr.f32.gmra.mrb[0].mxu0 %v941
        %v1347 = vpop.f32.mrb[0].mxu0
        %v1348 = vadd.f32 0.0, %v1347
        %v1349 = vpop.f32.mrb[0].mxu0
        %v1350 = vadd.f32 0.0, %v1349
        %1351 = vmatprep.mubr.f32.mxu0 0.0
        %1352 = vmatmul.mubr.f32.gmra.mrb[0].mxu0 %v942
        %v1353 = vpop.f32.mrb[0].mxu0
        %v1354 = vadd.f32 0.0, %v1353
        %v1355 = vpop.f32.mrb[0].mxu0
        %v1356 = vadd.f32 0.0, %v1355
        %1357 = vmatprep.mubr.f32.mxu0 0.0
        %1358 = vmatmul.mubr.f32.gmra.mrb[0].mxu0 %v943
        %v1359 = vpop.f32.mrb[0].mxu0
        %v1360 = vadd.f32 0.0, %v1359
        %v1361 = vpop.f32.mrb[0].mxu0
        %v1362 = vadd.f32 0.0, %v1361
        %1363 = vmatprep.mubr.f32.mxu0 0.0
        %1364 = vmatmul.mubr.f32.gmra.mrb[0].mxu0 %v944
        %v1365 = vpop.f32.mrb[0].mxu0
        %v1366 = vadd.f32 0.0, %v1365
        %v1367 = vpop.f32.mrb[0].mxu0
        %v1368 = vadd.f32 0.0, %v1367
        %1369 = vmatprep.mubr.f32.mxu0 0.0
        %1370 = vmatmul.mubr.f32.gmra.mrb[0].mxu0 %v945
        %v1371 = vpop.f32.mrb[0].mxu0
        %v1372 = vadd.f32 0.0, %v1371
        %v1373 = vpop.f32.mrb[0].mxu0
        %v1374 = vadd.f32 0.0, %v1373
        %1375 = vmatprep.mubr.f32.mxu0 0.0
        %1376 = vmatmul.mubr.f32.gmra.mrb[0].mxu0 %v946
        %v1377 = vpop.f32.mrb[0].mxu0
        %v1378 = vadd.f32 0.0, %v1377
        %v1379 = vpop.f32.mrb[0].mxu0
        %v1380 = vadd.f32 0.0, %v1379
        %1381 = vmatprep.mubr.f32.mxu0 0.0
        %1382 = vmatmul.mubr.f32.gmra.mrb[0].mxu0 %v947
        %v1383 = vpop.f32.mrb[0].mxu0
        %v1384 = vadd.f32 0.0, %v1383
        %v1385 = vpop.f32.mrb[0].mxu0
        %v1386 = vadd.f32 0.0, %v1385
        %1387 = vmatprep.mubr.f32.mxu0 0.0
        %1388 = vmatmul.mubr.f32.gmra.mrb[0].mxu0 %v948
        %v1389 = vpop.f32.mrb[0].mxu0
        %v1390 = vadd.f32 0.0, %v1389
        %v1391 = vpop.f32.mrb[0].mxu0
        %v1392 = vadd.f32 0.0, %v1391
        %1393 = vmatprep.mubr.f32.mxu0 0.0
        %1394 = vmatmul.mubr.f32.gmra.mrb[0].mxu0 %v949
        %v1395 = vpop.f32.mrb[0].mxu0
        %v1396 = vadd.f32 0.0, %v1395
        %v1397 = vpop.f32.mrb[0].mxu0
        %v1398 = vadd.f32 0.0, %v1397
        %1399 = vdwg.mxu0
        %1400 = vmatprep.subr.mxu0 %v955
        %1401 = vmatpush1.msra.mxu0 %v954
        %1402 = vmatprep.subr.mxu0 %v963
        %1403 = vmatpush1.msra.mxu0 %v962
        %1404 = vmatprep.subr.mxu0 %v971
        %1405 = vmatpush1.msra.mxu0 %v970
        %1406 = vmatprep.subr.mxu0 %v979
        %1407 = vmatpush1.msra.mxu0 %v978
        %1408 = vmatprep.subr.mxu0 %v987
        %1409 = vmatpush1.msra.mxu0 %v986
        %1410 = vmatprep.subr.mxu0 %v995
        %1411 = vmatpush1.msra.mxu0 %v994
        %1412 = vmatprep.subr.mxu0 %v1003
        %1413 = vmatpush1.msra.mxu0 %v1002
        %1414 = vmatprep.subr.mxu0 %v1011
        %1415 = vmatpush1.msra.mxu0 %v1010
        %1416 = vmatprep.subr.mxu0 %v1019
        %1417 = vmatpush1.msra.mxu0 %v1018
        %1418 = vmatprep.subr.mxu0 %v1027
        %1419 = vmatpush1.msra.mxu0 %v1026
        %1420 = vmatprep.subr.mxu0 %v1035
        %1421 = vmatpush1.msra.mxu0 %v1034
        %1422 = vmatprep.subr.mxu0 %v1043
        %1423 = vmatpush1.msra.mxu0 %v1042
        %1424 = vmatprep.subr.mxu0 %v1051
        %1425 = vmatpush1.msra.mxu0 %v1050
        %1426 = vmatprep.subr.mxu0 %v1059
        %1427 = vmatpush1.msra.mxu0 %v1058
        %1428 = vmatprep.subr.mxu0 %v1067
        %1429 = vmatpush1.msra.mxu0 %v1066
        %1430 = vmatprep.subr.mxu0 %v1075
        %1431 = vmatpush1.msra.mxu0 %v1074
        %1432 = vmatprep.subr.mxu0 0.0
        %1433 = vmatpush1.msra.mxu0 0.0
        %1434 = vmatprep.subr.mxu0 0.0
        %1435 = vmatpush1.msra.mxu0 0.0
        %1436 = vmatprep.subr.mxu0 0.0
        %1437 = vmatpush1.msra.mxu0 0.0
        %1438 = vmatprep.subr.mxu0 0.0
        %1439 = vmatpush1.msra.mxu0 0.0
        %1440 = vmatprep.subr.mxu0 0.0
        %1441 = vmatpush1.msra.mxu0 0.0
        %1442 = vmatprep.subr.mxu0 0.0
        %1443 = vmatpush1.msra.mxu0 0.0
        %1444 = vmatprep.subr.mxu0 0.0
        %1445 = vmatpush1.msra.mxu0 0.0
        %1446 = vmatprep.subr.mxu0 0.0
        %1447 = vmatpush1.msra.mxu0 0.0
        %1448 = vmatprep.subr.mxu0 0.0
        %1449 = vmatpush1.msra.mxu0 0.0
        %1450 = vmatprep.subr.mxu0 0.0
        %1451 = vmatpush1.msra.mxu0 0.0
        %1452 = vmatprep.subr.mxu0 0.0
        %1453 = vmatpush1.msra.mxu0 0.0
        %1454 = vmatprep.subr.mxu0 0.0
        %1455 = vmatpush1.msra.mxu0 0.0
        %1456 = vmatprep.subr.mxu0 0.0
        %1457 = vmatpush1.msra.mxu0 0.0
        %1458 = vmatprep.subr.mxu0 0.0
        %1459 = vmatpush1.msra.mxu0 0.0
        %1460 = vmatprep.subr.mxu0 0.0
        %1461 = vmatpush1.msra.mxu0 0.0
        %1462 = vmatprep.subr.mxu0 0.0
        %1463 = vmatpush1.msra.mxu0 0.0
        %1464 = vmatprep.mubr.f32.mxu0 0.0
        %1465 = vmatmul.mubr.f32.gmra.mrb[0].mxu0 %v934
        %v1466 = vpop.f32.mrb[0].mxu0
        %v1467 = vadd.f32 0.0, %v1466
        %v1468 = vpop.f32.mrb[0].mxu0
        %v1469 = vadd.f32 0.0, %v1468
        %1470 = vmatprep.mubr.f32.mxu0 0.0
        %1471 = vmatmul.mubr.f32.gmra.mrb[0].mxu0 %v935
        %v1472 = vpop.f32.mrb[0].mxu0
        %v1473 = vadd.f32 0.0, %v1472
        %v1474 = vpop.f32.mrb[0].mxu0
        %v1475 = vadd.f32 0.0, %v1474
        %1476 = vmatprep.mubr.f32.mxu0 0.0
        %1477 = vmatmul.mubr.f32.gmra.mrb[0].mxu0 %v936
        %v1478 = vpop.f32.mrb[0].mxu0
        %v1479 = vadd.f32 0.0, %v1478
        %v1480 = vpop.f32.mrb[0].mxu0
        %v1481 = vadd.f32 0.0, %v1480
        %1482 = vmatprep.mubr.f32.mxu0 0.0
        %1483 = vmatmul.mubr.f32.gmra.mrb[0].mxu0 %v937
        %v1484 = vpop.f32.mrb[0].mxu0
        %v1485 = vadd.f32 0.0, %v1484
        %v1486 = vpop.f32.mrb[0].mxu0
        %v1487 = vadd.f32 0.0, %v1486
        %1488 = vmatprep.mubr.f32.mxu0 0.0
        %1489 = vmatmul.mubr.f32.gmra.mrb[0].mxu0 %v938
        %v1490 = vpop.f32.mrb[0].mxu0
        %v1491 = vadd.f32 0.0, %v1490
        %v1492 = vpop.f32.mrb[0].mxu0
        %v1493 = vadd.f32 0.0, %v1492
        %1494 = vmatprep.mubr.f32.mxu0 0.0
        %1495 = vmatmul.mubr.f32.gmra.mrb[0].mxu0 %v939
        %v1496 = vpop.f32.mrb[0].mxu0
        %v1497 = vadd.f32 0.0, %v1496
        %v1498 = vpop.f32.mrb[0].mxu0
        %v1499 = vadd.f32 0.0, %v1498
        %1500 = vmatprep.mubr.f32.mxu0 0.0
        %1501 = vmatmul.mubr.f32.gmra.mrb[0].mxu0 %v940
        %v1502 = vpop.f32.mrb[0].mxu0
        %v1503 = vadd.f32 0.0, %v1502
        %v1504 = vpop.f32.mrb[0].mxu0
        %v1505 = vadd.f32 0.0, %v1504
        %1506 = vmatprep.mubr.f32.mxu0 0.0
        %1507 = vmatmul.mubr.f32.gmra.mrb[0].mxu0 %v941
        %v1508 = vpop.f32.mrb[0].mxu0
        %v1509 = vadd.f32 0.0, %v1508
        %v1510 = vpop.f32.mrb[0].mxu0
        %v1511 = vadd.f32 0.0, %v1510
        %1512 = vmatprep.mubr.f32.mxu0 0.0
        %1513 = vmatmul.mubr.f32.gmra.mrb[0].mxu0 %v942
        %v1514 = vpop.f32.mrb[0].mxu0
        %v1515 = vadd.f32 0.0, %v1514
        %v1516 = vpop.f32.mrb[0].mxu0
        %v1517 = vadd.f32 0.0, %v1516
        %1518 = vmatprep.mubr.f32.mxu0 0.0
        %1519 = vmatmul.mubr.f32.gmra.mrb[0].mxu0 %v943
        %v1520 = vpop.f32.mrb[0].mxu0
        %v1521 = vadd.f32 0.0, %v1520
        %v1522 = vpop.f32.mrb[0].mxu0
        %v1523 = vadd.f32 0.0, %v1522
        %1524 = vmatprep.mubr.f32.mxu0 0.0
        %1525 = vmatmul.mubr.f32.gmra.mrb[0].mxu0 %v944
        %v1526 = vpop.f32.mrb[0].mxu0
        %v1527 = vadd.f32 0.0, %v1526
        %v1528 = vpop.f32.mrb[0].mxu0
        %v1529 = vadd.f32 0.0, %v1528
        %1530 = vmatprep.mubr.f32.mxu0 0.0
        %1531 = vmatmul.mubr.f32.gmra.mrb[0].mxu0 %v945
        %v1532 = vpop.f32.mrb[0].mxu0
        %v1533 = vadd.f32 0.0, %v1532
        %v1534 = vpop.f32.mrb[0].mxu0
        %v1535 = vadd.f32 0.0, %v1534
        %1536 = vmatprep.mubr.f32.mxu0 0.0
        %1537 = vmatmul.mubr.f32.gmra.mrb[0].mxu0 %v946
        %v1538 = vpop.f32.mrb[0].mxu0
        %v1539 = vadd.f32 0.0, %v1538
        %v1540 = vpop.f32.mrb[0].mxu0
        %v1541 = vadd.f32 0.0, %v1540
        %1542 = vmatprep.mubr.f32.mxu0 0.0
        %1543 = vmatmul.mubr.f32.gmra.mrb[0].mxu0 %v947
        %v1544 = vpop.f32.mrb[0].mxu0
        %v1545 = vadd.f32 0.0, %v1544
        %v1546 = vpop.f32.mrb[0].mxu0
        %v1547 = vadd.f32 0.0, %v1546
        %1548 = vmatprep.mubr.f32.mxu0 0.0
        %1549 = vmatmul.mubr.f32.gmra.mrb[0].mxu0 %v948
        %v1550 = vpop.f32.mrb[0].mxu0
        %v1551 = vadd.f32 0.0, %v1550
        %v1552 = vpop.f32.mrb[0].mxu0
        %v1553 = vadd.f32 0.0, %v1552
        %1554 = vmatprep.mubr.f32.mxu0 0.0
        %1555 = vmatmul.mubr.f32.gmra.mrb[0].mxu0 %v949
        %v1556 = vpop.f32.mrb[0].mxu0
        %v1557 = vadd.f32 0.0, %v1556
        %v1558 = vpop.f32.mrb[0].mxu0
        %v1559 = vadd.f32 0.0, %v1558
        %1560 = vdwg.mxu0
        %1561 = vmatprep.subr.mxu0 %v957
        %1562 = vmatpush1.msra.mxu0 %v956
        %1563 = vmatprep.subr.mxu0 %v965
        %1564 = vmatpush1.msra.mxu0 %v964
        %1565 = vmatprep.subr.mxu0 %v973
        %1566 = vmatpush1.msra.mxu0 %v972
        %1567 = vmatprep.subr.mxu0 %v981
        %1568 = vmatpush1.msra.mxu0 %v980
        %1569 = vmatprep.subr.mxu0 %v989
        %1570 = vmatpush1.msra.mxu0 %v988
        %1571 = vmatprep.subr.mxu0 %v997
        %1572 = vmatpush1.msra.mxu0 %v996
        %1573 = vmatprep.subr.mxu0 %v1005
        %1574 = vmatpush1.msra.mxu0 %v1004
        %1575 = vmatprep.subr.mxu0 %v1013
        %1576 = vmatpush1.msra.mxu0 %v1012
        %1577 = vmatprep.subr.mxu0 %v1021
        %1578 = vmatpush1.msra.mxu0 %v1020
        %1579 = vmatprep.subr.mxu0 %v1029
        %1580 = vmatpush1.msra.mxu0 %v1028
        %1581 = vmatprep.subr.mxu0 %v1037
        %1582 = vmatpush1.msra.mxu0 %v1036
        %1583 = vmatprep.subr.mxu0 %v1045
        %1584 = vmatpush1.msra.mxu0 %v1044
        %1585 = vmatprep.subr.mxu0 %v1053
        %1586 = vmatpush1.msra.mxu0 %v1052
        %1587 = vmatprep.subr.mxu0 %v1061
        %1588 = vmatpush1.msra.mxu0 %v1060
        %1589 = vmatprep.subr.mxu0 %v1069
        %1590 = vmatpush1.msra.mxu0 %v1068
        %1591 = vmatprep.subr.mxu0 %v1077
        %1592 = vmatpush1.msra.mxu0 %v1076
        %1593 = vmatprep.subr.mxu0 0.0
        %1594 = vmatpush1.msra.mxu0 0.0
        %1595 = vmatprep.subr.mxu0 0.0
        %1596 = vmatpush1.msra.mxu0 0.0
        %1597 = vmatprep.subr.mxu0 0.0
        %1598 = vmatpush1.msra.mxu0 0.0
        %1599 = vmatprep.subr.mxu0 0.0
        %1600 = vmatpush1.msra.mxu0 0.0
        %1601 = vmatprep.subr.mxu0 0.0
        %1602 = vmatpush1.msra.mxu0 0.0
        %1603 = vmatprep.subr.mxu0 0.0
        %1604 = vmatpush1.msra.mxu0 0.0
        %1605 = vmatprep.subr.mxu0 0.0
        %1606 = vmatpush1.msra.mxu0 0.0
        %1607 = vmatprep.subr.mxu0 0.0
        %1608 = vmatpush1.msra.mxu0 0.0
        %1609 = vmatprep.subr.mxu0 0.0
        %1610 = vmatpush1.msra.mxu0 0.0
        %1611 = vmatprep.subr.mxu0 0.0
        %1612 = vmatpush1.msra.mxu0 0.0
        %1613 = vmatprep.subr.mxu0 0.0
        %1614 = vmatpush1.msra.mxu0 0.0
        %1615 = vmatprep.subr.mxu0 0.0
        %1616 = vmatpush1.msra.mxu0 0.0
        %1617 = vmatprep.subr.mxu0 0.0
        %1618 = vmatpush1.msra.mxu0 0.0
        %1619 = vmatprep.subr.mxu0 0.0
        %1620 = vmatpush1.msra.mxu0 0.0
        %1621 = vmatprep.subr.mxu0 0.0
        %1622 = vmatpush1.msra.mxu0 0.0
        %1623 = vmatprep.subr.mxu0 0.0
        %1624 = vmatpush1.msra.mxu0 0.0
        %1625 = vmatprep.mubr.f32.mxu0 0.0
        %1626 = vmatmul.mubr.f32.gmra.mrb[0].mxu0 %v934
        %v1627 = vpop.f32.mrb[0].mxu0
        %v1628 = vadd.f32 0.0, %v1627
        %v1629 = vpop.f32.mrb[0].mxu0
        %v1630 = vadd.f32 0.0, %v1629
        %1631 = vmatprep.mubr.f32.mxu0 0.0
        %1632 = vmatmul.mubr.f32.gmra.mrb[0].mxu0 %v935
        %v1633 = vpop.f32.mrb[0].mxu0
        %v1634 = vadd.f32 0.0, %v1633
        %v1635 = vpop.f32.mrb[0].mxu0
        %v1636 = vadd.f32 0.0, %v1635
        %1637 = vmatprep.mubr.f32.mxu0 0.0
        %1638 = vmatmul.mubr.f32.gmra.mrb[0].mxu0 %v936
        %v1639 = vpop.f32.mrb[0].mxu0
        %v1640 = vadd.f32 0.0, %v1639
        %v1641 = vpop.f32.mrb[0].mxu0
        %v1642 = vadd.f32 0.0, %v1641
        %1643 = vmatprep.mubr.f32.mxu0 0.0
        %1644 = vmatmul.mubr.f32.gmra.mrb[0].mxu0 %v937
        %v1645 = vpop.f32.mrb[0].mxu0
        %v1646 = vadd.f32 0.0, %v1645
        %v1647 = vpop.f32.mrb[0].mxu0
        %v1648 = vadd.f32 0.0, %v1647
        %1649 = vmatprep.mubr.f32.mxu0 0.0
        %1650 = vmatmul.mubr.f32.gmra.mrb[0].mxu0 %v938
        %v1651 = vpop.f32.mrb[0].mxu0
        %v1652 = vadd.f32 0.0, %v1651
        %v1653 = vpop.f32.mrb[0].mxu0
        %v1654 = vadd.f32 0.0, %v1653
        %1655 = vmatprep.mubr.f32.mxu0 0.0
        %1656 = vmatmul.mubr.f32.gmra.mrb[0].mxu0 %v939
        %v1657 = vpop.f32.mrb[0].mxu0
        %v1658 = vadd.f32 0.0, %v1657
        %v1659 = vpop.f32.mrb[0].mxu0
        %v1660 = vadd.f32 0.0, %v1659
        %1661 = vmatprep.mubr.f32.mxu0 0.0
        %1662 = vmatmul.mubr.f32.gmra.mrb[0].mxu0 %v940
        %v1663 = vpop.f32.mrb[0].mxu0
        %v1664 = vadd.f32 0.0, %v1663
        %v1665 = vpop.f32.mrb[0].mxu0
        %v1666 = vadd.f32 0.0, %v1665
        %1667 = vmatprep.mubr.f32.mxu0 0.0
        %1668 = vmatmul.mubr.f32.gmra.mrb[0].mxu0 %v941
        %v1669 = vpop.f32.mrb[0].mxu0
        %v1670 = vadd.f32 0.0, %v1669
        %v1671 = vpop.f32.mrb[0].mxu0
        %v1672 = vadd.f32 0.0, %v1671
        %1673 = vmatprep.mubr.f32.mxu0 0.0
        %1674 = vmatmul.mubr.f32.gmra.mrb[0].mxu0 %v942
        %v1675 = vpop.f32.mrb[0].mxu0
        %v1676 = vadd.f32 0.0, %v1675
        %v1677 = vpop.f32.mrb[0].mxu0
        %v1678 = vadd.f32 0.0, %v1677
        %1679 = vmatprep.mubr.f32.mxu0 0.0
        %1680 = vmatmul.mubr.f32.gmra.mrb[0].mxu0 %v943
        %v1681 = vpop.f32.mrb[0].mxu0
        %v1682 = vadd.f32 0.0, %v1681
        %v1683 = vpop.f32.mrb[0].mxu0
        %v1684 = vadd.f32 0.0, %v1683
        %1685 = vmatprep.mubr.f32.mxu0 0.0
        %1686 = vmatmul.mubr.f32.gmra.mrb[0].mxu0 %v944
        %v1687 = vpop.f32.mrb[0].mxu0
        %v1688 = vadd.f32 0.0, %v1687
        %v1689 = vpop.f32.mrb[0].mxu0
        %v1690 = vadd.f32 0.0, %v1689
        %1691 = vmatprep.mubr.f32.mxu0 0.0
        %1692 = vmatmul.mubr.f32.gmra.mrb[0].mxu0 %v945
        %v1693 = vpop.f32.mrb[0].mxu0
        %v1694 = vadd.f32 0.0, %v1693
        %v1695 = vpop.f32.mrb[0].mxu0
        %v1696 = vadd.f32 0.0, %v1695
        %1697 = vmatprep.mubr.f32.mxu0 0.0
        %1698 = vmatmul.mubr.f32.gmra.mrb[0].mxu0 %v946
        %v1699 = vpop.f32.mrb[0].mxu0
        %v1700 = vadd.f32 0.0, %v1699
        %v1701 = vpop.f32.mrb[0].mxu0
        %v1702 = vadd.f32 0.0, %v1701
        %1703 = vmatprep.mubr.f32.mxu0 0.0
        %1704 = vmatmul.mubr.f32.gmra.mrb[0].mxu0 %v947
        %v1705 = vpop.f32.mrb[0].mxu0
        %v1706 = vadd.f32 0.0, %v1705
        %v1707 = vpop.f32.mrb[0].mxu0
        %v1708 = vadd.f32 0.0, %v1707
        %1709 = vmatprep.mubr.f32.mxu0 0.0
        %1710 = vmatmul.mubr.f32.gmra.mrb[0].mxu0 %v948
        %v1711 = vpop.f32.mrb[0].mxu0
        %v1712 = vadd.f32 0.0, %v1711
        %v1713 = vpop.f32.mrb[0].mxu0
        %v1714 = vadd.f32 0.0, %v1713
        %1715 = vmatprep.mubr.f32.mxu0 0.0
        %1716 = vmatmul.mubr.f32.gmra.mrb[0].mxu0 %v949
        %v1717 = vpop.f32.mrb[0].mxu0
        %v1718 = vadd.f32 0.0, %v1717
        %v1719 = vpop.f32.mrb[0].mxu0
        %v1720 = vadd.f32 0.0, %v1719
        %1721 = vdwg.mxu0
        %v1722 = vadd.f32 %v1145, %v1151
        %v1723 = vadd.f32 %v1722, %v1157
        %v1724 = vadd.f32 %v1723, %v1163
        %v1725 = vadd.f32 %v1724, %v1169
        %v1726 = vadd.f32 %v1725, %v1175
        %v1727 = vadd.f32 %v1726, %v1181
        %v1728 = vadd.f32 %v1727, %v1187
        %v1729 = vadd.f32 %v1728, %v1193
        %v1730 = vadd.f32 %v1729, %v1199
        %v1731 = vadd.f32 %v1730, %v1205
        %v1732 = vadd.f32 %v1731, %v1211
        %v1733 = vadd.f32 %v1732, %v1217
        %v1734 = vadd.f32 %v1733, %v1223
        %v1735 = vadd.f32 %v1734, %v1229
        %v1736 = vadd.f32 %v1735, %v1235
        %v1737 = vrot.slane %v1736, 4
        %v1738 = vadd.f32 %v1736, %v1737
        %v1739 = vrot.slane %v1738, 2
        %v1740 = vadd.f32 %v1738, %v1739
        %v1741 = vrot.slane %v1740, 1
        %v1742 = vadd.f32 %v1740, %v1741
        %v1743 = vadd.f32 %v1147, %v1153
        %v1744 = vadd.f32 %v1743, %v1159
        %v1745 = vadd.f32 %v1744, %v1165
        %v1746 = vadd.f32 %v1745, %v1171
        %v1747 = vadd.f32 %v1746, %v1177
        %v1748 = vadd.f32 %v1747, %v1183
        %v1749 = vadd.f32 %v1748, %v1189
        %v1750 = vadd.f32 %v1749, %v1195
        %v1751 = vadd.f32 %v1750, %v1201
        %v1752 = vadd.f32 %v1751, %v1207
        %v1753 = vadd.f32 %v1752, %v1213
        %v1754 = vadd.f32 %v1753, %v1219
        %v1755 = vadd.f32 %v1754, %v1225
        %v1756 = vadd.f32 %v1755, %v1231
        %v1757 = vadd.f32 %v1756, %v1237
        %v1758 = vrot.slane %v1757, 4
        %v1759 = vadd.f32 %v1757, %v1758
        %v1760 = vrot.slane %v1759, 2
        %v1761 = vadd.f32 %v1759, %v1760
        %v1762 = vrot.slane %v1761, 1
        %v1763 = vadd.f32 %v1761, %v1762
        %v1764 = vadd.f32 %v1306, %v1312
        %v1765 = vadd.f32 %v1764, %v1318
        %v1766 = vadd.f32 %v1765, %v1324
        %v1767 = vadd.f32 %v1766, %v1330
        %v1768 = vadd.f32 %v1767, %v1336
        %v1769 = vadd.f32 %v1768, %v1342
        %v1770 = vadd.f32 %v1769, %v1348
        %v1771 = vadd.f32 %v1770, %v1354
        %v1772 = vadd.f32 %v1771, %v1360
        %v1773 = vadd.f32 %v1772, %v1366
        %v1774 = vadd.f32 %v1773, %v1372
        %v1775 = vadd.f32 %v1774, %v1378
        %v1776 = vadd.f32 %v1775, %v1384
        %v1777 = vadd.f32 %v1776, %v1390
        %v1778 = vadd.f32 %v1777, %v1396
        %v1779 = vrot.slane %v1778, 4
        %v1780 = vadd.f32 %v1778, %v1779
        %v1781 = vrot.slane %v1780, 2
        %v1782 = vadd.f32 %v1780, %v1781
        %v1783 = vrot.slane %v1782, 1
        %v1784 = vadd.f32 %v1782, %v1783
        %v1785 = vadd.f32 %v1308, %v1314
        %v1786 = vadd.f32 %v1785, %v1320
        %v1787 = vadd.f32 %v1786, %v1326
        %v1788 = vadd.f32 %v1787, %v1332
        %v1789 = vadd.f32 %v1788, %v1338
        %v1790 = vadd.f32 %v1789, %v1344
        %v1791 = vadd.f32 %v1790, %v1350
        %v1792 = vadd.f32 %v1791, %v1356
        %v1793 = vadd.f32 %v1792, %v1362
        %v1794 = vadd.f32 %v1793, %v1368
        %v1795 = vadd.f32 %v1794, %v1374
        %v1796 = vadd.f32 %v1795, %v1380
        %v1797 = vadd.f32 %v1796, %v1386
        %v1798 = vadd.f32 %v1797, %v1392
        %v1799 = vadd.f32 %v1798, %v1398
        %v1800 = vrot.slane %v1799, 4
        %v1801 = vadd.f32 %v1799, %v1800
        %v1802 = vrot.slane %v1801, 2
        %v1803 = vadd.f32 %v1801, %v1802
        %v1804 = vrot.slane %v1803, 1
        %v1805 = vadd.f32 %v1803, %v1804
        %v1806 = vadd.f32 %v1467, %v1473
        %v1807 = vadd.f32 %v1806, %v1479
        %v1808 = vadd.f32 %v1807, %v1485
        %v1809 = vadd.f32 %v1808, %v1491
        %v1810 = vadd.f32 %v1809, %v1497
        %v1811 = vadd.f32 %v1810, %v1503
        %v1812 = vadd.f32 %v1811, %v1509
        %v1813 = vadd.f32 %v1812, %v1515
        %v1814 = vadd.f32 %v1813, %v1521
        %v1815 = vadd.f32 %v1814, %v1527
        %v1816 = vadd.f32 %v1815, %v1533
        %v1817 = vadd.f32 %v1816, %v1539
        %v1818 = vadd.f32 %v1817, %v1545
        %v1819 = vadd.f32 %v1818, %v1551
        %v1820 = vadd.f32 %v1819, %v1557
        %v1821 = vrot.slane %v1820, 4
        %v1822 = vadd.f32 %v1820, %v1821
        %v1823 = vrot.slane %v1822, 2
        %v1824 = vadd.f32 %v1822, %v1823
        %v1825 = vrot.slane %v1824, 1
        %v1826 = vadd.f32 %v1824, %v1825
        %v1827 = vadd.f32 %v1469, %v1475
        %v1828 = vadd.f32 %v1827, %v1481
        %v1829 = vadd.f32 %v1828, %v1487
        %v1830 = vadd.f32 %v1829, %v1493
        %v1831 = vadd.f32 %v1830, %v1499
        %v1832 = vadd.f32 %v1831, %v1505
        %v1833 = vadd.f32 %v1832, %v1511
        %v1834 = vadd.f32 %v1833, %v1517
        %v1835 = vadd.f32 %v1834, %v1523
        %v1836 = vadd.f32 %v1835, %v1529
        %v1837 = vadd.f32 %v1836, %v1535
        %v1838 = vadd.f32 %v1837, %v1541
        %v1839 = vadd.f32 %v1838, %v1547
        %v1840 = vadd.f32 %v1839, %v1553
        %v1841 = vadd.f32 %v1840, %v1559
        %v1842 = vrot.slane %v1841, 4
        %v1843 = vadd.f32 %v1841, %v1842
        %v1844 = vrot.slane %v1843, 2
        %v1845 = vadd.f32 %v1843, %v1844
        %v1846 = vrot.slane %v1845, 1
        %v1847 = vadd.f32 %v1845, %v1846
        %v1848 = vadd.f32 %v1628, %v1634
        %v1849 = vadd.f32 %v1848, %v1640
        %v1850 = vadd.f32 %v1849, %v1646
        %v1851 = vadd.f32 %v1850, %v1652
        %v1852 = vadd.f32 %v1851, %v1658
        %v1853 = vadd.f32 %v1852, %v1664
        %v1854 = vadd.f32 %v1853, %v1670
        %v1855 = vadd.f32 %v1854, %v1676
        %v1856 = vadd.f32 %v1855, %v1682
        %v1857 = vadd.f32 %v1856, %v1688
        %v1858 = vadd.f32 %v1857, %v1694
        %v1859 = vadd.f32 %v1858, %v1700
        %v1860 = vadd.f32 %v1859, %v1706
        %v1861 = vadd.f32 %v1860, %v1712
        %v1862 = vadd.f32 %v1861, %v1718
        %v1863 = vrot.slane %v1862, 4
        %v1864 = vadd.f32 %v1862, %v1863
        %v1865 = vrot.slane %v1864, 2
        %v1866 = vadd.f32 %v1864, %v1865
        %v1867 = vrot.slane %v1866, 1
        %v1868 = vadd.f32 %v1866, %v1867
        %v1869 = vadd.f32 %v1630, %v1636
        %v1870 = vadd.f32 %v1869, %v1642
        %v1871 = vadd.f32 %v1870, %v1648
        %v1872 = vadd.f32 %v1871, %v1654
        %v1873 = vadd.f32 %v1872, %v1660
        %v1874 = vadd.f32 %v1873, %v1666
        %v1875 = vadd.f32 %v1874, %v1672
        %v1876 = vadd.f32 %v1875, %v1678
        %v1877 = vadd.f32 %v1876, %v1684
        %v1878 = vadd.f32 %v1877, %v1690
        %v1879 = vadd.f32 %v1878, %v1696
        %v1880 = vadd.f32 %v1879, %v1702
        %v1881 = vadd.f32 %v1880, %v1708
        %v1882 = vadd.f32 %v1881, %v1714
        %v1883 = vadd.f32 %v1882, %v1720
        %v1884 = vrot.slane %v1883, 4
        %v1885 = vadd.f32 %v1883, %v1884
        %v1886 = vrot.slane %v1885, 2
        %v1887 = vadd.f32 %v1885, %v1886
        %v1888 = vrot.slane %v1887, 1
        %v1889 = vadd.f32 %v1887, %v1888
        %v1890 = vmul.f32 %v1145, %v1145
        %v1891 = vmul.f32 %v1147, %v1147
        %v1892 = vmul.f32 %v1306, %v1306
        %v1893 = vmul.f32 %v1308, %v1308
        %v1894 = vmul.f32 %v1467, %v1467
        %v1895 = vmul.f32 %v1469, %v1469
        %v1896 = vmul.f32 %v1628, %v1628
        %v1897 = vmul.f32 %v1630, %v1630
        %v1898 = vmul.f32 %v1151, %v1151
        %v1899 = vmul.f32 %v1153, %v1153
        %v1900 = vmul.f32 %v1312, %v1312
        %v1901 = vmul.f32 %v1314, %v1314
        %v1902 = vmul.f32 %v1473, %v1473
        %v1903 = vmul.f32 %v1475, %v1475
        %v1904 = vmul.f32 %v1634, %v1634
        %v1905 = vmul.f32 %v1636, %v1636
        %v1906 = vmul.f32 %v1157, %v1157
        %v1907 = vmul.f32 %v1159, %v1159
        %v1908 = vmul.f32 %v1318, %v1318
        %v1909 = vmul.f32 %v1320, %v1320
        %v1910 = vmul.f32 %v1479, %v1479
        %v1911 = vmul.f32 %v1481, %v1481
        %v1912 = vmul.f32 %v1640, %v1640
        %v1913 = vmul.f32 %v1642, %v1642
        %v1914 = vmul.f32 %v1163, %v1163
        %v1915 = vmul.f32 %v1165, %v1165
        %v1916 = vmul.f32 %v1324, %v1324
        %v1917 = vmul.f32 %v1326, %v1326
        %v1918 = vmul.f32 %v1485, %v1485
        %v1919 = vmul.f32 %v1487, %v1487
        %v1920 = vmul.f32 %v1646, %v1646
        %v1921 = vmul.f32 %v1648, %v1648
        %v1922 = vmul.f32 %v1169, %v1169
        %v1923 = vmul.f32 %v1171, %v1171
        %v1924 = vmul.f32 %v1330, %v1330
        %v1925 = vmul.f32 %v1332, %v1332
        %v1926 = vmul.f32 %v1491, %v1491
        %v1927 = vmul.f32 %v1493, %v1493
        %v1928 = vmul.f32 %v1652, %v1652
        %v1929 = vmul.f32 %v1654, %v1654
        %v1930 = vmul.f32 %v1175, %v1175
        %v1931 = vmul.f32 %v1177, %v1177
        %v1932 = vmul.f32 %v1336, %v1336
        %v1933 = vmul.f32 %v1338, %v1338
        %v1934 = vmul.f32 %v1497, %v1497
        %v1935 = vmul.f32 %v1499, %v1499
        %v1936 = vmul.f32 %v1658, %v1658
        %v1937 = vmul.f32 %v1660, %v1660
        %v1938 = vmul.f32 %v1181, %v1181
        %v1939 = vmul.f32 %v1183, %v1183
        %v1940 = vmul.f32 %v1342, %v1342
        %v1941 = vmul.f32 %v1344, %v1344
        %v1942 = vmul.f32 %v1503, %v1503
        %v1943 = vmul.f32 %v1505, %v1505
        %v1944 = vmul.f32 %v1664, %v1664
        %v1945 = vmul.f32 %v1666, %v1666
        %v1946 = vmul.f32 %v1187, %v1187
        %v1947 = vmul.f32 %v1189, %v1189
        %v1948 = vmul.f32 %v1348, %v1348
        %v1949 = vmul.f32 %v1350, %v1350
        %v1950 = vmul.f32 %v1509, %v1509
        %v1951 = vmul.f32 %v1511, %v1511
        %v1952 = vmul.f32 %v1670, %v1670
        %v1953 = vmul.f32 %v1672, %v1672
        %v1954 = vmul.f32 %v1193, %v1193
        %v1955 = vmul.f32 %v1195, %v1195
        %v1956 = vmul.f32 %v1354, %v1354
        %v1957 = vmul.f32 %v1356, %v1356
        %v1958 = vmul.f32 %v1515, %v1515
        %v1959 = vmul.f32 %v1517, %v1517
        %v1960 = vmul.f32 %v1676, %v1676
        %v1961 = vmul.f32 %v1678, %v1678
        %v1962 = vmul.f32 %v1199, %v1199
        %v1963 = vmul.f32 %v1201, %v1201
        %v1964 = vmul.f32 %v1360, %v1360
        %v1965 = vmul.f32 %v1362, %v1362
        %v1966 = vmul.f32 %v1521, %v1521
        %v1967 = vmul.f32 %v1523, %v1523
        %v1968 = vmul.f32 %v1682, %v1682
        %v1969 = vmul.f32 %v1684, %v1684
        %v1970 = vmul.f32 %v1205, %v1205
        %v1971 = vmul.f32 %v1207, %v1207
        %v1972 = vmul.f32 %v1366, %v1366
        %v1973 = vmul.f32 %v1368, %v1368
        %v1974 = vmul.f32 %v1527, %v1527
        %v1975 = vmul.f32 %v1529, %v1529
        %v1976 = vmul.f32 %v1688, %v1688
        %v1977 = vmul.f32 %v1690, %v1690
        %v1978 = vmul.f32 %v1211, %v1211
        %v1979 = vmul.f32 %v1213, %v1213
        %v1980 = vmul.f32 %v1372, %v1372
        %v1981 = vmul.f32 %v1374, %v1374
        %v1982 = vmul.f32 %v1533, %v1533
        %v1983 = vmul.f32 %v1535, %v1535
        %v1984 = vmul.f32 %v1694, %v1694
        %v1985 = vmul.f32 %v1696, %v1696
        %v1986 = vmul.f32 %v1217, %v1217
        %v1987 = vmul.f32 %v1219, %v1219
        %v1988 = vmul.f32 %v1378, %v1378
        %v1989 = vmul.f32 %v1380, %v1380
        %v1990 = vmul.f32 %v1539, %v1539
        %v1991 = vmul.f32 %v1541, %v1541
        %v1992 = vmul.f32 %v1700, %v1700
        %v1993 = vmul.f32 %v1702, %v1702
        %v1994 = vmul.f32 %v1223, %v1223
        %v1995 = vmul.f32 %v1225, %v1225
        %v1996 = vmul.f32 %v1384, %v1384
        %v1997 = vmul.f32 %v1386, %v1386
        %v1998 = vmul.f32 %v1545, %v1545
        %v1999 = vmul.f32 %v1547, %v1547
        %v2000 = vmul.f32 %v1706, %v1706
        %v2001 = vmul.f32 %v1708, %v1708
        %v2002 = vmul.f32 %v1229, %v1229
        %v2003 = vmul.f32 %v1231, %v1231
        %v2004 = vmul.f32 %v1390, %v1390
        %v2005 = vmul.f32 %v1392, %v1392
        %v2006 = vmul.f32 %v1551, %v1551
        %v2007 = vmul.f32 %v1553, %v1553
        %v2008 = vmul.f32 %v1712, %v1712
        %v2009 = vmul.f32 %v1714, %v1714
        %v2010 = vmul.f32 %v1235, %v1235
        %v2011 = vmul.f32 %v1237, %v1237
        %v2012 = vmul.f32 %v1396, %v1396
        %v2013 = vmul.f32 %v1398, %v1398
        %v2014 = vmul.f32 %v1557, %v1557
        %v2015 = vmul.f32 %v1559, %v1559
        %v2016 = vmul.f32 %v1718, %v1718
        %v2017 = vmul.f32 %v1720, %v1720
        %v2018 = vadd.f32 %v1890, %v1898
        %v2019 = vadd.f32 %v2018, %v1906
        %v2020 = vadd.f32 %v2019, %v1914
        %v2021 = vadd.f32 %v2020, %v1922
        %v2022 = vadd.f32 %v2021, %v1930
        %v2023 = vadd.f32 %v2022, %v1938
        %v2024 = vadd.f32 %v2023, %v1946
        %v2025 = vadd.f32 %v2024, %v1954
        %v2026 = vadd.f32 %v2025, %v1962
        %v2027 = vadd.f32 %v2026, %v1970
        %v2028 = vadd.f32 %v2027, %v1978
        %v2029 = vadd.f32 %v2028, %v1986
        %v2030 = vadd.f32 %v2029, %v1994
        %v2031 = vadd.f32 %v2030, %v2002
        %v2032 = vadd.f32 %v2031, %v2010
        %v2033 = vrot.slane %v2032, 4
        %v2034 = vadd.f32 %v2032, %v2033
        %v2035 = vrot.slane %v2034, 2
        %v2036 = vadd.f32 %v2034, %v2035
        %v2037 = vrot.slane %v2036, 1
        %v2038 = vadd.f32 %v2036, %v2037
        %v2039 = vadd.f32 %v1891, %v1899
        %v2040 = vadd.f32 %v2039, %v1907
        %v2041 = vadd.f32 %v2040, %v1915
        %v2042 = vadd.f32 %v2041, %v1923
        %v2043 = vadd.f32 %v2042, %v1931
        %v2044 = vadd.f32 %v2043, %v1939
        %v2045 = vadd.f32 %v2044, %v1947
        %v2046 = vadd.f32 %v2045, %v1955
        %v2047 = vadd.f32 %v2046, %v1963
        %v2048 = vadd.f32 %v2047, %v1971
        %v2049 = vadd.f32 %v2048, %v1979
        %v2050 = vadd.f32 %v2049, %v1987
        %v2051 = vadd.f32 %v2050, %v1995
        %v2052 = vadd.f32 %v2051, %v2003
        %v2053 = vadd.f32 %v2052, %v2011
        %v2054 = vrot.slane %v2053, 4
        %v2055 = vadd.f32 %v2053, %v2054
        %v2056 = vrot.slane %v2055, 2
        %v2057 = vadd.f32 %v2055, %v2056
        %v2058 = vrot.slane %v2057, 1
        %v2059 = vadd.f32 %v2057, %v2058
        %v2060 = vadd.f32 %v1892, %v1900
        %v2061 = vadd.f32 %v2060, %v1908
        %v2062 = vadd.f32 %v2061, %v1916
        %v2063 = vadd.f32 %v2062, %v1924
        %v2064 = vadd.f32 %v2063, %v1932
        %v2065 = vadd.f32 %v2064, %v1940
        %v2066 = vadd.f32 %v2065, %v1948
        %v2067 = vadd.f32 %v2066, %v1956
        %v2068 = vadd.f32 %v2067, %v1964
        %v2069 = vadd.f32 %v2068, %v1972
        %v2070 = vadd.f32 %v2069, %v1980
        %v2071 = vadd.f32 %v2070, %v1988
        %v2072 = vadd.f32 %v2071, %v1996
        %v2073 = vadd.f32 %v2072, %v2004
        %v2074 = vadd.f32 %v2073, %v2012
        %v2075 = vrot.slane %v2074, 4
        %v2076 = vadd.f32 %v2074, %v2075
        %v2077 = vrot.slane %v2076, 2
        %v2078 = vadd.f32 %v2076, %v2077
        %v2079 = vrot.slane %v2078, 1
        %v2080 = vadd.f32 %v2078, %v2079
        %v2081 = vadd.f32 %v1893, %v1901
        %v2082 = vadd.f32 %v2081, %v1909
        %v2083 = vadd.f32 %v2082, %v1917
        %v2084 = vadd.f32 %v2083, %v1925
        %v2085 = vadd.f32 %v2084, %v1933
        %v2086 = vadd.f32 %v2085, %v1941
        %v2087 = vadd.f32 %v2086, %v1949
        %v2088 = vadd.f32 %v2087, %v1957
        %v2089 = vadd.f32 %v2088, %v1965
        %v2090 = vadd.f32 %v2089, %v1973
        %v2091 = vadd.f32 %v2090, %v1981
        %v2092 = vadd.f32 %v2091, %v1989
        %v2093 = vadd.f32 %v2092, %v1997
        %v2094 = vadd.f32 %v2093, %v2005
        %v2095 = vadd.f32 %v2094, %v2013
        %v2096 = vrot.slane %v2095, 4
        %v2097 = vadd.f32 %v2095, %v2096
        %v2098 = vrot.slane %v2097, 2
        %v2099 = vadd.f32 %v2097, %v2098
        %v2100 = vrot.slane %v2099, 1
        %v2101 = vadd.f32 %v2099, %v2100
        %v2102 = vadd.f32 %v1894, %v1902
        %v2103 = vadd.f32 %v2102, %v1910
        %v2104 = vadd.f32 %v2103, %v1918
        %v2105 = vadd.f32 %v2104, %v1926
        %v2106 = vadd.f32 %v2105, %v1934
        %v2107 = vadd.f32 %v2106, %v1942
        %v2108 = vadd.f32 %v2107, %v1950
        %v2109 = vadd.f32 %v2108, %v1958
        %v2110 = vadd.f32 %v2109, %v1966
        %v2111 = vadd.f32 %v2110, %v1974
        %v2112 = vadd.f32 %v2111, %v1982
        %v2113 = vadd.f32 %v2112, %v1990
        %v2114 = vadd.f32 %v2113, %v1998
        %v2115 = vadd.f32 %v2114, %v2006
        %v2116 = vadd.f32 %v2115, %v2014
        %v2117 = vrot.slane %v2116, 4
        %v2118 = vadd.f32 %v2116, %v2117
        %v2119 = vrot.slane %v2118, 2
        %v2120 = vadd.f32 %v2118, %v2119
        %v2121 = vrot.slane %v2120, 1
        %v2122 = vadd.f32 %v2120, %v2121
        %v2123 = vadd.f32 %v1895, %v1903
        %v2124 = vadd.f32 %v2123, %v1911
        %v2125 = vadd.f32 %v2124, %v1919
        %v2126 = vadd.f32 %v2125, %v1927
        %v2127 = vadd.f32 %v2126, %v1935
        %v2128 = vadd.f32 %v2127, %v1943
        %v2129 = vadd.f32 %v2128, %v1951
        %v2130 = vadd.f32 %v2129, %v1959
        %v2131 = vadd.f32 %v2130, %v1967
        %v2132 = vadd.f32 %v2131, %v1975
        %v2133 = vadd.f32 %v2132, %v1983
        %v2134 = vadd.f32 %v2133, %v1991
        %v2135 = vadd.f32 %v2134, %v1999
        %v2136 = vadd.f32 %v2135, %v2007
        %v2137 = vadd.f32 %v2136, %v2015
        %v2138 = vrot.slane %v2137, 4
        %v2139 = vadd.f32 %v2137, %v2138
        %v2140 = vrot.slane %v2139, 2
        %v2141 = vadd.f32 %v2139, %v2140
        %v2142 = vrot.slane %v2141, 1
        %v2143 = vadd.f32 %v2141, %v2142
        %v2144 = vadd.f32 %v1896, %v1904
        %v2145 = vadd.f32 %v2144, %v1912
        %v2146 = vadd.f32 %v2145, %v1920
        %v2147 = vadd.f32 %v2146, %v1928
        %v2148 = vadd.f32 %v2147, %v1936
        %v2149 = vadd.f32 %v2148, %v1944
        %v2150 = vadd.f32 %v2149, %v1952
        %v2151 = vadd.f32 %v2150, %v1960
        %v2152 = vadd.f32 %v2151, %v1968
        %v2153 = vadd.f32 %v2152, %v1976
        %v2154 = vadd.f32 %v2153, %v1984
        %v2155 = vadd.f32 %v2154, %v1992
        %v2156 = vadd.f32 %v2155, %v2000
        %v2157 = vadd.f32 %v2156, %v2008
        %v2158 = vadd.f32 %v2157, %v2016
        %v2159 = vrot.slane %v2158, 4
        %v2160 = vadd.f32 %v2158, %v2159
        %v2161 = vrot.slane %v2160, 2
        %v2162 = vadd.f32 %v2160, %v2161
        %v2163 = vrot.slane %v2162, 1
        %v2164 = vadd.f32 %v2162, %v2163
        %v2165 = vadd.f32 %v1897, %v1905
        %v2166 = vadd.f32 %v2165, %v1913
        %v2167 = vadd.f32 %v2166, %v1921
        %v2168 = vadd.f32 %v2167, %v1929
        %v2169 = vadd.f32 %v2168, %v1937
        %v2170 = vadd.f32 %v2169, %v1945
        %v2171 = vadd.f32 %v2170, %v1953
        %v2172 = vadd.f32 %v2171, %v1961
        %v2173 = vadd.f32 %v2172, %v1969
        %v2174 = vadd.f32 %v2173, %v1977
        %v2175 = vadd.f32 %v2174, %v1985
        %v2176 = vadd.f32 %v2175, %v1993
        %v2177 = vadd.f32 %v2176, %v2001
        %v2178 = vadd.f32 %v2177, %v2009
        %v2179 = vadd.f32 %v2178, %v2017
        %v2180 = vrot.slane %v2179, 4
        %v2181 = vadd.f32 %v2179, %v2180
        %v2182 = vrot.slane %v2181, 2
        %v2183 = vadd.f32 %v2181, %v2182
        %v2184 = vrot.slane %v2183, 1
        %v2185 = vadd.f32 %v2183, %v2184
        %vm2186 = vcmask 1040384
        %v2187 = vsel %vm2186, %v1742, %v2038
        %v2188 = vsel %vm2186, %v1763, %v2059
        %v2189 = vsel %vm2186, %v1784, %v2080
        %v2190 = vsel %vm2186, %v1805, %v2101
        %v2191 = vsel %vm2186, %v1826, %v2122
        %v2192 = vsel %vm2186, %v1847, %v2143
        %v2193 = vsel %vm2186, %v1868, %v2164
        %v2194 = vsel %vm2186, %v1889, %v2185
        %v2203 = vcombine.low %v2187, %v2188
        %v2204 = vcombine.low %v2189, %v2190
        %v2206 = vunpack.c.l.s4 1983009808
        %v2207 = vunpack.c.0.s8 %v2206
        %v2208 = vlaneseq
        %v2209 = vshrl.u32 %v2208, 7
        %v2210 = vsub.s32 %v2207, %v2209
        %v2211 = vrot.slane %v2203, %v2210
        %v2213 = vunpack.c.l.s4 1983009808
        %v2214 = vunpack.c.0.s8 %v2213
        %v2215 = vlaneseq
        %v2216 = vshrl.u32 %v2215, 7
        %v2217 = vsub.s32 %v2214, %v2216
        %v2218 = vrot.slane %v2204, %v2217
        %v2219 = vcombine.low %v2211, %v2218
        %v2220 = vcombine.low %v2191, %v2192
        %v2221 = vcombine.low %v2193, %v2194
        %v2223 = vunpack.c.l.s4 1983009808
        %v2224 = vunpack.c.0.s8 %v2223
        %v2225 = vlaneseq
        %v2226 = vshrl.u32 %v2225, 7
        %v2227 = vsub.s32 %v2224, %v2226
        %v2228 = vrot.slane %v2220, %v2227
        %v2230 = vunpack.c.l.s4 1983009808
        %v2231 = vunpack.c.0.s8 %v2230
        %v2232 = vlaneseq
        %v2233 = vshrl.u32 %v2232, 7
        %v2234 = vsub.s32 %v2231, %v2233
        %v2235 = vrot.slane %v2221, %v2234
        %v2236 = vcombine.low %v2228, %v2235
        %2239 = vst [vmem:[%s404] sm:$0xff] %v2219
        %2240 = vst [vmem:[%s404 + $0x8] sm:$0xff] %v2236
        %v2241 = vmax.f32 %v1145, %v1151
        %v2242 = vmax.f32 %v2241, %v1157
        %v2243 = vmax.f32 %v2242, %v1163
        %v2244 = vmax.f32 %v2243, %v1169
        %v2245 = vmax.f32 %v2244, %v1175
        %v2246 = vmax.f32 %v2245, %v1181
        %v2247 = vmax.f32 %v2246, %v1187
        %v2248 = vmax.f32 %v2247, %v1193
        %v2249 = vmax.f32 %v2248, %v1199
        %v2250 = vmax.f32 %v2249, %v1205
        %v2251 = vmax.f32 %v2250, %v1211
        %v2252 = vmax.f32 %v2251, %v1217
        %v2253 = vmax.f32 %v2252, %v1223
        %v2254 = vmax.f32 %v2253, %v1229
        %v2255 = vmax.f32 %v2254, %v1235
        %v2256 = vrot.slane %v2255, 4
        %v2257 = vmax.f32 %v2255, %v2256
        %v2258 = vrot.slane %v2257, 2
        %v2259 = vmax.f32 %v2257, %v2258
        %v2260 = vrot.slane %v2259, 1
        %v2261 = vmax.f32 %v2259, %v2260
        %v2262 = vmax.f32 %v1147, %v1153
        %v2263 = vmax.f32 %v2262, %v1159
        %v2264 = vmax.f32 %v2263, %v1165
        %v2265 = vmax.f32 %v2264, %v1171
        %v2266 = vmax.f32 %v2265, %v1177
        %v2267 = vmax.f32 %v2266, %v1183
        %v2268 = vmax.f32 %v2267, %v1189
        %v2269 = vmax.f32 %v2268, %v1195
        %v2270 = vmax.f32 %v2269, %v1201
        %v2271 = vmax.f32 %v2270, %v1207
        %v2272 = vmax.f32 %v2271, %v1213
        %v2273 = vmax.f32 %v2272, %v1219
        %v2274 = vmax.f32 %v2273, %v1225
        %v2275 = vmax.f32 %v2274, %v1231
        %v2276 = vmax.f32 %v2275, %v1237
        %v2277 = vrot.slane %v2276, 4
        %v2278 = vmax.f32 %v2276, %v2277
        %v2279 = vrot.slane %v2278, 2
        %v2280 = vmax.f32 %v2278, %v2279
        %v2281 = vrot.slane %v2280, 1
        %v2282 = vmax.f32 %v2280, %v2281
        %v2283 = vmax.f32 %v1306, %v1312
        %v2284 = vmax.f32 %v2283, %v1318
        %v2285 = vmax.f32 %v2284, %v1324
        %v2286 = vmax.f32 %v2285, %v1330
        %v2287 = vmax.f32 %v2286, %v1336
        %v2288 = vmax.f32 %v2287, %v1342
        %v2289 = vmax.f32 %v2288, %v1348
        %v2290 = vmax.f32 %v2289, %v1354
        %v2291 = vmax.f32 %v2290, %v1360
        %v2292 = vmax.f32 %v2291, %v1366
        %v2293 = vmax.f32 %v2292, %v1372
        %v2294 = vmax.f32 %v2293, %v1378
        %v2295 = vmax.f32 %v2294, %v1384
        %v2296 = vmax.f32 %v2295, %v1390
        %v2297 = vmax.f32 %v2296, %v1396
        %v2298 = vrot.slane %v2297, 4
        %v2299 = vmax.f32 %v2297, %v2298
        %v2300 = vrot.slane %v2299, 2
        %v2301 = vmax.f32 %v2299, %v2300
        %v2302 = vrot.slane %v2301, 1
        %v2303 = vmax.f32 %v2301, %v2302
        %v2304 = vmax.f32 %v1308, %v1314
        %v2305 = vmax.f32 %v2304, %v1320
        %v2306 = vmax.f32 %v2305, %v1326
        %v2307 = vmax.f32 %v2306, %v1332
        %v2308 = vmax.f32 %v2307, %v1338
        %v2309 = vmax.f32 %v2308, %v1344
        %v2310 = vmax.f32 %v2309, %v1350
        %v2311 = vmax.f32 %v2310, %v1356
        %v2312 = vmax.f32 %v2311, %v1362
        %v2313 = vmax.f32 %v2312, %v1368
        %v2314 = vmax.f32 %v2313, %v1374
        %v2315 = vmax.f32 %v2314, %v1380
        %v2316 = vmax.f32 %v2315, %v1386
        %v2317 = vmax.f32 %v2316, %v1392
        %v2318 = vmax.f32 %v2317, %v1398
        %v2319 = vrot.slane %v2318, 4
        %v2320 = vmax.f32 %v2318, %v2319
        %v2321 = vrot.slane %v2320, 2
        %v2322 = vmax.f32 %v2320, %v2321
        %v2323 = vrot.slane %v2322, 1
        %v2324 = vmax.f32 %v2322, %v2323
        %v2325 = vmax.f32 %v1467, %v1473
        %v2326 = vmax.f32 %v2325, %v1479
        %v2327 = vmax.f32 %v2326, %v1485
        %v2328 = vmax.f32 %v2327, %v1491
        %v2329 = vmax.f32 %v2328, %v1497
        %v2330 = vmax.f32 %v2329, %v1503
        %v2331 = vmax.f32 %v2330, %v1509
        %v2332 = vmax.f32 %v2331, %v1515
        %v2333 = vmax.f32 %v2332, %v1521
        %v2334 = vmax.f32 %v2333, %v1527
        %v2335 = vmax.f32 %v2334, %v1533
        %v2336 = vmax.f32 %v2335, %v1539
        %v2337 = vmax.f32 %v2336, %v1545
        %v2338 = vmax.f32 %v2337, %v1551
        %v2339 = vmax.f32 %v2338, %v1557
        %v2340 = vrot.slane %v2339, 4
        %v2341 = vmax.f32 %v2339, %v2340
        %v2342 = vrot.slane %v2341, 2
        %v2343 = vmax.f32 %v2341, %v2342
        %v2344 = vrot.slane %v2343, 1
        %v2345 = vmax.f32 %v2343, %v2344
        %v2346 = vmax.f32 %v1469, %v1475
        %v2347 = vmax.f32 %v2346, %v1481
        %v2348 = vmax.f32 %v2347, %v1487
        %v2349 = vmax.f32 %v2348, %v1493
        %v2350 = vmax.f32 %v2349, %v1499
        %v2351 = vmax.f32 %v2350, %v1505
        %v2352 = vmax.f32 %v2351, %v1511
        %v2353 = vmax.f32 %v2352, %v1517
        %v2354 = vmax.f32 %v2353, %v1523
        %v2355 = vmax.f32 %v2354, %v1529
        %v2356 = vmax.f32 %v2355, %v1535
        %v2357 = vmax.f32 %v2356, %v1541
        %v2358 = vmax.f32 %v2357, %v1547
        %v2359 = vmax.f32 %v2358, %v1553
        %v2360 = vmax.f32 %v2359, %v1559
        %v2361 = vrot.slane %v2360, 4
        %v2362 = vmax.f32 %v2360, %v2361
        %v2363 = vrot.slane %v2362, 2
        %v2364 = vmax.f32 %v2362, %v2363
        %v2365 = vrot.slane %v2364, 1
        %v2366 = vmax.f32 %v2364, %v2365
        %v2367 = vmax.f32 %v1628, %v1634
        %v2368 = vmax.f32 %v2367, %v1640
        %v2369 = vmax.f32 %v2368, %v1646
        %v2370 = vmax.f32 %v2369, %v1652
        %v2371 = vmax.f32 %v2370, %v1658
        %v2372 = vmax.f32 %v2371, %v1664
        %v2373 = vmax.f32 %v2372, %v1670
        %v2374 = vmax.f32 %v2373, %v1676
        %v2375 = vmax.f32 %v2374, %v1682
        %v2376 = vmax.f32 %v2375, %v1688
        %v2377 = vmax.f32 %v2376, %v1694
        %v2378 = vmax.f32 %v2377, %v1700
        %v2379 = vmax.f32 %v2378, %v1706
        %v2380 = vmax.f32 %v2379, %v1712
        %v2381 = vmax.f32 %v2380, %v1718
        %v2382 = vrot.slane %v2381, 4
        %v2383 = vmax.f32 %v2381, %v2382
        %v2384 = vrot.slane %v2383, 2
        %v2385 = vmax.f32 %v2383, %v2384
        %v2386 = vrot.slane %v2385, 1
        %v2387 = vmax.f32 %v2385, %v2386
        %v2388 = vmax.f32 %v1630, %v1636
        %v2389 = vmax.f32 %v2388, %v1642
        %v2390 = vmax.f32 %v2389, %v1648
        %v2391 = vmax.f32 %v2390, %v1654
        %v2392 = vmax.f32 %v2391, %v1660
        %v2393 = vmax.f32 %v2392, %v1666
        %v2394 = vmax.f32 %v2393, %v1672
        %v2395 = vmax.f32 %v2394, %v1678
        %v2396 = vmax.f32 %v2395, %v1684
        %v2397 = vmax.f32 %v2396, %v1690
        %v2398 = vmax.f32 %v2397, %v1696
        %v2399 = vmax.f32 %v2398, %v1702
        %v2400 = vmax.f32 %v2399, %v1708
        %v2401 = vmax.f32 %v2400, %v1714
        %v2402 = vmax.f32 %v2401, %v1720
        %v2403 = vrot.slane %v2402, 4
        %v2404 = vmax.f32 %v2402, %v2403
        %v2405 = vrot.slane %v2404, 2
        %v2406 = vmax.f32 %v2404, %v2405
        %v2407 = vrot.slane %v2406, 1
        %v2408 = vmax.f32 %v2406, %v2407
        %v2409 = vmin.f32 %v1145, %v1151
        %v2410 = vmin.f32 %v2409, %v1157
        %v2411 = vmin.f32 %v2410, %v1163
        %v2412 = vmin.f32 %v2411, %v1169
        %v2413 = vmin.f32 %v2412, %v1175
        %v2414 = vmin.f32 %v2413, %v1181
        %v2415 = vmin.f32 %v2414, %v1187
        %v2416 = vmin.f32 %v2415, %v1193
        %v2417 = vmin.f32 %v2416, %v1199
        %v2418 = vmin.f32 %v2417, %v1205
        %v2419 = vmin.f32 %v2418, %v1211
        %v2420 = vmin.f32 %v2419, %v1217
        %v2421 = vmin.f32 %v2420, %v1223
        %v2422 = vmin.f32 %v2421, %v1229
        %v2423 = vmin.f32 %v2422, %v1235
        %v2424 = vrot.slane %v2423, 4
        %v2425 = vmin.f32 %v2423, %v2424
        %v2426 = vrot.slane %v2425, 2
        %v2427 = vmin.f32 %v2425, %v2426
        %v2428 = vrot.slane %v2427, 1
        %v2429 = vmin.f32 %v2427, %v2428
        %v2430 = vmin.f32 %v1147, %v1153
        %v2431 = vmin.f32 %v2430, %v1159
        %v2432 = vmin.f32 %v2431, %v1165
        %v2433 = vmin.f32 %v2432, %v1171
        %v2434 = vmin.f32 %v2433, %v1177
        %v2435 = vmin.f32 %v2434, %v1183
        %v2436 = vmin.f32 %v2435, %v1189
        %v2437 = vmin.f32 %v2436, %v1195
        %v2438 = vmin.f32 %v2437, %v1201
        %v2439 = vmin.f32 %v2438, %v1207
        %v2440 = vmin.f32 %v2439, %v1213
        %v2441 = vmin.f32 %v2440, %v1219
        %v2442 = vmin.f32 %v2441, %v1225
        %v2443 = vmin.f32 %v2442, %v1231
        %v2444 = vmin.f32 %v2443, %v1237
        %v2445 = vrot.slane %v2444, 4
        %v2446 = vmin.f32 %v2444, %v2445
        %v2447 = vrot.slane %v2446, 2
        %v2448 = vmin.f32 %v2446, %v2447
        %v2449 = vrot.slane %v2448, 1
        %v2450 = vmin.f32 %v2448, %v2449
        %v2451 = vmin.f32 %v1306, %v1312
        %v2452 = vmin.f32 %v2451, %v1318
        %v2453 = vmin.f32 %v2452, %v1324
        %v2454 = vmin.f32 %v2453, %v1330
        %v2455 = vmin.f32 %v2454, %v1336
        %v2456 = vmin.f32 %v2455, %v1342
        %v2457 = vmin.f32 %v2456, %v1348
        %v2458 = vmin.f32 %v2457, %v1354
        %v2459 = vmin.f32 %v2458, %v1360
        %v2460 = vmin.f32 %v2459, %v1366
        %v2461 = vmin.f32 %v2460, %v1372
        %v2462 = vmin.f32 %v2461, %v1378
        %v2463 = vmin.f32 %v2462, %v1384
        %v2464 = vmin.f32 %v2463, %v1390
        %v2465 = vmin.f32 %v2464, %v1396
        %v2466 = vrot.slane %v2465, 4
        %v2467 = vmin.f32 %v2465, %v2466
        %v2468 = vrot.slane %v2467, 2
        %v2469 = vmin.f32 %v2467, %v2468
        %v2470 = vrot.slane %v2469, 1
        %v2471 = vmin.f32 %v2469, %v2470
        %v2472 = vmin.f32 %v1308, %v1314
        %v2473 = vmin.f32 %v2472, %v1320
        %v2474 = vmin.f32 %v2473, %v1326
        %v2475 = vmin.f32 %v2474, %v1332
        %v2476 = vmin.f32 %v2475, %v1338
        %v2477 = vmin.f32 %v2476, %v1344
        %v2478 = vmin.f32 %v2477, %v1350
        %v2479 = vmin.f32 %v2478, %v1356
        %v2480 = vmin.f32 %v2479, %v1362
        %v2481 = vmin.f32 %v2480, %v1368
        %v2482 = vmin.f32 %v2481, %v1374
        %v2483 = vmin.f32 %v2482, %v1380
        %v2484 = vmin.f32 %v2483, %v1386
        %v2485 = vmin.f32 %v2484, %v1392
        %v2486 = vmin.f32 %v2485, %v1398
        %v2487 = vrot.slane %v2486, 4
        %v2488 = vmin.f32 %v2486, %v2487
        %v2489 = vrot.slane %v2488, 2
        %v2490 = vmin.f32 %v2488, %v2489
        %v2491 = vrot.slane %v2490, 1
        %v2492 = vmin.f32 %v2490, %v2491
        %v2493 = vmin.f32 %v1467, %v1473
        %v2494 = vmin.f32 %v2493, %v1479
        %v2495 = vmin.f32 %v2494, %v1485
        %v2496 = vmin.f32 %v2495, %v1491
        %v2497 = vmin.f32 %v2496, %v1497
        %v2498 = vmin.f32 %v2497, %v1503
        %v2499 = vmin.f32 %v2498, %v1509
        %v2500 = vmin.f32 %v2499, %v1515
        %v2501 = vmin.f32 %v2500, %v1521
        %v2502 = vmin.f32 %v2501, %v1527
        %v2503 = vmin.f32 %v2502, %v1533
        %v2504 = vmin.f32 %v2503, %v1539
        %v2505 = vmin.f32 %v2504, %v1545
        %v2506 = vmin.f32 %v2505, %v1551
        %v2507 = vmin.f32 %v2506, %v1557
        %v2508 = vrot.slane %v2507, 4
        %v2509 = vmin.f32 %v2507, %v2508
        %v2510 = vrot.slane %v2509, 2
        %v2511 = vmin.f32 %v2509, %v2510
        %v2512 = vrot.slane %v2511, 1
        %v2513 = vmin.f32 %v2511, %v2512
        %v2514 = vmin.f32 %v1469, %v1475
        %v2515 = vmin.f32 %v2514, %v1481
        %v2516 = vmin.f32 %v2515, %v1487
        %v2517 = vmin.f32 %v2516, %v1493
        %v2518 = vmin.f32 %v2517, %v1499
        %v2519 = vmin.f32 %v2518, %v1505
        %v2520 = vmin.f32 %v2519, %v1511
        %v2521 = vmin.f32 %v2520, %v1517
        %v2522 = vmin.f32 %v2521, %v1523
        %v2523 = vmin.f32 %v2522, %v1529
        %v2524 = vmin.f32 %v2523, %v1535
        %v2525 = vmin.f32 %v2524, %v1541
        %v2526 = vmin.f32 %v2525, %v1547
        %v2527 = vmin.f32 %v2526, %v1553
        %v2528 = vmin.f32 %v2527, %v1559
        %v2529 = vrot.slane %v2528, 4
        %v2530 = vmin.f32 %v2528, %v2529
        %v2531 = vrot.slane %v2530, 2
        %v2532 = vmin.f32 %v2530, %v2531
        %v2533 = vrot.slane %v2532, 1
        %v2534 = vmin.f32 %v2532, %v2533
        %v2535 = vmin.f32 %v1628, %v1634
        %v2536 = vmin.f32 %v2535, %v1640
        %v2537 = vmin.f32 %v2536, %v1646
        %v2538 = vmin.f32 %v2537, %v1652
        %v2539 = vmin.f32 %v2538, %v1658
        %v2540 = vmin.f32 %v2539, %v1664
        %v2541 = vmin.f32 %v2540, %v1670
        %v2542 = vmin.f32 %v2541, %v1676
        %v2543 = vmin.f32 %v2542, %v1682
        %v2544 = vmin.f32 %v2543, %v1688
        %v2545 = vmin.f32 %v2544, %v1694
        %v2546 = vmin.f32 %v2545, %v1700
        %v2547 = vmin.f32 %v2546, %v1706
        %v2548 = vmin.f32 %v2547, %v1712
        %v2549 = vmin.f32 %v2548, %v1718
        %v2550 = vrot.slane %v2549, 4
        %v2551 = vmin.f32 %v2549, %v2550
        %v2552 = vrot.slane %v2551, 2
        %v2553 = vmin.f32 %v2551, %v2552
        %v2554 = vrot.slane %v2553, 1
        %v2555 = vmin.f32 %v2553, %v2554
        %v2556 = vmin.f32 %v1630, %v1636
        %v2557 = vmin.f32 %v2556, %v1642
        %v2558 = vmin.f32 %v2557, %v1648
        %v2559 = vmin.f32 %v2558, %v1654
        %v2560 = vmin.f32 %v2559, %v1660
        %v2561 = vmin.f32 %v2560, %v1666
        %v2562 = vmin.f32 %v2561, %v1672
        %v2563 = vmin.f32 %v2562, %v1678
        %v2564 = vmin.f32 %v2563, %v1684
        %v2565 = vmin.f32 %v2564, %v1690
        %v2566 = vmin.f32 %v2565, %v1696
        %v2567 = vmin.f32 %v2566, %v1702
        %v2568 = vmin.f32 %v2567, %v1708
        %v2569 = vmin.f32 %v2568, %v1714
        %v2570 = vmin.f32 %v2569, %v1720
        %v2571 = vrot.slane %v2570, 4
        %v2572 = vmin.f32 %v2570, %v2571
        %v2573 = vrot.slane %v2572, 2
        %v2574 = vmin.f32 %v2572, %v2573
        %v2575 = vrot.slane %v2574, 1
        %v2576 = vmin.f32 %v2574, %v2575
        %v2585 = vcombine.low %v2261, %v2282
        %v2586 = vcombine.low %v2303, %v2324
        %v2587 = vcombine.low %v2345, %v2366
        %v2588 = vcombine.low %v2387, %v2408
        %v2590 = vunpack.c.l.s4 1966171168
        %v2591 = vunpack.c.0.s8 %v2590
        %v2592 = vlaneseq
        %v2593 = vshrl.u32 %v2592, 7
        %v2594 = vsub.s32 %v2591, %v2593
        %v2595 = vrot.slane %v2585, %v2594
        %v2597 = vunpack.c.l.s4 1966171168
        %v2598 = vunpack.c.0.s8 %v2597
        %v2599 = vlaneseq
        %v2600 = vshrl.u32 %v2599, 7
        %v2601 = vsub.s32 %v2598, %v2600
        %v2602 = vrot.slane %v2586, %v2601
        %v2604 = vunpack.c.l.s4 1966171168
        %v2605 = vunpack.c.0.s8 %v2604
        %v2606 = vlaneseq
        %v2607 = vshrl.u32 %v2606, 7
        %v2608 = vsub.s32 %v2605, %v2607
        %v2609 = vrot.slane %v2587, %v2608
        %v2611 = vunpack.c.l.s4 1966171168
        %v2612 = vunpack.c.0.s8 %v2611
        %v2613 = vlaneseq
        %v2614 = vshrl.u32 %v2613, 7
        %v2615 = vsub.s32 %v2612, %v2614
        %v2616 = vrot.slane %v2588, %v2615
        %v2617 = vcombine.low %v2595, %v2602
        %v2618 = vcombine.low %v2609, %v2616
        %v2620 = vunpack.c.l.s4 1966171168
        %v2621 = vunpack.c.0.s8 %v2620
        %v2622 = vlaneseq
        %v2623 = vshrl.u32 %v2622, 7
        %v2624 = vsub.s32 %v2621, %v2623
        %v2625 = vrot.slane %v2617, %v2624
        %v2627 = vunpack.c.l.s4 1966171168
        %v2628 = vunpack.c.0.s8 %v2627
        %v2629 = vlaneseq
        %v2630 = vshrl.u32 %v2629, 7
        %v2631 = vsub.s32 %v2628, %v2630
        %v2632 = vrot.slane %v2618, %v2631
        %v2633 = vcombine.low %v2625, %v2632
        %2635 = vst [vmem:[%s408] sm:$0xff] %v2633
        %v2644 = vcombine.low %v2429, %v2450
        %v2645 = vcombine.low %v2471, %v2492
        %v2646 = vcombine.low %v2513, %v2534
        %v2647 = vcombine.low %v2555, %v2576
        %v2649 = vunpack.c.l.s4 1966171168
        %v2650 = vunpack.c.0.s8 %v2649
        %v2651 = vlaneseq
        %v2652 = vshrl.u32 %v2651, 7
        %v2653 = vsub.s32 %v2650, %v2652
        %v2654 = vrot.slane %v2644, %v2653
        %v2656 = vunpack.c.l.s4 1966171168
        %v2657 = vunpack.c.0.s8 %v2656
        %v2658 = vlaneseq
        %v2659 = vshrl.u32 %v2658, 7
        %v2660 = vsub.s32 %v2657, %v2659
        %v2661 = vrot.slane %v2645, %v2660
        %v2663 = vunpack.c.l.s4 1966171168
        %v2664 = vunpack.c.0.s8 %v2663
        %v2665 = vlaneseq
        %v2666 = vshrl.u32 %v2665, 7
        %v2667 = vsub.s32 %v2664, %v2666
        %v2668 = vrot.slane %v2646, %v2667
        %v2670 = vunpack.c.l.s4 1966171168
        %v2671 = vunpack.c.0.s8 %v2670
        %v2672 = vlaneseq
        %v2673 = vshrl.u32 %v2672, 7
        %v2674 = vsub.s32 %v2671, %v2673
        %v2675 = vrot.slane %v2647, %v2674
        %v2676 = vcombine.low %v2654, %v2661
        %v2677 = vcombine.low %v2668, %v2675
        %v2679 = vunpack.c.l.s4 1966171168
        %v2680 = vunpack.c.0.s8 %v2679
        %v2681 = vlaneseq
        %v2682 = vshrl.u32 %v2681, 7
        %v2683 = vsub.s32 %v2680, %v2682
        %v2684 = vrot.slane %v2676, %v2683
        %v2686 = vunpack.c.l.s4 1966171168
        %v2687 = vunpack.c.0.s8 %v2686
        %v2688 = vlaneseq
        %v2689 = vshrl.u32 %v2688, 7
        %v2690 = vsub.s32 %v2687, %v2689
        %v2691 = vrot.slane %v2677, %v2690
        %v2692 = vcombine.low %v2684, %v2691
        %2694 = vst [vmem:[%s412] sm:$0xff] %v2692
        %p2695 = scmp.lt.s32.totalorder %s24, 1
        %s2696 = scalar_select %p2695, %s24, 1
        %s2697 = smul.addr %s2696, 8
        %s2698 = smul.addr %s2697, 2
        %s2699 = scalar_lea.vmem %s8, %s2698
        %p2700 = scmp.lt.s32.totalorder %s24, 1
        %s2701 = scalar_select %p2700, %s24, 1
        %s2702 = smul.addr %s2701, 8
        %s2703 = scalar_lea.vmem %s9, %s2702
        %p2704 = scmp.lt.s32.totalorder %s24, 1
        %s2705 = scalar_select %p2704, %s24, 1
        %s2706 = smul.addr %s2705, 8
        %s2707 = scalar_lea.vmem %s10, %s2706
        // Predicated region
        $region61: #{tnet_forward.4} parent=51 // pred_check
          %p2708 = pneg %p215
        $region62: #{tnet_forward.4} parent=51 // pred_check_branch
          %2710 = sbr.rel (%p2708) target = $region64
        $region63: #{tnet_forward.4} parent=51 // pred_region
          _
        $region64: #{tnet_forward.4} parent=51 // pred_fallthru
          _
        // Predicated region
        $region65: #{tnet_forward.4} parent=51 // pred_check
          %p2711 = pneg %p241
        $region66: #{tnet_forward.4} parent=51 // pred_check_branch
          %2713 = sbr.rel (%p2711) target = $region68
        $region67: #{tnet_forward.4} parent=51 // pred_region
          _
        $region68: #{tnet_forward.4} parent=51 // pred_fallthru
          _
        // Predicated region
        $region69: #{tnet_forward.4} parent=51 // pred_check
          %p2714 = pneg %p267
        $region70: #{tnet_forward.4} parent=51 // pred_check_branch
          %2716 = sbr.rel (%p2714) target = $region72
        $region71: #{tnet_forward.4} parent=51 // pred_region
          _
        $region72: #{tnet_forward.4} parent=51 // pred_fallthru
          _
      $region52: #{tnet_forward.4} parent=5 // pred_fallthru
        _
      %p2717 = scmp.le.s32.totalorder 2, %s19
      // Predicated region
      $region73: #{tnet_forward.4} parent=5 // pred_check
        %p2718 = pneg %p2717
      $region74: #{tnet_forward.4} parent=5 // pred_check_branch
        %2720 = sbr.rel (%p2718) target = $region76
      $region75: #{tnet_forward.4} parent=5 // pred_region
        %s2721 = ssub.s32 %s19, 2
        // Predicated region
        $region77: #{tnet_forward.4} parent=75 // pred_check
          %p2722 = pneg %p221
        $region78: #{tnet_forward.4} parent=75 // pred_check_branch
          %2724 = sbr.rel (%p2722) target = $region80
        $region79: #{tnet_forward.4} parent=75 // pred_region
          %p2725 = scmp.lt.s32.totalorder %s25, 1
          %s2726 = scalar_select %p2725, %s25, 1
          %s2727 = smul.addr %s2726, 8
          %s2728 = smul.addr %s2727, 2
          %s2729 = scalar_lea.vmem %s8, %s2728
        $region80: #{tnet_forward.4} parent=75 // pred_fallthru
          _
        // Predicated region
        $region81: #{tnet_forward.4} parent=75 // pred_check
          %p2730 = pneg %p247
        $region82: #{tnet_forward.4} parent=75 // pred_check_branch
          %2732 = sbr.rel (%p2730) target = $region84
        $region83: #{tnet_forward.4} parent=75 // pred_region
          %p2733 = scmp.lt.s32.totalorder %s25, 1
          %s2734 = scalar_select %p2733, %s25, 1
          %s2735 = smul.addr %s2734, 8
          %s2736 = scalar_lea.vmem %s9, %s2735
        $region84: #{tnet_forward.4} parent=75 // pred_fallthru
          _
        // Predicated region
        $region85: #{tnet_forward.4} parent=75 // pred_check
          %p2737 = pneg %p273
        $region86: #{tnet_forward.4} parent=75 // pred_check_branch
          %2739 = sbr.rel (%p2737) target = $region88
        $region87: #{tnet_forward.4} parent=75 // pred_region
          %p2740 = scmp.lt.s32.totalorder %s25, 1
          %s2741 = scalar_select %p2740, %s25, 1
          %s2742 = smul.addr %s2741, 8
          %s2743 = scalar_lea.vmem %s10, %s2742
        $region88: #{tnet_forward.4} parent=75 // pred_fallthru
          _
      $region76: #{tnet_forward.4} parent=5 // pred_fallthru
        _
    $region6: #{tnet_forward.4} parent=1 // loop_footer
      %s23 = sadd.s32 1, %s19
    $region7: #{tnet_forward.4} parent=1 // loop_footer_branch
      %18 = sbr.rel target = $region3
    $region8: #{tnet_forward.4} parent=1 // loop_exit
      _
    %2744 = vsyncpa [#allocation3], 1
    %s2745 = scalar_lea.sflag [#allocation3], 1
    %2746 = vsyncpa %s2745, 1
    %2747 = vsyncpa [#allocation5], 1

// kernel: tnet_forward.5
$region0: #{tnet_forward.5}
  #allocation0 [shape = 'u32[]', space=smem, size = 0x4, offset = 0x4, fixed_abs, tag = 'smem constant byte address 0x4 - core index']
  #allocation1 [shape = 'u32[144,128]{1,0:T(1,128)}', space=vmem, size = 0x12000, scoped, tag = 'internal scratch']
  %s0 = inlined_call_operand.vmem [shape: f32[2,1024], index: 0, kind: input, shape index: {}]
  %s1 = inlined_call_operand.hbm [shape: f32[1024,512], index: 1, kind: input, shape index: {}]
  %s2 = inlined_call_operand.hbm [shape: f32[1,512], index: 2, kind: input, shape index: {}]
  %s3 = inlined_call_operand.hbm [shape: f32[1,512], index: 3, kind: input, shape index: {}]
  %s4 = inlined_call_operand.hbm [shape: f32[512,256], index: 4, kind: input, shape index: {}]
  %s5 = inlined_call_operand.hbm [shape: f32[1,256], index: 5, kind: input, shape index: {}]
  %s6 = inlined_call_operand.hbm [shape: f32[1,256], index: 6, kind: input, shape index: {}]
  %s7 = inlined_call_operand.vmem [shape: f32[256,9], index: 7, kind: input, shape index: {}]
  %s8 = inlined_call_operand.hbm [shape: f32[1,9], index: 8, kind: input, shape index: {}]
  %s9 = inlined_call_operand.vmem [shape: f32[1,9], index: 9, kind: input, shape index: {}]
  %s10 = inlined_call_operand.vmem [shape: f32[2,9], index: 10, kind: output, shape index: {}]
  %s11 = sld [smem:[#allocation0]]
  $region78: #{tnet_forward.5} parent=0
    _
  %s13 = ssub.s32 1, %s11
  %s14 = scalar_select 0, %s13, %s11
  $region1: #{tnet_forward.5} parent=0
    #allocation2 [shape = 'u8[2097152]{0}', space=vmem, size = 0x200000, scoped, tag = 'input window, operand 1, single buffered']
    #allocation3 [shape = 's32[1]{0}', space=sflag, size = 0x4, scoped, tag = 'scoped memory for tnet_forward.5']
    #allocation4 [shape = 'u8[2048]{0}', space=vmem, size = 0x800, scoped, tag = 'input window, operand 2, single buffered']
    #allocation5 [shape = 's32[1]{0}', space=sflag, size = 0x4, scoped, tag = 'scoped memory for tnet_forward.5']
    #allocation6 [shape = 'u8[2048]{0}', space=vmem, size = 0x800, scoped, tag = 'input window, operand 3, single buffered']
    #allocation7 [shape = 'u8[524288]{0}', space=vmem, size = 0x80000, scoped, tag = 'input window, operand 4, single buffered']
    #allocation8 [shape = 's32[1]{0}', space=sflag, size = 0x4, scoped, tag = 'scoped memory for tnet_forward.5']
    #allocation9 [shape = 'u8[1024]{0}', space=vmem, size = 0x400, scoped, tag = 'input window, operand 5, single buffered']
    #allocation10 [shape = 'u8[1024]{0}', space=vmem, size = 0x400, scoped, tag = 'input window, operand 6, single buffered']
    #allocation11 [shape = 's32[1]{0}', space=sflag, size = 0x4, scoped, tag = 'scoped memory for tnet_forward.5']
    #allocation12 [shape = 'u8[512]{0}', space=vmem, size = 0x400, scoped, tag = 'input window, operand 8, single buffered']
    %15 = vsyncpa [#allocation3], 0
    %16 = vsyncpa [#allocation5], 0
    %17 = vsyncpa [#allocation8], 0
    %18 = vsyncpa [#allocation11], 0
    // Predicated region
    $region2: #{tnet_forward.5} parent=1 // pred_check
      _
    $region3: #{tnet_forward.5} parent=1 // pred_check_branch
      %20 = sbr.rel (0) target = $region5
    $region4: #{tnet_forward.5} parent=1 // pred_region
      _
    $region5: #{tnet_forward.5} parent=1 // pred_fallthru
      _
    // Predicated region
    $region6: #{tnet_forward.5} parent=1 // pred_check
      _
    $region7: #{tnet_forward.5} parent=1 // pred_check_branch
      %22 = sbr.rel (0) target = $region9
    $region8: #{tnet_forward.5} parent=1 // pred_region
      %s24 = ssub.s32 65536, 65536
      %25 = vsyncadd [#allocation3], %s24
      %s26 = sshll.u32 [#allocation2], 4
      %s27 = int_to_ptr.vmem [resolvable:$true] %s26
      %32 = dma.hbm_to_vmem [thread:$0]  %s1, 65536, %s27, [#allocation3], 512, 512, 32
    $region9: #{tnet_forward.5} parent=1 // pred_fallthru
      _
    // Predicated region
    $region10: #{tnet_forward.5} parent=1 // pred_check
      _
    $region11: #{tnet_forward.5} parent=1 // pred_check_branch
      %34 = sbr.rel (0) target = $region13
    $region12: #{tnet_forward.5} parent=1 // pred_region
      %s36 = ssub.s32 64, 64
      %37 = vsyncadd [#allocation5], %s36
      %s39 = sshll.u32 [#allocation4], 4
      %s40 = int_to_ptr.vmem [resolvable:$true] %s39
      %42 = dma.hbm_to_vmem [thread:$0]  %s2, 64, %s40, [#allocation5]
    $region13: #{tnet_forward.5} parent=1 // pred_fallthru
      _
    // Predicated region
    $region14: #{tnet_forward.5} parent=1 // pred_check
      _
    $region15: #{tnet_forward.5} parent=1 // pred_check_branch
      %44 = sbr.rel (0) target = $region17
    $region16: #{tnet_forward.5} parent=1 // pred_region
      %s46 = ssub.s32 64, 64
      %47 = vsyncadd [#allocation5], %s46
      %s49 = sshll.u32 [#allocation6], 4
      %s50 = int_to_ptr.vmem [resolvable:$true] %s49
      %52 = dma.hbm_to_vmem [thread:$0]  %s3, 64, %s50, [#allocation5]
    $region17: #{tnet_forward.5} parent=1 // pred_fallthru
      _
    // Predicated region
    $region18: #{tnet_forward.5} parent=1 // pred_check
      _
    $region19: #{tnet_forward.5} parent=1 // pred_check_branch
      %54 = sbr.rel (0) target = $region21
    $region20: #{tnet_forward.5} parent=1 // pred_region
      %s56 = ssub.s32 16384, 16384
      %57 = vsyncadd [#allocation8], %s56
      %s58 = sshll.u32 [#allocation7], 4
      %s59 = int_to_ptr.vmem [resolvable:$true] %s58
      %64 = dma.hbm_to_vmem [thread:$0]  %s4, 16384, %s59, [#allocation8], 256, 256, 16
    $region21: #{tnet_forward.5} parent=1 // pred_fallthru
      _
    // Predicated region
    $region22: #{tnet_forward.5} parent=1 // pred_check
      _
    $region23: #{tnet_forward.5} parent=1 // pred_check_branch
      %66 = sbr.rel (0) target = $region25
    $region24: #{tnet_forward.5} parent=1 // pred_region
      %s68 = ssub.s32 32, 32
      %69 = vsyncadd [#allocation8], %s68
      %s71 = sshll.u32 [#allocation9], 4
      %s72 = int_to_ptr.vmem [resolvable:$true] %s71
      %74 = dma.hbm_to_vmem [thread:$0]  %s5, 32, %s72, [#allocation8]
    $region25: #{tnet_forward.5} parent=1 // pred_fallthru
      _
    // Predicated region
    $region26: #{tnet_forward.5} parent=1 // pred_check
      _
    $region27: #{tnet_forward.5} parent=1 // pred_check_branch
      %76 = sbr.rel (0) target = $region29
    $region28: #{tnet_forward.5} parent=1 // pred_region
      %s78 = ssub.s32 32, 32
      %79 = vsyncadd [#allocation11], %s78
      %s81 = sshll.u32 [#allocation10], 4
      %s82 = int_to_ptr.vmem [resolvable:$true] %s81
      %84 = dma.hbm_to_vmem [thread:$0]  %s6, 32, %s82, [#allocation11]
    $region29: #{tnet_forward.5} parent=1 // pred_fallthru
      _
    // Predicated region
    $region30: #{tnet_forward.5} parent=1 // pred_check
      _
    $region31: #{tnet_forward.5} parent=1 // pred_check_branch
      %86 = sbr.rel (0) target = $region33
    $region32: #{tnet_forward.5} parent=1 // pred_region
      _
    $region33: #{tnet_forward.5} parent=1 // pred_fallthru
      _
    // Predicated region
    $region34: #{tnet_forward.5} parent=1 // pred_check
      _
    $region35: #{tnet_forward.5} parent=1 // pred_check_branch
      %88 = sbr.rel (0) target = $region37
    $region36: #{tnet_forward.5} parent=1 // pred_region
      %s90 = ssub.s32 16, 16
      %91 = vsyncadd [#allocation11], %s90
      %s93 = sshll.u32 [#allocation12], 4
      %s94 = int_to_ptr.vmem [resolvable:$true] %s93
      %96 = dma.hbm_to_vmem [thread:$0]  %s8, 16, %s94, [#allocation11]
    $region37: #{tnet_forward.5} parent=1 // pred_fallthru
      _
    // Predicated region
    $region38: #{tnet_forward.5} parent=1 // pred_check
      _
    $region39: #{tnet_forward.5} parent=1 // pred_check_branch
      %98 = sbr.rel (0) target = $region41
    $region40: #{tnet_forward.5} parent=1 // pred_region
      _
    $region41: #{tnet_forward.5} parent=1 // pred_fallthru
      _
    // Predicated region
    $region42: #{tnet_forward.5} parent=1 // pred_check
      _
    $region43: #{tnet_forward.5} parent=1 // pred_check_branch
      %100 = sbr.rel (0) target = $region45
    $region44: #{tnet_forward.5} parent=1 // pred_region
      %101 = dma.done [#allocation3], 65536
    $region45: #{tnet_forward.5} parent=1 // pred_fallthru
      _
    // Predicated region
    $region46: #{tnet_forward.5} parent=1 // pred_check
      _
    $region47: #{tnet_forward.5} parent=1 // pred_check_branch
      %103 = sbr.rel (0) target = $region49
    $region48: #{tnet_forward.5} parent=1 // pred_region
      %104 = dma.done [#allocation5], 64
    $region49: #{tnet_forward.5} parent=1 // pred_fallthru
      _
    // Predicated region
    $region50: #{tnet_forward.5} parent=1 // pred_check
      _
    $region51: #{tnet_forward.5} parent=1 // pred_check_branch
      %106 = sbr.rel (0) target = $region53
    $region52: #{tnet_forward.5} parent=1 // pred_region
      %107 = dma.done [#allocation5], 64
    $region53: #{tnet_forward.5} parent=1 // pred_fallthru
      _
    // Predicated region
    $region54: #{tnet_forward.5} parent=1 // pred_check
      _
    $region55: #{tnet_forward.5} parent=1 // pred_check_branch
      %109 = sbr.rel (0) target = $region57
    $region56: #{tnet_forward.5} parent=1 // pred_region
      %110 = dma.done [#allocation8], 16384
    $region57: #{tnet_forward.5} parent=1 // pred_fallthru
      _
    // Predicated region
    $region58: #{tnet_forward.5} parent=1 // pred_check
      _
    $region59: #{tnet_forward.5} parent=1 // pred_check_branch
      %112 = sbr.rel (0) target = $region61
    $region60: #{tnet_forward.5} parent=1 // pred_region
      %113 = dma.done [#allocation8], 32
    $region61: #{tnet_forward.5} parent=1 // pred_fallthru
      _
    // Predicated region
    $region62: #{tnet_forward.5} parent=1 // pred_check
      _
    $region63: #{tnet_forward.5} parent=1 // pred_check_branch
      %115 = sbr.rel (0) target = $region65
    $region64: #{tnet_forward.5} parent=1 // pred_region
      %116 = dma.done [#allocation11], 32
    $region65: #{tnet_forward.5} parent=1 // pred_fallthru
      _
    // Predicated region
    $region66: #{tnet_forward.5} parent=1 // pred_check
      _
    $region67: #{tnet_forward.5} parent=1 // pred_check_branch
      %118 = sbr.rel (0) target = $region69
    $region68: #{tnet_forward.5} parent=1 // pred_region
      %119 = dma.done [#allocation11], 16
    $region69: #{tnet_forward.5} parent=1 // pred_fallthru
      _
    %v120 = vld [vmem:[%s0] sm:$0xff]
    %v121 = vld [vmem:[%s0 + $0x8] sm:$0xff]
    %v122 = vld [vmem:[#allocation2] sm:$0xff]
    %v123 = vld [vmem:[#allocation2 + $0x8] sm:$0xff]
    %v124 = vld [vmem:[#allocation2 + $0x10] sm:$0xff]
    %v125 = vld [vmem:[#allocation2 + $0x18] sm:$0xff]
    %v126 = vld [vmem:[#allocation2 + $0x20] sm:$0xff]
    %v127 = vld [vmem:[#allocation2 + $0x28] sm:$0xff]
    %v128 = vld [vmem:[#allocation2 + $0x30] sm:$0xff]
    %v129 = vld [vmem:[#allocation2 + $0x38] sm:$0xff]
    %v130 = vld [vmem:[#allocation2 + $0x40] sm:$0xff]
    %v131 = vld [vmem:[#allocation2 + $0x48] sm:$0xff]
    %v132 = vld [vmem:[#allocation2 + $0x50] sm:$0xff]
    %v133 = vld [vmem:[#allocation2 + $0x58] sm:$0xff]
    %v134 = vld [vmem:[#allocation2 + $0x60] sm:$0xff]
    %v135 = vld [vmem:[#allocation2 + $0x68] sm:$0xff]
    %v136 = vld [vmem:[#allocation2 + $0x70] sm:$0xff]
    %v137 = vld [vmem:[#allocation2 + $0x78] sm:$0xff]
    %v138 = vld [vmem:[#allocation2 + $0x80] sm:$0xff]
    %v139 = vld [vmem:[#allocation2 + $0x88] sm:$0xff]
    %v140 = vld [vmem:[#allocation2 + $0x90] sm:$0xff]
    %v141 = vld [vmem:[#allocation2 + $0x98] sm:$0xff]
    %v142 = vld [vmem:[#allocation2 + $0xa0] sm:$0xff]
    %v143 = vld [vmem:[#allocation2 + $0xa8] sm:$0xff]
    %v144 = vld [vmem:[#allocation2 + $0xb0] sm:$0xff]
    %v145 = vld [vmem:[#allocation2 + $0xb8] sm:$0xff]
    %v146 = vld [vmem:[#allocation2 + $0xc0] sm:$0xff]
    %v147 = vld [vmem:[#allocation2 + $0xc8] sm:$0xff]
    %v148 = vld [vmem:[#allocation2 + $0xd0] sm:$0xff]
    %v149 = vld [vmem:[#allocation2 + $0xd8] sm:$0xff]
    %v150 = vld [vmem:[#allocation2 + $0xe0] sm:$0xff]
    %v151 = vld [vmem:[#allocation2 + $0xe8] sm:$0xff]
    %v152 = vld [vmem:[#allocation2 + $0xf0] sm:$0xff]
    %v153 = vld [vmem:[#allocation2 + $0xf8] sm:$0xff]
    %v154 = vld [vmem:[#allocation2 + $0x100] sm:$0xff]
    %v155 = vld [vmem:[#allocation2 + $0x108] sm:$0xff]
    %v156 = vld [vmem:[#allocation2 + $0x110] sm:$0xff]
    %v157 = vld [vmem:[#allocation2 + $0x118] sm:$0xff]
    %v158 = vld [vmem:[#allocation2 + $0x120] sm:$0xff]
    %v159 = vld [vmem:[#allocation2 + $0x128] sm:$0xff]
    %v160 = vld [vmem:[#allocation2 + $0x130] sm:$0xff]
    %v161 = vld [vmem:[#allocation2 + $0x138] sm:$0xff]
    %v162 = vld [vmem:[#allocation2 + $0x140] sm:$0xff]
    %v163 = vld [vmem:[#allocation2 + $0x148] sm:$0xff]
    %v164 = vld [vmem:[#allocation2 + $0x150] sm:$0xff]
    %v165 = vld [vmem:[#allocation2 + $0x158] sm:$0xff]
    %v166 = vld [vmem:[#allocation2 + $0x160] sm:$0xff]
    %v167 = vld [vmem:[#allocation2 + $0x168] sm:$0xff]
    %v168 = vld [vmem:[#allocation2 + $0x170] sm:$0xff]
    %v169 = vld [vmem:[#allocation2 + $0x178] sm:$0xff]
    %v170 = vld [vmem:[#allocation2 + $0x180] sm:$0xff]
    %v171 = vld [vmem:[#allocation2 + $0x188] sm:$0xff]
    %v172 = vld [vmem:[#allocation2 + $0x190] sm:$0xff]
    %v173 = vld [vmem:[#allocation2 + $0x198] sm:$0xff]
    %v174 = vld [vmem:[#allocation2 + $0x1a0] sm:$0xff]
    %v175 = vld [vmem:[#allocation2 + $0x1a8] sm:$0xff]
    %v176 = vld [vmem:[#allocation2 + $0x1b0] sm:$0xff]
    %v177 = vld [vmem:[#allocation2 + $0x1b8] sm:$0xff]
    %v178 = vld [vmem:[#allocation2 + $0x1c0] sm:$0xff]
    %v179 = vld [vmem:[#allocation2 + $0x1c8] sm:$0xff]
    %v180 = vld [vmem:[#allocation2 + $0x1d0] sm:$0xff]
    %v181 = vld [vmem:[#allocation2 + $0x1d8] sm:$0xff]
    %v182 = vld [vmem:[#allocation2 + $0x1e0] sm:$0xff]
    %v183 = vld [vmem:[#allocation2 + $0x1e8] sm:$0xff]
    %v184 = vld [vmem:[#allocation2 + $0x1f0] sm:$0xff]
    %v185 = vld [vmem:[#allocation2 + $0x1f8] sm:$0xff]
    %v186 = vld [vmem:[#allocation2 + $0x200] sm:$0xff]
    %v187 = vld [vmem:[#allocation2 + $0x208] sm:$0xff]
    %v188 = vld [vmem:[#allocation2 + $0x210] sm:$0xff]
    %v189 = vld [vmem:[#allocation2 + $0x218] sm:$0xff]
    %v190 = vld [vmem:[#allocation2 + $0x220] sm:$0xff]
    %v191 = vld [vmem:[#allocation2 + $0x228] sm:$0xff]
    %v192 = vld [vmem:[#allocation2 + $0x230] sm:$0xff]
    %v193 = vld [vmem:[#allocation2 + $0x238] sm:$0xff]
    %v194 = vld [vmem:[#allocation2 + $0x240] sm:$0xff]
    %v195 = vld [vmem:[#allocation2 + $0x248] sm:$0xff]
    %v196 = vld [vmem:[#allocation2 + $0x250] sm:$0xff]
    %v197 = vld [vmem:[#allocation2 + $0x258] sm:$0xff]
    %v198 = vld [vmem:[#allocation2 + $0x260] sm:$0xff]
    %v199 = vld [vmem:[#allocation2 + $0x268] sm:$0xff]
    %v200 = vld [vmem:[#allocation2 + $0x270] sm:$0xff]
    %v201 = vld [vmem:[#allocation2 + $0x278] sm:$0xff]
    %v202 = vld [vmem:[#allocation2 + $0x280] sm:$0xff]
    %v203 = vld [vmem:[#allocation2 + $0x288] sm:$0xff]
    %v204 = vld [vmem:[#allocation2 + $0x290] sm:$0xff]
    %v205 = vld [vmem:[#allocation2 + $0x298] sm:$0xff]
    %v206 = vld [vmem:[#allocation2 + $0x2a0] sm:$0xff]
    %v207 = vld [vmem:[#allocation2 + $0x2a8] sm:$0xff]
    %v208 = vld [vmem:[#allocation2 + $0x2b0] sm:$0xff]
    %v209 = vld [vmem:[#allocation2 + $0x2b8] sm:$0xff]
    %v210 = vld [vmem:[#allocation2 + $0x2c0] sm:$0xff]
    %v211 = vld [vmem:[#allocation2 + $0x2c8] sm:$0xff]
    %v212 = vld [vmem:[#allocation2 + $0x2d0] sm:$0xff]
    %v213 = vld [vmem:[#allocation2 + $0x2d8] sm:$0xff]
    %v214 = vld [vmem:[#allocation2 + $0x2e0] sm:$0xff]
    %v215 = vld [vmem:[#allocation2 + $0x2e8] sm:$0xff]
    %v216 = vld [vmem:[#allocation2 + $0x2f0] sm:$0xff]
    %v217 = vld [vmem:[#allocation2 + $0x2f8] sm:$0xff]
    %v218 = vld [vmem:[#allocation2 + $0x300] sm:$0xff]
    %v219 = vld [vmem:[#allocation2 + $0x308] sm:$0xff]
    %v220 = vld [vmem:[#allocation2 + $0x310] sm:$0xff]
    %v221 = vld [vmem:[#allocation2 + $0x318] sm:$0xff]
    %v222 = vld [vmem:[#allocation2 + $0x320] sm:$0xff]
    %v223 = vld [vmem:[#allocation2 + $0x328] sm:$0xff]
    %v224 = vld [vmem:[#allocation2 + $0x330] sm:$0xff]
    %v225 = vld [vmem:[#allocation2 + $0x338] sm:$0xff]
    %v226 = vld [vmem:[#allocation2 + $0x340] sm:$0xff]
    %v227 = vld [vmem:[#allocation2 + $0x348] sm:$0xff]
    %v228 = vld [vmem:[#allocation2 + $0x350] sm:$0xff]
    %v229 = vld [vmem:[#allocation2 + $0x358] sm:$0xff]
    %v230 = vld [vmem:[#allocation2 + $0x360] sm:$0xff]
    %v231 = vld [vmem:[#allocation2 + $0x368] sm:$0xff]
    %v232 = vld [vmem:[#allocation2 + $0x370] sm:$0xff]
    %v233 = vld [vmem:[#allocation2 + $0x378] sm:$0xff]
    %v234 = vld [vmem:[#allocation2 + $0x380] sm:$0xff]
    %v235 = vld [vmem:[#allocation2 + $0x388] sm:$0xff]
    %v236 = vld [vmem:[#allocation2 + $0x390] sm:$0xff]
    %v237 = vld [vmem:[#allocation2 + $0x398] sm:$0xff]
    %v238 = vld [vmem:[#allocation2 + $0x3a0] sm:$0xff]
    %v239 = vld [vmem:[#allocation2 + $0x3a8] sm:$0xff]
    %v240 = vld [vmem:[#allocation2 + $0x3b0] sm:$0xff]
    %v241 = vld [vmem:[#allocation2 + $0x3b8] sm:$0xff]
    %v242 = vld [vmem:[#allocation2 + $0x3c0] sm:$0xff]
    %v243 = vld [vmem:[#allocation2 + $0x3c8] sm:$0xff]
    %v244 = vld [vmem:[#allocation2 + $0x3d0] sm:$0xff]
    %v245 = vld [vmem:[#allocation2 + $0x3d8] sm:$0xff]
    %v246 = vld [vmem:[#allocation2 + $0x3e0] sm:$0xff]
    %v247 = vld [vmem:[#allocation2 + $0x3e8] sm:$0xff]
    %v248 = vld [vmem:[#allocation2 + $0x3f0] sm:$0xff]
    %v249 = vld [vmem:[#allocation2 + $0x3f8] sm:$0xff]
    %v250 = vld [vmem:[#allocation2 + $0x400] sm:$0xff]
    %v251 = vld [vmem:[#allocation2 + $0x408] sm:$0xff]
    %v252 = vld [vmem:[#allocation2 + $0x410] sm:$0xff]
    %v253 = vld [vmem:[#allocation2 + $0x418] sm:$0xff]
    %v254 = vld [vmem:[#allocation2 + $0x420] sm:$0xff]
    %v255 = vld [vmem:[#allocation2 + $0x428] sm:$0xff]
    %v256 = vld [vmem:[#allocation2 + $0x430] sm:$0xff]
    %v257 = vld [vmem:[#allocation2 + $0x438] sm:$0xff]
    %v258 = vld [vmem:[#allocation2 + $0x440] sm:$0xff]
    %v259 = vld [vmem:[#allocation2 + $0x448] sm:$0xff]
    %v260 = vld [vmem:[#allocation2 + $0x450] sm:$0xff]
    %v261 = vld [vmem:[#allocation2 + $0x458] sm:$0xff]
    %v262 = vld [vmem:[#allocation2 + $0x460] sm:$0xff]
    %v263 = vld [vmem:[#allocation2 + $0x468] sm:$0xff]
    %v264 = vld [vmem:[#allocation2 + $0x470] sm:$0xff]
    %v265 = vld [vmem:[#allocation2 + $0x478] sm:$0xff]
    %v266 = vld [vmem:[#allocation2 + $0x480] sm:$0xff]
    %v267 = vld [vmem:[#allocation2 + $0x488] sm:$0xff]
    %v268 = vld [vmem:[#allocation2 + $0x490] sm:$0xff]
    %v269 = vld [vmem:[#allocation2 + $0x498] sm:$0xff]
    %v270 = vld [vmem:[#allocation2 + $0x4a0] sm:$0xff]
    %v271 = vld [vmem:[#allocation2 + $0x4a8] sm:$0xff]
    %v272 = vld [vmem:[#allocation2 + $0x4b0] sm:$0xff]
    %v273 = vld [vmem:[#allocation2 + $0x4b8] sm:$0xff]
    %v274 = vld [vmem:[#allocation2 + $0x4c0] sm:$0xff]
    %v275 = vld [vmem:[#allocation2 + $0x4c8] sm:$0xff]
    %v276 = vld [vmem:[#allocation2 + $0x4d0] sm:$0xff]
    %v277 = vld [vmem:[#allocation2 + $0x4d8] sm:$0xff]
    %v278 = vld [vmem:[#allocation2 + $0x4e0] sm:$0xff]
    %v279 = vld [vmem:[#allocation2 + $0x4e8] sm:$0xff]
    %v280 = vld [vmem:[#allocation2 + $0x4f0] sm:$0xff]
    %v281 = vld [vmem:[#allocation2 + $0x4f8] sm:$0xff]
    %v282 = vld [vmem:[#allocation2 + $0x500] sm:$0xff]
    %v283 = vld [vmem:[#allocation2 + $0x508] sm:$0xff]
    %v284 = vld [vmem:[#allocation2 + $0x510] sm:$0xff]
    %v285 = vld [vmem:[#allocation2 + $0x518] sm:$0xff]
    %v286 = vld [vmem:[#allocation2 + $0x520] sm:$0xff]
    %v287 = vld [vmem:[#allocation2 + $0x528] sm:$0xff]
    %v288 = vld [vmem:[#allocation2 + $0x530] sm:$0xff]
    %v289 = vld [vmem:[#allocation2 + $0x538] sm:$0xff]
    %v290 = vld [vmem:[#allocation2 + $0x540] sm:$0xff]
    %v291 = vld [vmem:[#allocation2 + $0x548] sm:$0xff]
    %v292 = vld [vmem:[#allocation2 + $0x550] sm:$0xff]
    %v293 = vld [vmem:[#allocation2 + $0x558] sm:$0xff]
    %v294 = vld [vmem:[#allocation2 + $0x560] sm:$0xff]
    %v295 = vld [vmem:[#allocation2 + $0x568] sm:$0xff]
    %v296 = vld [vmem:[#allocation2 + $0x570] sm:$0xff]
    %v297 = vld [vmem:[#allocation2 + $0x578] sm:$0xff]
    %v298 = vld [vmem:[#allocation2 + $0x580] sm:$0xff]
    %v299 = vld [vmem:[#allocation2 + $0x588] sm:$0xff]
    %v300 = vld [vmem:[#allocation2 + $0x590] sm:$0xff]
    %v301 = vld [vmem:[#allocation2 + $0x598] sm:$0xff]
    %v302 = vld [vmem:[#allocation2 + $0x5a0] sm:$0xff]
    %v303 = vld [vmem:[#allocation2 + $0x5a8] sm:$0xff]
    %v304 = vld [vmem:[#allocation2 + $0x5b0] sm:$0xff]
    %v305 = vld [vmem:[#allocation2 + $0x5b8] sm:$0xff]
    %v306 = vld [vmem:[#allocation2 + $0x5c0] sm:$0xff]
    %v307 = vld [vmem:[#allocation2 + $0x5c8] sm:$0xff]
    %v308 = vld [vmem:[#allocation2 + $0x5d0] sm:$0xff]
    %v309 = vld [vmem:[#allocation2 + $0x5d8] sm:$0xff]
    %v310 = vld [vmem:[#allocation2 + $0x5e0] sm:$0xff]
    %v311 = vld [vmem:[#allocation2 + $0x5e8] sm:$0xff]
    %v312 = vld [vmem:[#allocation2 + $0x5f0] sm:$0xff]
    %v313 = vld [vmem:[#allocation2 + $0x5f8] sm:$0xff]
    %v314 = vld [vmem:[#allocation2 + $0x600] sm:$0xff]
    %v315 = vld [vmem:[#allocation2 + $0x608] sm:$0xff]
    %v316 = vld [vmem:[#allocation2 + $0x610] sm:$0xff]
    %v317 = vld [vmem:[#allocation2 + $0x618] sm:$0xff]
    %v318 = vld [vmem:[#allocation2 + $0x620] sm:$0xff]
    %v319 = vld [vmem:[#allocation2 + $0x628] sm:$0xff]
    %v320 = vld [vmem:[#allocation2 + $0x630] sm:$0xff]
    %v321 = vld [vmem:[#allocation2 + $0x638] sm:$0xff]
    %v322 = vld [vmem:[#allocation2 + $0x640] sm:$0xff]
    %v323 = vld [vmem:[#allocation2 + $0x648] sm:$0xff]
    %v324 = vld [vmem:[#allocation2 + $0x650] sm:$0xff]
    %v325 = vld [vmem:[#allocation2 + $0x658] sm:$0xff]
    %v326 = vld [vmem:[#allocation2 + $0x660] sm:$0xff]
    %v327 = vld [vmem:[#allocation2 + $0x668] sm:$0xff]
    %v328 = vld [vmem:[#allocation2 + $0x670] sm:$0xff]
    %v329 = vld [vmem:[#allocation2 + $0x678] sm:$0xff]
    %v330 = vld [vmem:[#allocation2 + $0x680] sm:$0xff]
    %v331 = vld [vmem:[#allocation2 + $0x688] sm:$0xff]
    %v332 = vld [vmem:[#allocation2 + $0x690] sm:$0xff]
    %v333 = vld [vmem:[#allocation2 + $0x698] sm:$0xff]
    %v334 = vld [vmem:[#allocation2 + $0x6a0] sm:$0xff]
    %v335 = vld [vmem:[#allocation2 + $0x6a8] sm:$0xff]
    %v336 = vld [vmem:[#allocation2 + $0x6b0] sm:$0xff]
    %v337 = vld [vmem:[#allocation2 + $0x6b8] sm:$0xff]
    %v338 = vld [vmem:[#allocation2 + $0x6c0] sm:$0xff]
    %v339 = vld [vmem:[#allocation2 + $0x6c8] sm:$0xff]
    %v340 = vld [vmem:[#allocation2 + $0x6d0] sm:$0xff]
    %v341 = vld [vmem:[#allocation2 + $0x6d8] sm:$0xff]
    %v342 = vld [vmem:[#allocation2 + $0x6e0] sm:$0xff]
    %v343 = vld [vmem:[#allocation2 + $0x6e8] sm:$0xff]
    %v344 = vld [vmem:[#allocation2 + $0x6f0] sm:$0xff]
    %v345 = vld [vmem:[#allocation2 + $0x6f8] sm:$0xff]
    %v346 = vld [vmem:[#allocation2 + $0x700] sm:$0xff]
    %v347 = vld [vmem:[#allocation2 + $0x708] sm:$0xff]
    %v348 = vld [vmem:[#allocation2 + $0x710] sm:$0xff]
    %v349 = vld [vmem:[#allocation2 + $0x718] sm:$0xff]
    %v350 = vld [vmem:[#allocation2 + $0x720] sm:$0xff]
    %v351 = vld [vmem:[#allocation2 + $0x728] sm:$0xff]
    %v352 = vld [vmem:[#allocation2 + $0x730] sm:$0xff]
    %v353 = vld [vmem:[#allocation2 + $0x738] sm:$0xff]
    %v354 = vld [vmem:[#allocation2 + $0x740] sm:$0xff]
    %v355 = vld [vmem:[#allocation2 + $0x748] sm:$0xff]
    %v356 = vld [vmem:[#allocation2 + $0x750] sm:$0xff]
    %v357 = vld [vmem:[#allocation2 + $0x758] sm:$0xff]
    %v358 = vld [vmem:[#allocation2 + $0x760] sm:$0xff]
    %v359 = vld [vmem:[#allocation2 + $0x768] sm:$0xff]
    %v360 = vld [vmem:[#allocation2 + $0x770] sm:$0xff]
    %v361 = vld [vmem:[#allocation2 + $0x778] sm:$0xff]
    %v362 = vld [vmem:[#allocation2 + $0x780] sm:$0xff]
    %v363 = vld [vmem:[#allocation2 + $0x788] sm:$0xff]
    %v364 = vld [vmem:[#allocation2 + $0x790] sm:$0xff]
    %v365 = vld [vmem:[#allocation2 + $0x798] sm:$0xff]
    %v366 = vld [vmem:[#allocation2 + $0x7a0] sm:$0xff]
    %v367 = vld [vmem:[#allocation2 + $0x7a8] sm:$0xff]
    %v368 = vld [vmem:[#allocation2 + $0x7b0] sm:$0xff]
    %v369 = vld [vmem:[#allocation2 + $0x7b8] sm:$0xff]
    %v370 = vld [vmem:[#allocation2 + $0x7c0] sm:$0xff]
    %v371 = vld [vmem:[#allocation2 + $0x7c8] sm:$0xff]
    %v372 = vld [vmem:[#allocation2 + $0x7d0] sm:$0xff]
    %v373 = vld [vmem:[#allocation2 + $0x7d8] sm:$0xff]
    %v374 = vld [vmem:[#allocation2 + $0x7e0] sm:$0xff]
    %v375 = vld [vmem:[#allocation2 + $0x7e8] sm:$0xff]
    %v376 = vld [vmem:[#allocation2 + $0x7f0] sm:$0xff]
    %v377 = vld [vmem:[#allocation2 + $0x7f8] sm:$0xff]
    %v378 = vld [vmem:[#allocation2 + $0x800] sm:$0xff]
    %v379 = vld [vmem:[#allocation2 + $0x808] sm:$0xff]
    %v380 = vld [vmem:[#allocation2 + $0x810] sm:$0xff]
    %v381 = vld [vmem:[#allocation2 + $0x818] sm:$0xff]
    %v382 = vld [vmem:[#allocation2 + $0x820] sm:$0xff]
    %v383 = vld [vmem:[#allocation2 + $0x828] sm:$0xff]
    %v384 = vld [vmem:[#allocation2 + $0x830] sm:$0xff]
    %v385 = vld [vmem:[#allocation2 + $0x838] sm:$0xff]
    %v386 = vld [vmem:[#allocation2 + $0x840] sm:$0xff]
    %v387 = vld [vmem:[#allocation2 + $0x848] sm:$0xff]
    %v388 = vld [vmem:[#allocation2 + $0x850] sm:$0xff]
    %v389 = vld [vmem:[#allocation2 + $0x858] sm:$0xff]
    %v390 = vld [vmem:[#allocation2 + $0x860] sm:$0xff]
    %v391 = vld [vmem:[#allocation2 + $0x868] sm:$0xff]
    %v392 = vld [vmem:[#allocation2 + $0x870] sm:$0xff]
    %v393 = vld [vmem:[#allocation2 + $0x878] sm:$0xff]
    %v394 = vld [vmem:[#allocation2 + $0x880] sm:$0xff]
    %v395 = vld [vmem:[#allocation2 + $0x888] sm:$0xff]
    %v396 = vld [vmem:[#allocation2 + $0x890] sm:$0xff]
    %v397 = vld [vmem:[#allocation2 + $0x898] sm:$0xff]
    %v398 = vld [vmem:[#allocation2 + $0x8a0] sm:$0xff]
    %v399 = vld [vmem:[#allocation2 + $0x8a8] sm:$0xff]
    %v400 = vld [vmem:[#allocation2 + $0x8b0] sm:$0xff]
    %v401 = vld [vmem:[#allocation2 + $0x8b8] sm:$0xff]
    %v402 = vld [vmem:[#allocation2 + $0x8c0] sm:$0xff]
    %v403 = vld [vmem:[#allocation2 + $0x8c8] sm:$0xff]
    %v404 = vld [vmem:[#allocation2 + $0x8d0] sm:$0xff]
    %v405 = vld [vmem:[#allocation2 + $0x8d8] sm:$0xff]
    %v406 = vld [vmem:[#allocation2 + $0x8e0] sm:$0xff]
    %v407 = vld [vmem:[#allocation2 + $0x8e8] sm:$0xff]
    %v408 = vld [vmem:[#allocation2 + $0x8f0] sm:$0xff]
    %v409 = vld [vmem:[#allocation2 + $0x8f8] sm:$0xff]
    %v410 = vld [vmem:[#allocation2 + $0x900] sm:$0xff]
    %v411 = vld [vmem:[#allocation2 + $0x908] sm:$0xff]
    %v412 = vld [vmem:[#allocation2 + $0x910] sm:$0xff]
    %v413 = vld [vmem:[#allocation2 + $0x918] sm:$0xff]
    %v414 = vld [vmem:[#allocation2 + $0x920] sm:$0xff]
    %v415 = vld [vmem:[#allocation2 + $0x928] sm:$0xff]
    %v416 = vld [vmem:[#allocation2 + $0x930] sm:$0xff]
    %v417 = vld [vmem:[#allocation2 + $0x938] sm:$0xff]
    %v418 = vld [vmem:[#allocation2 + $0x940] sm:$0xff]
    %v419 = vld [vmem:[#allocation2 + $0x948] sm:$0xff]
    %v420 = vld [vmem:[#allocation2 + $0x950] sm:$0xff]
    %v421 = vld [vmem:[#allocation2 + $0x958] sm:$0xff]
    %v422 = vld [vmem:[#allocation2 + $0x960] sm:$0xff]
    %v423 = vld [vmem:[#allocation2 + $0x968] sm:$0xff]
    %v424 = vld [vmem:[#allocation2 + $0x970] sm:$0xff]
    %v425 = vld [vmem:[#allocation2 + $0x978] sm:$0xff]
    %v426 = vld [vmem:[#allocation2 + $0x980] sm:$0xff]
    %v427 = vld [vmem:[#allocation2 + $0x988] sm:$0xff]
    %v428 = vld [vmem:[#allocation2 + $0x990] sm:$0xff]
    %v429 = vld [vmem:[#allocation2 + $0x998] sm:$0xff]
    %v430 = vld [vmem:[#allocation2 + $0x9a0] sm:$0xff]
    %v431 = vld [vmem:[#allocation2 + $0x9a8] sm:$0xff]
    %v432 = vld [vmem:[#allocation2 + $0x9b0] sm:$0xff]
    %v433 = vld [vmem:[#allocation2 + $0x9b8] sm:$0xff]
    %v434 = vld [vmem:[#allocation2 + $0x9c0] sm:$0xff]
    %v435 = vld [vmem:[#allocation2 + $0x9c8] sm:$0xff]
    %v436 = vld [vmem:[#allocation2 + $0x9d0] sm:$0xff]
    %v437 = vld [vmem:[#allocation2 + $0x9d8] sm:$0xff]
    %v438 = vld [vmem:[#allocation2 + $0x9e0] sm:$0xff]
    %v439 = vld [vmem:[#allocation2 + $0x9e8] sm:$0xff]
    %v440 = vld [vmem:[#allocation2 + $0x9f0] sm:$0xff]
    %v441 = vld [vmem:[#allocation2 + $0x9f8] sm:$0xff]
    %v442 = vld [vmem:[#allocation2 + $0xa00] sm:$0xff]
    %v443 = vld [vmem:[#allocation2 + $0xa08] sm:$0xff]
    %v444 = vld [vmem:[#allocation2 + $0xa10] sm:$0xff]
    %v445 = vld [vmem:[#allocation2 + $0xa18] sm:$0xff]
    %v446 = vld [vmem:[#allocation2 + $0xa20] sm:$0xff]
    %v447 = vld [vmem:[#allocation2 + $0xa28] sm:$0xff]
    %v448 = vld [vmem:[#allocation2 + $0xa30] sm:$0xff]
    %v449 = vld [vmem:[#allocation2 + $0xa38] sm:$0xff]
    %v450 = vld [vmem:[#allocation2 + $0xa40] sm:$0xff]
    %v451 = vld [vmem:[#allocation2 + $0xa48] sm:$0xff]
    %v452 = vld [vmem:[#allocation2 + $0xa50] sm:$0xff]
    %v453 = vld [vmem:[#allocation2 + $0xa58] sm:$0xff]
    %v454 = vld [vmem:[#allocation2 + $0xa60] sm:$0xff]
    %v455 = vld [vmem:[#allocation2 + $0xa68] sm:$0xff]
    %v456 = vld [vmem:[#allocation2 + $0xa70] sm:$0xff]
    %v457 = vld [vmem:[#allocation2 + $0xa78] sm:$0xff]
    %v458 = vld [vmem:[#allocation2 + $0xa80] sm:$0xff]
    %v459 = vld [vmem:[#allocation2 + $0xa88] sm:$0xff]
    %v460 = vld [vmem:[#allocation2 + $0xa90] sm:$0xff]
    %v461 = vld [vmem:[#allocation2 + $0xa98] sm:$0xff]
    %v462 = vld [vmem:[#allocation2 + $0xaa0] sm:$0xff]
    %v463 = vld [vmem:[#allocation2 + $0xaa8] sm:$0xff]
    %v464 = vld [vmem:[#allocation2 + $0xab0] sm:$0xff]
    %v465 = vld [vmem:[#allocation2 + $0xab8] sm:$0xff]
    %v466 = vld [vmem:[#allocation2 + $0xac0] sm:$0xff]
    %v467 = vld [vmem:[#allocation2 + $0xac8] sm:$0xff]
    %v468 = vld [vmem:[#allocation2 + $0xad0] sm:$0xff]
    %v469 = vld [vmem:[#allocation2 + $0xad8] sm:$0xff]
    %v470 = vld [vmem:[#allocation2 + $0xae0] sm:$0xff]
    %v471 = vld [vmem:[#allocation2 + $0xae8] sm:$0xff]
    %v472 = vld [vmem:[#allocation2 + $0xaf0] sm:$0xff]
    %v473 = vld [vmem:[#allocation2 + $0xaf8] sm:$0xff]
    %v474 = vld [vmem:[#allocation2 + $0xb00] sm:$0xff]
    %v475 = vld [vmem:[#allocation2 + $0xb08] sm:$0xff]
    %v476 = vld [vmem:[#allocation2 + $0xb10] sm:$0xff]
    %v477 = vld [vmem:[#allocation2 + $0xb18] sm:$0xff]
    %v478 = vld [vmem:[#allocation2 + $0xb20] sm:$0xff]
    %v479 = vld [vmem:[#allocation2 + $0xb28] sm:$0xff]
    %v480 = vld [vmem:[#allocation2 + $0xb30] sm:$0xff]
    %v481 = vld [vmem:[#allocation2 + $0xb38] sm:$0xff]
    %v482 = vld [vmem:[#allocation2 + $0xb40] sm:$0xff]
    %v483 = vld [vmem:[#allocation2 + $0xb48] sm:$0xff]
    %v484 = vld [vmem:[#allocation2 + $0xb50] sm:$0xff]
    %v485 = vld [vmem:[#allocation2 + $0xb58] sm:$0xff]
    %v486 = vld [vmem:[#allocation2 + $0xb60] sm:$0xff]
    %v487 = vld [vmem:[#allocation2 + $0xb68] sm:$0xff]
    %v488 = vld [vmem:[#allocation2 + $0xb70] sm:$0xff]
    %v489 = vld [vmem:[#allocation2 + $0xb78] sm:$0xff]
    %v490 = vld [vmem:[#allocation2 + $0xb80] sm:$0xff]
    %v491 = vld [vmem:[#allocation2 + $0xb88] sm:$0xff]
    %v492 = vld [vmem:[#allocation2 + $0xb90] sm:$0xff]
    %v493 = vld [vmem:[#allocation2 + $0xb98] sm:$0xff]
    %v494 = vld [vmem:[#allocation2 + $0xba0] sm:$0xff]
    %v495 = vld [vmem:[#allocation2 + $0xba8] sm:$0xff]
    %v496 = vld [vmem:[#allocation2 + $0xbb0] sm:$0xff]
    %v497 = vld [vmem:[#allocation2 + $0xbb8] sm:$0xff]
    %v498 = vld [vmem:[#allocation2 + $0xbc0] sm:$0xff]
    %v499 = vld [vmem:[#allocation2 + $0xbc8] sm:$0xff]
    %v500 = vld [vmem:[#allocation2 + $0xbd0] sm:$0xff]
    %v501 = vld [vmem:[#allocation2 + $0xbd8] sm:$0xff]
    %v502 = vld [vmem:[#allocation2 + $0xbe0] sm:$0xff]
    %v503 = vld [vmem:[#allocation2 + $0xbe8] sm:$0xff]
    %v504 = vld [vmem:[#allocation2 + $0xbf0] sm:$0xff]
    %v505 = vld [vmem:[#allocation2 + $0xbf8] sm:$0xff]
    %v506 = vld [vmem:[#allocation2 + $0xc00] sm:$0xff]
    %v507 = vld [vmem:[#allocation2 + $0xc08] sm:$0xff]
    %v508 = vld [vmem:[#allocation2 + $0xc10] sm:$0xff]
    %v509 = vld [vmem:[#allocation2 + $0xc18] sm:$0xff]
    %v510 = vld [vmem:[#allocation2 + $0xc20] sm:$0xff]
    %v511 = vld [vmem:[#allocation2 + $0xc28] sm:$0xff]
    %v512 = vld [vmem:[#allocation2 + $0xc30] sm:$0xff]
    %v513 = vld [vmem:[#allocation2 + $0xc38] sm:$0xff]
    %v514 = vld [vmem:[#allocation2 + $0xc40] sm:$0xff]
    %v515 = vld [vmem:[#allocation2 + $0xc48] sm:$0xff]
    %v516 = vld [vmem:[#allocation2 + $0xc50] sm:$0xff]
    %v517 = vld [vmem:[#allocation2 + $0xc58] sm:$0xff]
    %v518 = vld [vmem:[#allocation2 + $0xc60] sm:$0xff]
    %v519 = vld [vmem:[#allocation2 + $0xc68] sm:$0xff]
    %v520 = vld [vmem:[#allocation2 + $0xc70] sm:$0xff]
    %v521 = vld [vmem:[#allocation2 + $0xc78] sm:$0xff]
    %v522 = vld [vmem:[#allocation2 + $0xc80] sm:$0xff]
    %v523 = vld [vmem:[#allocation2 + $0xc88] sm:$0xff]
    %v524 = vld [vmem:[#allocation2 + $0xc90] sm:$0xff]
    %v525 = vld [vmem:[#allocation2 + $0xc98] sm:$0xff]
    %v526 = vld [vmem:[#allocation2 + $0xca0] sm:$0xff]
    %v527 = vld [vmem:[#allocation2 + $0xca8] sm:$0xff]
    %v528 = vld [vmem:[#allocation2 + $0xcb0] sm:$0xff]
    %v529 = vld [vmem:[#allocation2 + $0xcb8] sm:$0xff]
    %v530 = vld [vmem:[#allocation2 + $0xcc0] sm:$0xff]
    %v531 = vld [vmem:[#allocation2 + $0xcc8] sm:$0xff]
    %v532 = vld [vmem:[#allocation2 + $0xcd0] sm:$0xff]
    %v533 = vld [vmem:[#allocation2 + $0xcd8] sm:$0xff]
    %v534 = vld [vmem:[#allocation2 + $0xce0] sm:$0xff]
    %v535 = vld [vmem:[#allocation2 + $0xce8] sm:$0xff]
    %v536 = vld [vmem:[#allocation2 + $0xcf0] sm:$0xff]
    %v537 = vld [vmem:[#allocation2 + $0xcf8] sm:$0xff]
    %v538 = vld [vmem:[#allocation2 + $0xd00] sm:$0xff]
    %v539 = vld [vmem:[#allocation2 + $0xd08] sm:$0xff]
    %v540 = vld [vmem:[#allocation2 + $0xd10] sm:$0xff]
    %v541 = vld [vmem:[#allocation2 + $0xd18] sm:$0xff]
    %v542 = vld [vmem:[#allocation2 + $0xd20] sm:$0xff]
    %v543 = vld [vmem:[#allocation2 + $0xd28] sm:$0xff]
    %v544 = vld [vmem:[#allocation2 + $0xd30] sm:$0xff]
    %v545 = vld [vmem:[#allocation2 + $0xd38] sm:$0xff]
    %v546 = vld [vmem:[#allocation2 + $0xd40] sm:$0xff]
    %v547 = vld [vmem:[#allocation2 + $0xd48] sm:$0xff]
    %v548 = vld [vmem:[#allocation2 + $0xd50] sm:$0xff]
    %v549 = vld [vmem:[#allocation2 + $0xd58] sm:$0xff]
    %v550 = vld [vmem:[#allocation2 + $0xd60] sm:$0xff]
    %v551 = vld [vmem:[#allocation2 + $0xd68] sm:$0xff]
    %v552 = vld [vmem:[#allocation2 + $0xd70] sm:$0xff]
    %v553 = vld [vmem:[#allocation2 + $0xd78] sm:$0xff]
    %v554 = vld [vmem:[#allocation2 + $0xd80] sm:$0xff]
    %v555 = vld [vmem:[#allocation2 + $0xd88] sm:$0xff]
    %v556 = vld [vmem:[#allocation2 + $0xd90] sm:$0xff]
    %v557 = vld [vmem:[#allocation2 + $0xd98] sm:$0xff]
    %v558 = vld [vmem:[#allocation2 + $0xda0] sm:$0xff]
    %v559 = vld [vmem:[#allocation2 + $0xda8] sm:$0xff]
    %v560 = vld [vmem:[#allocation2 + $0xdb0] sm:$0xff]
    %v561 = vld [vmem:[#allocation2 + $0xdb8] sm:$0xff]
    %v562 = vld [vmem:[#allocation2 + $0xdc0] sm:$0xff]
    %v563 = vld [vmem:[#allocation2 + $0xdc8] sm:$0xff]
    %v564 = vld [vmem:[#allocation2 + $0xdd0] sm:$0xff]
    %v565 = vld [vmem:[#allocation2 + $0xdd8] sm:$0xff]
    %v566 = vld [vmem:[#allocation2 + $0xde0] sm:$0xff]
    %v567 = vld [vmem:[#allocation2 + $0xde8] sm:$0xff]
    %v568 = vld [vmem:[#allocation2 + $0xdf0] sm:$0xff]
    %v569 = vld [vmem:[#allocation2 + $0xdf8] sm:$0xff]
    %v570 = vld [vmem:[#allocation2 + $0xe00] sm:$0xff]
    %v571 = vld [vmem:[#allocation2 + $0xe08] sm:$0xff]
    %v572 = vld [vmem:[#allocation2 + $0xe10] sm:$0xff]
    %v573 = vld [vmem:[#allocation2 + $0xe18] sm:$0xff]
    %v574 = vld [vmem:[#allocation2 + $0xe20] sm:$0xff]
    %v575 = vld [vmem:[#allocation2 + $0xe28] sm:$0xff]
    %v576 = vld [vmem:[#allocation2 + $0xe30] sm:$0xff]
    %v577 = vld [vmem:[#allocation2 + $0xe38] sm:$0xff]
    %v578 = vld [vmem:[#allocation2 + $0xe40] sm:$0xff]
    %v579 = vld [vmem:[#allocation2 + $0xe48] sm:$0xff]
    %v580 = vld [vmem:[#allocation2 + $0xe50] sm:$0xff]
    %v581 = vld [vmem:[#allocation2 + $0xe58] sm:$0xff]
    %v582 = vld [vmem:[#allocation2 + $0xe60] sm:$0xff]
    %v583 = vld [vmem:[#allocation2 + $0xe68] sm:$0xff]
    %v584 = vld [vmem:[#allocation2 + $0xe70] sm:$0xff]
    %v585 = vld [vmem:[#allocation2 + $0xe78] sm:$0xff]
    %v586 = vld [vmem:[#allocation2 + $0xe80] sm:$0xff]
    %v587 = vld [vmem:[#allocation2 + $0xe88] sm:$0xff]
    %v588 = vld [vmem:[#allocation2 + $0xe90] sm:$0xff]
    %v589 = vld [vmem:[#allocation2 + $0xe98] sm:$0xff]
    %v590 = vld [vmem:[#allocation2 + $0xea0] sm:$0xff]
    %v591 = vld [vmem:[#allocation2 + $0xea8] sm:$0xff]
    %v592 = vld [vmem:[#allocation2 + $0xeb0] sm:$0xff]
    %v593 = vld [vmem:[#allocation2 + $0xeb8] sm:$0xff]
    %v594 = vld [vmem:[#allocation2 + $0xec0] sm:$0xff]
    %v595 = vld [vmem:[#allocation2 + $0xec8] sm:$0xff]
    %v596 = vld [vmem:[#allocation2 + $0xed0] sm:$0xff]
    %v597 = vld [vmem:[#allocation2 + $0xed8] sm:$0xff]
    %v598 = vld [vmem:[#allocation2 + $0xee0] sm:$0xff]
    %v599 = vld [vmem:[#allocation2 + $0xee8] sm:$0xff]
    %v600 = vld [vmem:[#allocation2 + $0xef0] sm:$0xff]
    %v601 = vld [vmem:[#allocation2 + $0xef8] sm:$0xff]
    %v602 = vld [vmem:[#allocation2 + $0xf00] sm:$0xff]
    %v603 = vld [vmem:[#allocation2 + $0xf08] sm:$0xff]
    %v604 = vld [vmem:[#allocation2 + $0xf10] sm:$0xff]
    %v605 = vld [vmem:[#allocation2 + $0xf18] sm:$0xff]
    %v606 = vld [vmem:[#allocation2 + $0xf20] sm:$0xff]
    %v607 = vld [vmem:[#allocation2 + $0xf28] sm:$0xff]
    %v608 = vld [vmem:[#allocation2 + $0xf30] sm:$0xff]
    %v609 = vld [vmem:[#allocation2 + $0xf38] sm:$0xff]
    %v610 = vld [vmem:[#allocation2 + $0xf40] sm:$0xff]
    %v611 = vld [vmem:[#allocation2 + $0xf48] sm:$0xff]
    %v612 = vld [vmem:[#allocation2 + $0xf50] sm:$0xff]
    %v613 = vld [vmem:[#allocation2 + $0xf58] sm:$0xff]
    %v614 = vld [vmem:[#allocation2 + $0xf60] sm:$0xff]
    %v615 = vld [vmem:[#allocation2 + $0xf68] sm:$0xff]
    %v616 = vld [vmem:[#allocation2 + $0xf70] sm:$0xff]
    %v617 = vld [vmem:[#allocation2 + $0xf78] sm:$0xff]
    %v618 = vld [vmem:[#allocation2 + $0xf80] sm:$0xff]
    %v619 = vld [vmem:[#allocation2 + $0xf88] sm:$0xff]
    %v620 = vld [vmem:[#allocation2 + $0xf90] sm:$0xff]
    %v621 = vld [vmem:[#allocation2 + $0xf98] sm:$0xff]
    %v622 = vld [vmem:[#allocation2 + $0xfa0] sm:$0xff]
    %v623 = vld [vmem:[#allocation2 + $0xfa8] sm:$0xff]
    %v624 = vld [vmem:[#allocation2 + $0xfb0] sm:$0xff]
    %v625 = vld [vmem:[#allocation2 + $0xfb8] sm:$0xff]
    %v626 = vld [vmem:[#allocation2 + $0xfc0] sm:$0xff]
    %v627 = vld [vmem:[#allocation2 + $0xfc8] sm:$0xff]
    %v628 = vld [vmem:[#allocation2 + $0xfd0] sm:$0xff]
    %v629 = vld [vmem:[#allocation2 + $0xfd8] sm:$0xff]
    %v630 = vld [vmem:[#allocation2 + $0xfe0] sm:$0xff]
    %v631 = vld [vmem:[#allocation2 + $0xfe8] sm:$0xff]
    %v632 = vld [vmem:[#allocation2 + $0xff0] sm:$0xff]
    %v633 = vld [vmem:[#allocation2 + $0xff8] sm:$0xff]
    %v636 = vcombine.high %v120, %v120
    %v638 = vunpack.c.l.s4 1983009808
    %v639 = vunpack.c.0.s8 %v638
    %v640 = vlaneseq
    %v641 = vshrl.u32 %v640, 7
    %v642 = vsub.s32 %v639, %v641
    %v643 = vrot.slane %v120, %v642
    %v645 = vunpack.c.l.s4 1983009808
    %v646 = vunpack.c.0.s8 %v645
    %v647 = vlaneseq
    %v648 = vshrl.u32 %v647, 7
    %v649 = vsub.s32 %v646, %v648
    %v650 = vrot.slane %v636, %v649
    %v651 = vcombine.high %v643, %v643
    %v652 = vcombine.high %v650, %v650
    %v653 = vcombine.high %v121, %v121
    %v655 = vunpack.c.l.s4 1983009808
    %v656 = vunpack.c.0.s8 %v655
    %v657 = vlaneseq
    %v658 = vshrl.u32 %v657, 7
    %v659 = vsub.s32 %v656, %v658
    %v660 = vrot.slane %v121, %v659
    %v662 = vunpack.c.l.s4 1983009808
    %v663 = vunpack.c.0.s8 %v662
    %v664 = vlaneseq
    %v665 = vshrl.u32 %v664, 7
    %v666 = vsub.s32 %v663, %v665
    %v667 = vrot.slane %v653, %v666
    %v668 = vcombine.high %v660, %v660
    %v669 = vcombine.high %v667, %v667
    %678 = vmatprep.subr.mxu0 %v123
    %679 = vmatpush1.msra.mxu0 %v122
    %680 = vmatprep.subr.mxu0 %v127
    %681 = vmatpush1.msra.mxu0 %v126
    %682 = vmatprep.subr.mxu0 %v131
    %683 = vmatpush1.msra.mxu0 %v130
    %684 = vmatprep.subr.mxu0 %v135
    %685 = vmatpush1.msra.mxu0 %v134
    %686 = vmatprep.subr.mxu0 %v139
    %687 = vmatpush1.msra.mxu0 %v138
    %688 = vmatprep.subr.mxu0 %v143
    %689 = vmatpush1.msra.mxu0 %v142
    %690 = vmatprep.subr.mxu0 %v147
    %691 = vmatpush1.msra.mxu0 %v146
    %692 = vmatprep.subr.mxu0 %v151
    %693 = vmatpush1.msra.mxu0 %v150
    %694 = vmatprep.subr.mxu0 %v155
    %695 = vmatpush1.msra.mxu0 %v154
    %696 = vmatprep.subr.mxu0 %v159
    %697 = vmatpush1.msra.mxu0 %v158
    %698 = vmatprep.subr.mxu0 %v163
    %699 = vmatpush1.msra.mxu0 %v162
    %700 = vmatprep.subr.mxu0 %v167
    %701 = vmatpush1.msra.mxu0 %v166
    %702 = vmatprep.subr.mxu0 %v171
    %703 = vmatpush1.msra.mxu0 %v170
    %704 = vmatprep.subr.mxu0 %v175
    %705 = vmatpush1.msra.mxu0 %v174
    %706 = vmatprep.subr.mxu0 %v179
    %707 = vmatpush1.msra.mxu0 %v178
    %708 = vmatprep.subr.mxu0 %v183
    %709 = vmatpush1.msra.mxu0 %v182
    %710 = vmatprep.subr.mxu0 %v187
    %711 = vmatpush1.msra.mxu0 %v186
    %712 = vmatprep.subr.mxu0 %v191
    %713 = vmatpush1.msra.mxu0 %v190
    %714 = vmatprep.subr.mxu0 %v195
    %715 = vmatpush1.msra.mxu0 %v194
    %716 = vmatprep.subr.mxu0 %v199
    %717 = vmatpush1.msra.mxu0 %v198
    %718 = vmatprep.subr.mxu0 %v203
    %719 = vmatpush1.msra.mxu0 %v202
    %720 = vmatprep.subr.mxu0 %v207
    %721 = vmatpush1.msra.mxu0 %v206
    %722 = vmatprep.subr.mxu0 %v211
    %723 = vmatpush1.msra.mxu0 %v210
    %724 = vmatprep.subr.mxu0 %v215
    %725 = vmatpush1.msra.mxu0 %v214
    %726 = vmatprep.subr.mxu0 %v219
    %727 = vmatpush1.msra.mxu0 %v218
    %728 = vmatprep.subr.mxu0 %v223
    %729 = vmatpush1.msra.mxu0 %v222
    %730 = vmatprep.subr.mxu0 %v227
    %731 = vmatpush1.msra.mxu0 %v226
    %732 = vmatprep.subr.mxu0 %v231
    %733 = vmatpush1.msra.mxu0 %v230
    %734 = vmatprep.subr.mxu0 %v235
    %735 = vmatpush1.msra.mxu0 %v234
    %736 = vmatprep.subr.mxu0 %v239
    %737 = vmatpush1.msra.mxu0 %v238
    %738 = vmatprep.subr.mxu0 %v243
    %739 = vmatpush1.msra.mxu0 %v242
    %740 = vmatprep.subr.mxu0 %v247
    %741 = vmatpush1.msra.mxu0 %v246
    %742 = vmatprep.mubr.f32.mxu0 %v651
    %743 = vmatmul.mubr.f32.gmra.mrb[0].mxu0 %v643
    %v744 = vpop.f32.mrb[0].mxu0
    %v745 = vadd.f32 0.0, %v744
    %v746 = vpop.f32.mrb[0].mxu0
    %v747 = vadd.f32 0.0, %v746
    %748 = vdwg.mxu0
    %749 = vmatprep.subr.mxu0 %v251
    %750 = vmatpush1.msra.mxu0 %v250
    %751 = vmatprep.subr.mxu0 %v255
    %752 = vmatpush1.msra.mxu0 %v254
    %753 = vmatprep.subr.mxu0 %v259
    %754 = vmatpush1.msra.mxu0 %v258
    %755 = vmatprep.subr.mxu0 %v263
    %756 = vmatpush1.msra.mxu0 %v262
    %757 = vmatprep.subr.mxu0 %v267
    %758 = vmatpush1.msra.mxu0 %v266
    %759 = vmatprep.subr.mxu0 %v271
    %760 = vmatpush1.msra.mxu0 %v270
    %761 = vmatprep.subr.mxu0 %v275
    %762 = vmatpush1.msra.mxu0 %v274
    %763 = vmatprep.subr.mxu0 %v279
    %764 = vmatpush1.msra.mxu0 %v278
    %765 = vmatprep.subr.mxu0 %v283
    %766 = vmatpush1.msra.mxu0 %v282
    %767 = vmatprep.subr.mxu0 %v287
    %768 = vmatpush1.msra.mxu0 %v286
    %769 = vmatprep.subr.mxu0 %v291
    %770 = vmatpush1.msra.mxu0 %v290
    %771 = vmatprep.subr.mxu0 %v295
    %772 = vmatpush1.msra.mxu0 %v294
    %773 = vmatprep.subr.mxu0 %v299
    %774 = vmatpush1.msra.mxu0 %v298
    %775 = vmatprep.subr.mxu0 %v303
    %776 = vmatpush1.msra.mxu0 %v302
    %777 = vmatprep.subr.mxu0 %v307
    %778 = vmatpush1.msra.mxu0 %v306
    %779 = vmatprep.subr.mxu0 %v311
    %780 = vmatpush1.msra.mxu0 %v310
    %781 = vmatprep.subr.mxu0 %v315
    %782 = vmatpush1.msra.mxu0 %v314
    %783 = vmatprep.subr.mxu0 %v319
    %784 = vmatpush1.msra.mxu0 %v318
    %785 = vmatprep.subr.mxu0 %v323
    %786 = vmatpush1.msra.mxu0 %v322
    %787 = vmatprep.subr.mxu0 %v327
    %788 = vmatpush1.msra.mxu0 %v326
    %789 = vmatprep.subr.mxu0 %v331
    %790 = vmatpush1.msra.mxu0 %v330
    %791 = vmatprep.subr.mxu0 %v335
    %792 = vmatpush1.msra.mxu0 %v334
    %793 = vmatprep.subr.mxu0 %v339
    %794 = vmatpush1.msra.mxu0 %v338
    %795 = vmatprep.subr.mxu0 %v343
    %796 = vmatpush1.msra.mxu0 %v342
    %797 = vmatprep.subr.mxu0 %v347
    %798 = vmatpush1.msra.mxu0 %v346
    %799 = vmatprep.subr.mxu0 %v351
    %800 = vmatpush1.msra.mxu0 %v350
    %801 = vmatprep.subr.mxu0 %v355
    %802 = vmatpush1.msra.mxu0 %v354
    %803 = vmatprep.subr.mxu0 %v359
    %804 = vmatpush1.msra.mxu0 %v358
    %805 = vmatprep.subr.mxu0 %v363
    %806 = vmatpush1.msra.mxu0 %v362
    %807 = vmatprep.subr.mxu0 %v367
    %808 = vmatpush1.msra.mxu0 %v366
    %809 = vmatprep.subr.mxu0 %v371
    %810 = vmatpush1.msra.mxu0 %v370
    %811 = vmatprep.subr.mxu0 %v375
    %812 = vmatpush1.msra.mxu0 %v374
    %813 = vmatprep.mubr.f32.mxu0 %v652
    %814 = vmatmul.mubr.f32.gmra.mrb[0].mxu0 %v650
    %v815 = vpop.f32.mrb[0].mxu0
    %v816 = vadd.f32 %v745, %v815
    %v817 = vpop.f32.mrb[0].mxu0
    %v818 = vadd.f32 %v747, %v817
    %819 = vdwg.mxu0
    %820 = vmatprep.subr.mxu0 %v379
    %821 = vmatpush1.msra.mxu0 %v378
    %822 = vmatprep.subr.mxu0 %v383
    %823 = vmatpush1.msra.mxu0 %v382
    %824 = vmatprep.subr.mxu0 %v387
    %825 = vmatpush1.msra.mxu0 %v386
    %826 = vmatprep.subr.mxu0 %v391
    %827 = vmatpush1.msra.mxu0 %v390
    %828 = vmatprep.subr.mxu0 %v395
    %829 = vmatpush1.msra.mxu0 %v394
    %830 = vmatprep.subr.mxu0 %v399
    %831 = vmatpush1.msra.mxu0 %v398
    %832 = vmatprep.subr.mxu0 %v403
    %833 = vmatpush1.msra.mxu0 %v402
    %834 = vmatprep.subr.mxu0 %v407
    %835 = vmatpush1.msra.mxu0 %v406
    %836 = vmatprep.subr.mxu0 %v411
    %837 = vmatpush1.msra.mxu0 %v410
    %838 = vmatprep.subr.mxu0 %v415
    %839 = vmatpush1.msra.mxu0 %v414
    %840 = vmatprep.subr.mxu0 %v419
    %841 = vmatpush1.msra.mxu0 %v418
    %842 = vmatprep.subr.mxu0 %v423
    %843 = vmatpush1.msra.mxu0 %v422
    %844 = vmatprep.subr.mxu0 %v427
    %845 = vmatpush1.msra.mxu0 %v426
    %846 = vmatprep.subr.mxu0 %v431
    %847 = vmatpush1.msra.mxu0 %v430
    %848 = vmatprep.subr.mxu0 %v435
    %849 = vmatpush1.msra.mxu0 %v434
    %850 = vmatprep.subr.mxu0 %v439
    %851 = vmatpush1.msra.mxu0 %v438
    %852 = vmatprep.subr.mxu0 %v443
    %853 = vmatpush1.msra.mxu0 %v442
    %854 = vmatprep.subr.mxu0 %v447
    %855 = vmatpush1.msra.mxu0 %v446
    %856 = vmatprep.subr.mxu0 %v451
    %857 = vmatpush1.msra.mxu0 %v450
    %858 = vmatprep.subr.mxu0 %v455
    %859 = vmatpush1.msra.mxu0 %v454
    %860 = vmatprep.subr.mxu0 %v459
    %861 = vmatpush1.msra.mxu0 %v458
    %862 = vmatprep.subr.mxu0 %v463
    %863 = vmatpush1.msra.mxu0 %v462
    %864 = vmatprep.subr.mxu0 %v467
    %865 = vmatpush1.msra.mxu0 %v466
    %866 = vmatprep.subr.mxu0 %v471
    %867 = vmatpush1.msra.mxu0 %v470
    %868 = vmatprep.subr.mxu0 %v475
    %869 = vmatpush1.msra.mxu0 %v474
    %870 = vmatprep.subr.mxu0 %v479
    %871 = vmatpush1.msra.mxu0 %v478
    %872 = vmatprep.subr.mxu0 %v483
    %873 = vmatpush1.msra.mxu0 %v482
    %874 = vmatprep.subr.mxu0 %v487
    %875 = vmatpush1.msra.mxu0 %v486
    %876 = vmatprep.subr.mxu0 %v491
    %877 = vmatpush1.msra.mxu0 %v490
    %878 = vmatprep.subr.mxu0 %v495
    %879 = vmatpush1.msra.mxu0 %v494
    %880 = vmatprep.subr.mxu0 %v499
    %881 = vmatpush1.msra.mxu0 %v498
    %882 = vmatprep.subr.mxu0 %v503
    %883 = vmatpush1.msra.mxu0 %v502
    %884 = vmatprep.mubr.f32.mxu0 %v668
    %885 = vmatmul.mubr.f32.gmra.mrb[0].mxu0 %v660
    %v886 = vpop.f32.mrb[0].mxu0
    %v887 = vadd.f32 %v816, %v886
    %v888 = vpop.f32.mrb[0].mxu0
    %v889 = vadd.f32 %v818, %v888
    %890 = vdwg.mxu0
    %891 = vmatprep.subr.mxu0 %v507
    %892 = vmatpush1.msra.mxu0 %v506
    %893 = vmatprep.subr.mxu0 %v511
    %894 = vmatpush1.msra.mxu0 %v510
    %895 = vmatprep.subr.mxu0 %v515
    %896 = vmatpush1.msra.mxu0 %v514
    %897 = vmatprep.subr.mxu0 %v519
    %898 = vmatpush1.msra.mxu0 %v518
    %899 = vmatprep.subr.mxu0 %v523
    %900 = vmatpush1.msra.mxu0 %v522
    %901 = vmatprep.subr.mxu0 %v527
    %902 = vmatpush1.msra.mxu0 %v526
    %903 = vmatprep.subr.mxu0 %v531
    %904 = vmatpush1.msra.mxu0 %v530
    %905 = vmatprep.subr.mxu0 %v535
    %906 = vmatpush1.msra.mxu0 %v534
    %907 = vmatprep.subr.mxu0 %v539
    %908 = vmatpush1.msra.mxu0 %v538
    %909 = vmatprep.subr.mxu0 %v543
    %910 = vmatpush1.msra.mxu0 %v542
    %911 = vmatprep.subr.mxu0 %v547
    %912 = vmatpush1.msra.mxu0 %v546
    %913 = vmatprep.subr.mxu0 %v551
    %914 = vmatpush1.msra.mxu0 %v550
    %915 = vmatprep.subr.mxu0 %v555
    %916 = vmatpush1.msra.mxu0 %v554
    %917 = vmatprep.subr.mxu0 %v559
    %918 = vmatpush1.msra.mxu0 %v558
    %919 = vmatprep.subr.mxu0 %v563
    %920 = vmatpush1.msra.mxu0 %v562
    %921 = vmatprep.subr.mxu0 %v567
    %922 = vmatpush1.msra.mxu0 %v566
    %923 = vmatprep.subr.mxu0 %v571
    %924 = vmatpush1.msra.mxu0 %v570
    %925 = vmatprep.subr.mxu0 %v575
    %926 = vmatpush1.msra.mxu0 %v574
    %927 = vmatprep.subr.mxu0 %v579
    %928 = vmatpush1.msra.mxu0 %v578
    %929 = vmatprep.subr.mxu0 %v583
    %930 = vmatpush1.msra.mxu0 %v582
    %931 = vmatprep.subr.mxu0 %v587
    %932 = vmatpush1.msra.mxu0 %v586
    %933 = vmatprep.subr.mxu0 %v591
    %934 = vmatpush1.msra.mxu0 %v590
    %935 = vmatprep.subr.mxu0 %v595
    %936 = vmatpush1.msra.mxu0 %v594
    %937 = vmatprep.subr.mxu0 %v599
    %938 = vmatpush1.msra.mxu0 %v598
    %939 = vmatprep.subr.mxu0 %v603
    %940 = vmatpush1.msra.mxu0 %v602
    %941 = vmatprep.subr.mxu0 %v607
    %942 = vmatpush1.msra.mxu0 %v606
    %943 = vmatprep.subr.mxu0 %v611
    %944 = vmatpush1.msra.mxu0 %v610
    %945 = vmatprep.subr.mxu0 %v615
    %946 = vmatpush1.msra.mxu0 %v614
    %947 = vmatprep.subr.mxu0 %v619
    %948 = vmatpush1.msra.mxu0 %v618
    %949 = vmatprep.subr.mxu0 %v623
    %950 = vmatpush1.msra.mxu0 %v622
    %951 = vmatprep.subr.mxu0 %v627
    %952 = vmatpush1.msra.mxu0 %v626
    %953 = vmatprep.subr.mxu0 %v631
    %954 = vmatpush1.msra.mxu0 %v630
    %955 = vmatprep.mubr.f32.mxu0 %v669
    %956 = vmatmul.mubr.f32.gmra.mrb[0].mxu0 %v667
    %v957 = vpop.f32.mrb[0].mxu0
    %v958 = vadd.f32 %v887, %v957
    %v959 = vpop.f32.mrb[0].mxu0
    %v960 = vadd.f32 %v889, %v959
    %961 = vdwg.mxu0
    %962 = vmatprep.subr.mxu0 %v125
    %963 = vmatpush1.msra.mxu0 %v124
    %964 = vmatprep.subr.mxu0 %v129
    %965 = vmatpush1.msra.mxu0 %v128
    %966 = vmatprep.subr.mxu0 %v133
    %967 = vmatpush1.msra.mxu0 %v132
    %968 = vmatprep.subr.mxu0 %v137
    %969 = vmatpush1.msra.mxu0 %v136
    %970 = vmatprep.subr.mxu0 %v141
    %971 = vmatpush1.msra.mxu0 %v140
    %972 = vmatprep.subr.mxu0 %v145
    %973 = vmatpush1.msra.mxu0 %v144
    %974 = vmatprep.subr.mxu0 %v149
    %975 = vmatpush1.msra.mxu0 %v148
    %976 = vmatprep.subr.mxu0 %v153
    %977 = vmatpush1.msra.mxu0 %v152
    %978 = vmatprep.subr.mxu0 %v157
    %979 = vmatpush1.msra.mxu0 %v156
    %980 = vmatprep.subr.mxu0 %v161
    %981 = vmatpush1.msra.mxu0 %v160
    %982 = vmatprep.subr.mxu0 %v165
    %983 = vmatpush1.msra.mxu0 %v164
    %984 = vmatprep.subr.mxu0 %v169
    %985 = vmatpush1.msra.mxu0 %v168
    %986 = vmatprep.subr.mxu0 %v173
    %987 = vmatpush1.msra.mxu0 %v172
    %988 = vmatprep.subr.mxu0 %v177
    %989 = vmatpush1.msra.mxu0 %v176
    %990 = vmatprep.subr.mxu0 %v181
    %991 = vmatpush1.msra.mxu0 %v180
    %992 = vmatprep.subr.mxu0 %v185
    %993 = vmatpush1.msra.mxu0 %v184
    %994 = vmatprep.subr.mxu0 %v189
    %995 = vmatpush1.msra.mxu0 %v188
    %996 = vmatprep.subr.mxu0 %v193
    %997 = vmatpush1.msra.mxu0 %v192
    %998 = vmatprep.subr.mxu0 %v197
    %999 = vmatpush1.msra.mxu0 %v196
    %1000 = vmatprep.subr.mxu0 %v201
    %1001 = vmatpush1.msra.mxu0 %v200
    %1002 = vmatprep.subr.mxu0 %v205
    %1003 = vmatpush1.msra.mxu0 %v204
    %1004 = vmatprep.subr.mxu0 %v209
    %1005 = vmatpush1.msra.mxu0 %v208
    %1006 = vmatprep.subr.mxu0 %v213
    %1007 = vmatpush1.msra.mxu0 %v212
    %1008 = vmatprep.subr.mxu0 %v217
    %1009 = vmatpush1.msra.mxu0 %v216
    %1010 = vmatprep.subr.mxu0 %v221
    %1011 = vmatpush1.msra.mxu0 %v220
    %1012 = vmatprep.subr.mxu0 %v225
    %1013 = vmatpush1.msra.mxu0 %v224
    %1014 = vmatprep.subr.mxu0 %v229
    %1015 = vmatpush1.msra.mxu0 %v228
    %1016 = vmatprep.subr.mxu0 %v233
    %1017 = vmatpush1.msra.mxu0 %v232
    %1018 = vmatprep.subr.mxu0 %v237
    %1019 = vmatpush1.msra.mxu0 %v236
    %1020 = vmatprep.subr.mxu0 %v241
    %1021 = vmatpush1.msra.mxu0 %v240
    %1022 = vmatprep.subr.mxu0 %v245
    %1023 = vmatpush1.msra.mxu0 %v244
    %1024 = vmatprep.subr.mxu0 %v249
    %1025 = vmatpush1.msra.mxu0 %v248
    %1026 = vmatprep.mubr.f32.mxu0 %v651
    %1027 = vmatmul.mubr.f32.gmra.mrb[0].mxu0 %v643
    %v1028 = vpop.f32.mrb[0].mxu0
    %v1029 = vadd.f32 0.0, %v1028
    %v1030 = vpop.f32.mrb[0].mxu0
    %v1031 = vadd.f32 0.0, %v1030
    %1032 = vdwg.mxu0
    %1033 = vmatprep.subr.mxu0 %v253
    %1034 = vmatpush1.msra.mxu0 %v252
    %1035 = vmatprep.subr.mxu0 %v257
    %1036 = vmatpush1.msra.mxu0 %v256
    %1037 = vmatprep.subr.mxu0 %v261
    %1038 = vmatpush1.msra.mxu0 %v260
    %1039 = vmatprep.subr.mxu0 %v265
    %1040 = vmatpush1.msra.mxu0 %v264
    %1041 = vmatprep.subr.mxu0 %v269
    %1042 = vmatpush1.msra.mxu0 %v268
    %1043 = vmatprep.subr.mxu0 %v273
    %1044 = vmatpush1.msra.mxu0 %v272
    %1045 = vmatprep.subr.mxu0 %v277
    %1046 = vmatpush1.msra.mxu0 %v276
    %1047 = vmatprep.subr.mxu0 %v281
    %1048 = vmatpush1.msra.mxu0 %v280
    %1049 = vmatprep.subr.mxu0 %v285
    %1050 = vmatpush1.msra.mxu0 %v284
    %1051 = vmatprep.subr.mxu0 %v289
    %1052 = vmatpush1.msra.mxu0 %v288
    %1053 = vmatprep.subr.mxu0 %v293
    %1054 = vmatpush1.msra.mxu0 %v292
    %1055 = vmatprep.subr.mxu0 %v297
    %1056 = vmatpush1.msra.mxu0 %v296
    %1057 = vmatprep.subr.mxu0 %v301
    %1058 = vmatpush1.msra.mxu0 %v300
    %1059 = vmatprep.subr.mxu0 %v305
    %1060 = vmatpush1.msra.mxu0 %v304
    %1061 = vmatprep.subr.mxu0 %v309
    %1062 = vmatpush1.msra.mxu0 %v308
    %1063 = vmatprep.subr.mxu0 %v313
    %1064 = vmatpush1.msra.mxu0 %v312
    %1065 = vmatprep.subr.mxu0 %v317
    %1066 = vmatpush1.msra.mxu0 %v316
    %1067 = vmatprep.subr.mxu0 %v321
    %1068 = vmatpush1.msra.mxu0 %v320
    %1069 = vmatprep.subr.mxu0 %v325
    %1070 = vmatpush1.msra.mxu0 %v324
    %1071 = vmatprep.subr.mxu0 %v329
    %1072 = vmatpush1.msra.mxu0 %v328
    %1073 = vmatprep.subr.mxu0 %v333
    %1074 = vmatpush1.msra.mxu0 %v332
    %1075 = vmatprep.subr.mxu0 %v337
    %1076 = vmatpush1.msra.mxu0 %v336
    %1077 = vmatprep.subr.mxu0 %v341
    %1078 = vmatpush1.msra.mxu0 %v340
    %1079 = vmatprep.subr.mxu0 %v345
    %1080 = vmatpush1.msra.mxu0 %v344
    %1081 = vmatprep.subr.mxu0 %v349
    %1082 = vmatpush1.msra.mxu0 %v348
    %1083 = vmatprep.subr.mxu0 %v353
    %1084 = vmatpush1.msra.mxu0 %v352
    %1085 = vmatprep.subr.mxu0 %v357
    %1086 = vmatpush1.msra.mxu0 %v356
    %1087 = vmatprep.subr.mxu0 %v361
    %1088 = vmatpush1.msra.mxu0 %v360
    %1089 = vmatprep.subr.mxu0 %v365
    %1090 = vmatpush1.msra.mxu0 %v364
    %1091 = vmatprep.subr.mxu0 %v369
    %1092 = vmatpush1.msra.mxu0 %v368
    %1093 = vmatprep.subr.mxu0 %v373
    %1094 = vmatpush1.msra.mxu0 %v372
    %1095 = vmatprep.subr.mxu0 %v377
    %1096 = vmatpush1.msra.mxu0 %v376
    %1097 = vmatprep.mubr.f32.mxu0 %v652
    %1098 = vmatmul.mubr.f32.gmra.mrb[0].mxu0 %v650
    %v1099 = vpop.f32.mrb[0].mxu0
    %v1100 = vadd.f32 %v1029, %v1099
    %v1101 = vpop.f32.mrb[0].mxu0
    %v1102 = vadd.f32 %v1031, %v1101
    %1103 = vdwg.mxu0
    %1104 = vmatprep.subr.mxu0 %v381
    %1105 = vmatpush1.msra.mxu0 %v380
    %1106 = vmatprep.subr.mxu0 %v385
    %1107 = vmatpush1.msra.mxu0 %v384
    %1108 = vmatprep.subr.mxu0 %v389
    %1109 = vmatpush1.msra.mxu0 %v388
    %1110 = vmatprep.subr.mxu0 %v393
    %1111 = vmatpush1.msra.mxu0 %v392
    %1112 = vmatprep.subr.mxu0 %v397
    %1113 = vmatpush1.msra.mxu0 %v396
    %1114 = vmatprep.subr.mxu0 %v401
    %1115 = vmatpush1.msra.mxu0 %v400
    %1116 = vmatprep.subr.mxu0 %v405
    %1117 = vmatpush1.msra.mxu0 %v404
    %1118 = vmatprep.subr.mxu0 %v409
    %1119 = vmatpush1.msra.mxu0 %v408
    %1120 = vmatprep.subr.mxu0 %v413
    %1121 = vmatpush1.msra.mxu0 %v412
    %1122 = vmatprep.subr.mxu0 %v417
    %1123 = vmatpush1.msra.mxu0 %v416
    %1124 = vmatprep.subr.mxu0 %v421
    %1125 = vmatpush1.msra.mxu0 %v420
    %1126 = vmatprep.subr.mxu0 %v425
    %1127 = vmatpush1.msra.mxu0 %v424
    %1128 = vmatprep.subr.mxu0 %v429
    %1129 = vmatpush1.msra.mxu0 %v428
    %1130 = vmatprep.subr.mxu0 %v433
    %1131 = vmatpush1.msra.mxu0 %v432
    %1132 = vmatprep.subr.mxu0 %v437
    %1133 = vmatpush1.msra.mxu0 %v436
    %1134 = vmatprep.subr.mxu0 %v441
    %1135 = vmatpush1.msra.mxu0 %v440
    %1136 = vmatprep.subr.mxu0 %v445
    %1137 = vmatpush1.msra.mxu0 %v444
    %1138 = vmatprep.subr.mxu0 %v449
    %1139 = vmatpush1.msra.mxu0 %v448
    %1140 = vmatprep.subr.mxu0 %v453
    %1141 = vmatpush1.msra.mxu0 %v452
    %1142 = vmatprep.subr.mxu0 %v457
    %1143 = vmatpush1.msra.mxu0 %v456
    %1144 = vmatprep.subr.mxu0 %v461
    %1145 = vmatpush1.msra.mxu0 %v460
    %1146 = vmatprep.subr.mxu0 %v465
    %1147 = vmatpush1.msra.mxu0 %v464
    %1148 = vmatprep.subr.mxu0 %v469
    %1149 = vmatpush1.msra.mxu0 %v468
    %1150 = vmatprep.subr.mxu0 %v473
    %1151 = vmatpush1.msra.mxu0 %v472
    %1152 = vmatprep.subr.mxu0 %v477
    %1153 = vmatpush1.msra.mxu0 %v476
    %1154 = vmatprep.subr.mxu0 %v481
    %1155 = vmatpush1.msra.mxu0 %v480
    %1156 = vmatprep.subr.mxu0 %v485
    %1157 = vmatpush1.msra.mxu0 %v484
    %1158 = vmatprep.subr.mxu0 %v489
    %1159 = vmatpush1.msra.mxu0 %v488
    %1160 = vmatprep.subr.mxu0 %v493
    %1161 = vmatpush1.msra.mxu0 %v492
    %1162 = vmatprep.subr.mxu0 %v497
    %1163 = vmatpush1.msra.mxu0 %v496
    %1164 = vmatprep.subr.mxu0 %v501
    %1165 = vmatpush1.msra.mxu0 %v500
    %1166 = vmatprep.subr.mxu0 %v505
    %1167 = vmatpush1.msra.mxu0 %v504
    %1168 = vmatprep.mubr.f32.mxu0 %v668
    %1169 = vmatmul.mubr.f32.gmra.mrb[0].mxu0 %v660
    %v1170 = vpop.f32.mrb[0].mxu0
    %v1171 = vadd.f32 %v1100, %v1170
    %v1172 = vpop.f32.mrb[0].mxu0
    %v1173 = vadd.f32 %v1102, %v1172
    %1174 = vdwg.mxu0
    %1175 = vmatprep.subr.mxu0 %v509
    %1176 = vmatpush1.msra.mxu0 %v508
    %1177 = vmatprep.subr.mxu0 %v513
    %1178 = vmatpush1.msra.mxu0 %v512
    %1179 = vmatprep.subr.mxu0 %v517
    %1180 = vmatpush1.msra.mxu0 %v516
    %1181 = vmatprep.subr.mxu0 %v521
    %1182 = vmatpush1.msra.mxu0 %v520
    %1183 = vmatprep.subr.mxu0 %v525
    %1184 = vmatpush1.msra.mxu0 %v524
    %1185 = vmatprep.subr.mxu0 %v529
    %1186 = vmatpush1.msra.mxu0 %v528
    %1187 = vmatprep.subr.mxu0 %v533
    %1188 = vmatpush1.msra.mxu0 %v532
    %1189 = vmatprep.subr.mxu0 %v537
    %1190 = vmatpush1.msra.mxu0 %v536
    %1191 = vmatprep.subr.mxu0 %v541
    %1192 = vmatpush1.msra.mxu0 %v540
    %1193 = vmatprep.subr.mxu0 %v545
    %1194 = vmatpush1.msra.mxu0 %v544
    %1195 = vmatprep.subr.mxu0 %v549
    %1196 = vmatpush1.msra.mxu0 %v548
    %1197 = vmatprep.subr.mxu0 %v553
    %1198 = vmatpush1.msra.mxu0 %v552
    %1199 = vmatprep.subr.mxu0 %v557
    %1200 = vmatpush1.msra.mxu0 %v556
    %1201 = vmatprep.subr.mxu0 %v561
    %1202 = vmatpush1.msra.mxu0 %v560
    %1203 = vmatprep.subr.mxu0 %v565
    %1204 = vmatpush1.msra.mxu0 %v564
    %1205 = vmatprep.subr.mxu0 %v569
    %1206 = vmatpush1.msra.mxu0 %v568
    %1207 = vmatprep.subr.mxu0 %v573
    %1208 = vmatpush1.msra.mxu0 %v572
    %1209 = vmatprep.subr.mxu0 %v577
    %1210 = vmatpush1.msra.mxu0 %v576
    %1211 = vmatprep.subr.mxu0 %v581
    %1212 = vmatpush1.msra.mxu0 %v580
    %1213 = vmatprep.subr.mxu0 %v585
    %1214 = vmatpush1.msra.mxu0 %v584
    %1215 = vmatprep.subr.mxu0 %v589
    %1216 = vmatpush1.msra.mxu0 %v588
    %1217 = vmatprep.subr.mxu0 %v593
    %1218 = vmatpush1.msra.mxu0 %v592
    %1219 = vmatprep.subr.mxu0 %v597
    %1220 = vmatpush1.msra.mxu0 %v596
    %1221 = vmatprep.subr.mxu0 %v601
    %1222 = vmatpush1.msra.mxu0 %v600
    %1223 = vmatprep.subr.mxu0 %v605
    %1224 = vmatpush1.msra.mxu0 %v604
    %1225 = vmatprep.subr.mxu0 %v609
    %1226 = vmatpush1.msra.mxu0 %v608
    %1227 = vmatprep.subr.mxu0 %v613
    %1228 = vmatpush1.msra.mxu0 %v612
    %1229 = vmatprep.subr.mxu0 %v617
    %1230 = vmatpush1.msra.mxu0 %v616
    %1231 = vmatprep.subr.mxu0 %v621
    %1232 = vmatpush1.msra.mxu0 %v620
    %1233 = vmatprep.subr.mxu0 %v625
    %1234 = vmatpush1.msra.mxu0 %v624
    %1235 = vmatprep.subr.mxu0 %v629
    %1236 = vmatpush1.msra.mxu0 %v628
    %1237 = vmatprep.subr.mxu0 %v633
    %1238 = vmatpush1.msra.mxu0 %v632
    %1239 = vmatprep.mubr.f32.mxu0 %v669
    %1240 = vmatmul.mubr.f32.gmra.mrb[0].mxu0 %v667
    %v1241 = vpop.f32.mrb[0].mxu0
    %v1242 = vadd.f32 %v1171, %v1241
    %v1243 = vpop.f32.mrb[0].mxu0
    %v1244 = vadd.f32 %v1173, %v1243
    %1245 = vdwg.mxu0
    %v1246 = vld [vmem:[#allocation4] sm:$0xf]
    %v1247 = vld [vmem:[#allocation6] sm:$0xf]
    %vm1248 = vcmask 1041408
    %v1249 = vsel %vm1248, %v958, 0.0
    %v1250 = vrot.slane %v1249, 4
    %v1251 = vadd.f32 %v1249, %v1250
    %v1252 = vrot.slane %v1251, 2
    %v1253 = vadd.f32 %v1251, %v1252
    %v1254 = vrot.slane %v1253, 1
    %v1255 = vadd.f32 %v1253, %v1254
    %v1256 = vsel %vm1248, %v960, 0.0
    %v1257 = vrot.slane %v1256, 4
    %v1258 = vadd.f32 %v1256, %v1257
    %v1259 = vrot.slane %v1258, 2
    %v1260 = vadd.f32 %v1258, %v1259
    %v1261 = vrot.slane %v1260, 1
    %v1262 = vadd.f32 %v1260, %v1261
    %v1263 = vsel %vm1248, %v1242, 0.0
    %v1264 = vrot.slane %v1263, 4
    %v1265 = vadd.f32 %v1263, %v1264
    %v1266 = vrot.slane %v1265, 2
    %v1267 = vadd.f32 %v1265, %v1266
    %v1268 = vrot.slane %v1267, 1
    %v1269 = vadd.f32 %v1267, %v1268
    %v1270 = vsel %vm1248, %v1244, 0.0
    %v1271 = vrot.slane %v1270, 4
    %v1272 = vadd.f32 %v1270, %v1271
    %v1273 = vrot.slane %v1272, 2
    %v1274 = vadd.f32 %v1272, %v1273
    %v1275 = vrot.slane %v1274, 1
    %v1276 = vadd.f32 %v1274, %v1275
    %v1277 = vmul.f32 %v1255, 0.5
    %v1278 = vmul.f32 %v1262, 0.5
    %v1279 = vmul.f32 %v1269, 0.5
    %v1280 = vmul.f32 %v1276, 0.5
    %v1281 = vsub.f32 %v958, %v1277
    %v1282 = vsub.f32 %v960, %v1278
    %v1283 = vsub.f32 %v1242, %v1279
    %v1284 = vsub.f32 %v1244, %v1280
    %v1285 = vmul.f32 %v1281, %v1281
    %v1286 = vmul.f32 %v1282, %v1282
    %v1287 = vmul.f32 %v1283, %v1283
    %v1288 = vmul.f32 %v1284, %v1284
    %v1289 = vsel %vm1248, %v1285, 0.0
    %v1290 = vrot.slane %v1289, 4
    %v1291 = vadd.f32 %v1289, %v1290
    %v1292 = vrot.slane %v1291, 2
    %v1293 = vadd.f32 %v1291, %v1292
    %v1294 = vrot.slane %v1293, 1
    %v1295 = vadd.f32 %v1293, %v1294
    %v1296 = vsel %vm1248, %v1286, 0.0
    %v1297 = vrot.slane %v1296, 4
    %v1298 = vadd.f32 %v1296, %v1297
    %v1299 = vrot.slane %v1298, 2
    %v1300 = vadd.f32 %v1298, %v1299
    %v1301 = vrot.slane %v1300, 1
    %v1302 = vadd.f32 %v1300, %v1301
    %v1303 = vsel %vm1248, %v1287, 0.0
    %v1304 = vrot.slane %v1303, 4
    %v1305 = vadd.f32 %v1303, %v1304
    %v1306 = vrot.slane %v1305, 2
    %v1307 = vadd.f32 %v1305, %v1306
    %v1308 = vrot.slane %v1307, 1
    %v1309 = vadd.f32 %v1307, %v1308
    %v1310 = vsel %vm1248, %v1288, 0.0
    %v1311 = vrot.slane %v1310, 4
    %v1312 = vadd.f32 %v1310, %v1311
    %v1313 = vrot.slane %v1312, 2
    %v1314 = vadd.f32 %v1312, %v1313
    %v1315 = vrot.slane %v1314, 1
    %v1316 = vadd.f32 %v1314, %v1315
    %v1317 = vmul.f32 %v1295, 0.5
    %v1318 = vmul.f32 %v1302, 0.5
    %v1319 = vmul.f32 %v1309, 0.5
    %v1320 = vmul.f32 %v1316, 0.5
    %v1321 = vadd.f32 %v1317, 1e-05
    %v1322 = vadd.f32 %v1318, 1e-05
    %v1323 = vadd.f32 %v1319, 1e-05
    %v1324 = vadd.f32 %v1320, 1e-05
    %v1325 = vrsqrt.pop %v1321
    %v1326 = vrsqrt.pop %v1322
    %v1327 = vrsqrt.pop %v1323
    %v1328 = vrsqrt.pop %v1324
    %v1333 = vcombine.low %v1325, %v1326
    %v1334 = vcombine.low %v1327, %v1328
    %v1336 = vunpack.c.l.s4 1966171168
    %v1337 = vunpack.c.0.s8 %v1336
    %v1338 = vlaneseq
    %v1339 = vshrl.u32 %v1338, 7
    %v1340 = vsub.s32 %v1337, %v1339
    %v1341 = vrot.slane %v1333, %v1340
    %v1343 = vunpack.c.l.s4 1966171168
    %v1344 = vunpack.c.0.s8 %v1343
    %v1345 = vlaneseq
    %v1346 = vshrl.u32 %v1345, 7
    %v1347 = vsub.s32 %v1344, %v1346
    %v1348 = vrot.slane %v1334, %v1347
    %v1349 = vcombine.low %v1341, %v1348
    %v1351 = vunpack.c.l.s4 1966171168
    %v1352 = vunpack.c.0.s8 %v1351
    %v1353 = vlaneseq
    %v1354 = vshrl.u32 %v1353, 7
    %v1355 = vsub.s32 %v1352, %v1354
    %v1356 = vrot.slane %v1349, %v1355
    %v1358 = vmul.f32 %v1246, %v1356
    %v1360 = vlaneseq
    %v1361 = vshrl.u32 %v1360, 7
    %v1362 = vsub.s32 0, %v1361
    %v1363 = vrot.slane %v1358, %v1362
    %v1364 = vlaneseq
    %v1365 = vshrl.u32 %v1364, 7
    %v1366 = vsub.s32 1, %v1365
    %v1367 = vrot.slane %v1358, %v1366
    %v1368 = vlaneseq
    %v1369 = vshrl.u32 %v1368, 7
    %v1370 = vsub.s32 2, %v1369
    %v1371 = vrot.slane %v1358, %v1370
    %v1372 = vlaneseq
    %v1373 = vshrl.u32 %v1372, 7
    %v1374 = vsub.s32 3, %v1373
    %v1375 = vrot.slane %v1358, %v1374
    %v1380 = vmul.f32 %v1281, %v1363
    %v1381 = vmul.f32 %v1282, %v1367
    %v1382 = vmul.f32 %v1283, %v1371
    %v1383 = vmul.f32 %v1284, %v1375
    %v1385 = vlaneseq
    %v1386 = vshrl.u32 %v1385, 7
    %v1387 = vsub.s32 0, %v1386
    %v1388 = vrot.slane %v1247, %v1387
    %v1389 = vlaneseq
    %v1390 = vshrl.u32 %v1389, 7
    %v1391 = vsub.s32 1, %v1390
    %v1392 = vrot.slane %v1247, %v1391
    %v1393 = vlaneseq
    %v1394 = vshrl.u32 %v1393, 7
    %v1395 = vsub.s32 2, %v1394
    %v1396 = vrot.slane %v1247, %v1395
    %v1397 = vlaneseq
    %v1398 = vshrl.u32 %v1397, 7
    %v1399 = vsub.s32 3, %v1398
    %v1400 = vrot.slane %v1247, %v1399
    %v1405 = vadd.f32 %v1380, %v1388
    %v1406 = vadd.f32 %v1381, %v1392
    %v1407 = vadd.f32 %v1382, %v1396
    %v1408 = vadd.f32 %v1383, %v1400
    %v1409 = vmax.f32 %v1405, 0.0
    %v1410 = vmax.f32 %v1406, 0.0
    %v1411 = vmax.f32 %v1407, 0.0
    %v1412 = vmax.f32 %v1408, 0.0
    %v1413 = vld [vmem:[#allocation7] sm:$0xff]
    %v1414 = vld [vmem:[#allocation7 + $0x8] sm:$0xff]
    %v1415 = vld [vmem:[#allocation7 + $0x10] sm:$0xff]
    %v1416 = vld [vmem:[#allocation7 + $0x18] sm:$0xff]
    %v1417 = vld [vmem:[#allocation7 + $0x20] sm:$0xff]
    %v1418 = vld [vmem:[#allocation7 + $0x28] sm:$0xff]
    %v1419 = vld [vmem:[#allocation7 + $0x30] sm:$0xff]
    %v1420 = vld [vmem:[#allocation7 + $0x38] sm:$0xff]
    %v1421 = vld [vmem:[#allocation7 + $0x40] sm:$0xff]
    %v1422 = vld [vmem:[#allocation7 + $0x48] sm:$0xff]
    %v1423 = vld [vmem:[#allocation7 + $0x50] sm:$0xff]
    %v1424 = vld [vmem:[#allocation7 + $0x58] sm:$0xff]
    %v1425 = vld [vmem:[#allocation7 + $0x60] sm:$0xff]
    %v1426 = vld [vmem:[#allocation7 + $0x68] sm:$0xff]
    %v1427 = vld [vmem:[#allocation7 + $0x70] sm:$0xff]
    %v1428 = vld [vmem:[#allocation7 + $0x78] sm:$0xff]
    %v1429 = vld [vmem:[#allocation7 + $0x80] sm:$0xff]
    %v1430 = vld [vmem:[#allocation7 + $0x88] sm:$0xff]
    %v1431 = vld [vmem:[#allocation7 + $0x90] sm:$0xff]
    %v1432 = vld [vmem:[#allocation7 + $0x98] sm:$0xff]
    %v1433 = vld [vmem:[#allocation7 + $0xa0] sm:$0xff]
    %v1434 = vld [vmem:[#allocation7 + $0xa8] sm:$0xff]
    %v1435 = vld [vmem:[#allocation7 + $0xb0] sm:$0xff]
    %v1436 = vld [vmem:[#allocation7 + $0xb8] sm:$0xff]
    %v1437 = vld [vmem:[#allocation7 + $0xc0] sm:$0xff]
    %v1438 = vld [vmem:[#allocation7 + $0xc8] sm:$0xff]
    %v1439 = vld [vmem:[#allocation7 + $0xd0] sm:$0xff]
    %v1440 = vld [vmem:[#allocation7 + $0xd8] sm:$0xff]
    %v1441 = vld [vmem:[#allocation7 + $0xe0] sm:$0xff]
    %v1442 = vld [vmem:[#allocation7 + $0xe8] sm:$0xff]
    %v1443 = vld [vmem:[#allocation7 + $0xf0] sm:$0xff]
    %v1444 = vld [vmem:[#allocation7 + $0xf8] sm:$0xff]
    %v1445 = vld [vmem:[#allocation7 + $0x100] sm:$0xff]
    %v1446 = vld [vmem:[#allocation7 + $0x108] sm:$0xff]
    %v1447 = vld [vmem:[#allocation7 + $0x110] sm:$0xff]
    %v1448 = vld [vmem:[#allocation7 + $0x118] sm:$0xff]
    %v1449 = vld [vmem:[#allocation7 + $0x120] sm:$0xff]
    %v1450 = vld [vmem:[#allocation7 + $0x128] sm:$0xff]
    %v1451 = vld [vmem:[#allocation7 + $0x130] sm:$0xff]
    %v1452 = vld [vmem:[#allocation7 + $0x138] sm:$0xff]
    %v1453 = vld [vmem:[#allocation7 + $0x140] sm:$0xff]
    %v1454 = vld [vmem:[#allocation7 + $0x148] sm:$0xff]
    %v1455 = vld [vmem:[#allocation7 + $0x150] sm:$0xff]
    %v1456 = vld [vmem:[#allocation7 + $0x158] sm:$0xff]
    %v1457 = vld [vmem:[#allocation7 + $0x160] sm:$0xff]
    %v1458 = vld [vmem:[#allocation7 + $0x168] sm:$0xff]
    %v1459 = vld [vmem:[#allocation7 + $0x170] sm:$0xff]
    %v1460 = vld [vmem:[#allocation7 + $0x178] sm:$0xff]
    %v1461 = vld [vmem:[#allocation7 + $0x180] sm:$0xff]
    %v1462 = vld [vmem:[#allocation7 + $0x188] sm:$0xff]
    %v1463 = vld [vmem:[#allocation7 + $0x190] sm:$0xff]
    %v1464 = vld [vmem:[#allocation7 + $0x198] sm:$0xff]
    %v1465 = vld [vmem:[#allocation7 + $0x1a0] sm:$0xff]
    %v1466 = vld [vmem:[#allocation7 + $0x1a8] sm:$0xff]
    %v1467 = vld [vmem:[#allocation7 + $0x1b0] sm:$0xff]
    %v1468 = vld [vmem:[#allocation7 + $0x1b8] sm:$0xff]
    %v1469 = vld [vmem:[#allocation7 + $0x1c0] sm:$0xff]
    %v1470 = vld [vmem:[#allocation7 + $0x1c8] sm:$0xff]
    %v1471 = vld [vmem:[#allocation7 + $0x1d0] sm:$0xff]
    %v1472 = vld [vmem:[#allocation7 + $0x1d8] sm:$0xff]
    %v1473 = vld [vmem:[#allocation7 + $0x1e0] sm:$0xff]
    %v1474 = vld [vmem:[#allocation7 + $0x1e8] sm:$0xff]
    %v1475 = vld [vmem:[#allocation7 + $0x1f0] sm:$0xff]
    %v1476 = vld [vmem:[#allocation7 + $0x1f8] sm:$0xff]
    %v1477 = vld [vmem:[#allocation7 + $0x200] sm:$0xff]
    %v1478 = vld [vmem:[#allocation7 + $0x208] sm:$0xff]
    %v1479 = vld [vmem:[#allocation7 + $0x210] sm:$0xff]
    %v1480 = vld [vmem:[#allocation7 + $0x218] sm:$0xff]
    %v1481 = vld [vmem:[#allocation7 + $0x220] sm:$0xff]
    %v1482 = vld [vmem:[#allocation7 + $0x228] sm:$0xff]
    %v1483 = vld [vmem:[#allocation7 + $0x230] sm:$0xff]
    %v1484 = vld [vmem:[#allocation7 + $0x238] sm:$0xff]
    %v1485 = vld [vmem:[#allocation7 + $0x240] sm:$0xff]
    %v1486 = vld [vmem:[#allocation7 + $0x248] sm:$0xff]
    %v1487 = vld [vmem:[#allocation7 + $0x250] sm:$0xff]
    %v1488 = vld [vmem:[#allocation7 + $0x258] sm:$0xff]
    %v1489 = vld [vmem:[#allocation7 + $0x260] sm:$0xff]
    %v1490 = vld [vmem:[#allocation7 + $0x268] sm:$0xff]
    %v1491 = vld [vmem:[#allocation7 + $0x270] sm:$0xff]
    %v1492 = vld [vmem:[#allocation7 + $0x278] sm:$0xff]
    %v1493 = vld [vmem:[#allocation7 + $0x280] sm:$0xff]
    %v1494 = vld [vmem:[#allocation7 + $0x288] sm:$0xff]
    %v1495 = vld [vmem:[#allocation7 + $0x290] sm:$0xff]
    %v1496 = vld [vmem:[#allocation7 + $0x298] sm:$0xff]
    %v1497 = vld [vmem:[#allocation7 + $0x2a0] sm:$0xff]
    %v1498 = vld [vmem:[#allocation7 + $0x2a8] sm:$0xff]
    %v1499 = vld [vmem:[#allocation7 + $0x2b0] sm:$0xff]
    %v1500 = vld [vmem:[#allocation7 + $0x2b8] sm:$0xff]
    %v1501 = vld [vmem:[#allocation7 + $0x2c0] sm:$0xff]
    %v1502 = vld [vmem:[#allocation7 + $0x2c8] sm:$0xff]
    %v1503 = vld [vmem:[#allocation7 + $0x2d0] sm:$0xff]
    %v1504 = vld [vmem:[#allocation7 + $0x2d8] sm:$0xff]
    %v1505 = vld [vmem:[#allocation7 + $0x2e0] sm:$0xff]
    %v1506 = vld [vmem:[#allocation7 + $0x2e8] sm:$0xff]
    %v1507 = vld [vmem:[#allocation7 + $0x2f0] sm:$0xff]
    %v1508 = vld [vmem:[#allocation7 + $0x2f8] sm:$0xff]
    %v1509 = vld [vmem:[#allocation7 + $0x300] sm:$0xff]
    %v1510 = vld [vmem:[#allocation7 + $0x308] sm:$0xff]
    %v1511 = vld [vmem:[#allocation7 + $0x310] sm:$0xff]
    %v1512 = vld [vmem:[#allocation7 + $0x318] sm:$0xff]
    %v1513 = vld [vmem:[#allocation7 + $0x320] sm:$0xff]
    %v1514 = vld [vmem:[#allocation7 + $0x328] sm:$0xff]
    %v1515 = vld [vmem:[#allocation7 + $0x330] sm:$0xff]
    %v1516 = vld [vmem:[#allocation7 + $0x338] sm:$0xff]
    %v1517 = vld [vmem:[#allocation7 + $0x340] sm:$0xff]
    %v1518 = vld [vmem:[#allocation7 + $0x348] sm:$0xff]
    %v1519 = vld [vmem:[#allocation7 + $0x350] sm:$0xff]
    %v1520 = vld [vmem:[#allocation7 + $0x358] sm:$0xff]
    %v1521 = vld [vmem:[#allocation7 + $0x360] sm:$0xff]
    %v1522 = vld [vmem:[#allocation7 + $0x368] sm:$0xff]
    %v1523 = vld [vmem:[#allocation7 + $0x370] sm:$0xff]
    %v1524 = vld [vmem:[#allocation7 + $0x378] sm:$0xff]
    %v1525 = vld [vmem:[#allocation7 + $0x380] sm:$0xff]
    %v1526 = vld [vmem:[#allocation7 + $0x388] sm:$0xff]
    %v1527 = vld [vmem:[#allocation7 + $0x390] sm:$0xff]
    %v1528 = vld [vmem:[#allocation7 + $0x398] sm:$0xff]
    %v1529 = vld [vmem:[#allocation7 + $0x3a0] sm:$0xff]
    %v1530 = vld [vmem:[#allocation7 + $0x3a8] sm:$0xff]
    %v1531 = vld [vmem:[#allocation7 + $0x3b0] sm:$0xff]
    %v1532 = vld [vmem:[#allocation7 + $0x3b8] sm:$0xff]
    %v1533 = vld [vmem:[#allocation7 + $0x3c0] sm:$0xff]
    %v1534 = vld [vmem:[#allocation7 + $0x3c8] sm:$0xff]
    %v1535 = vld [vmem:[#allocation7 + $0x3d0] sm:$0xff]
    %v1536 = vld [vmem:[#allocation7 + $0x3d8] sm:$0xff]
    %v1537 = vld [vmem:[#allocation7 + $0x3e0] sm:$0xff]
    %v1538 = vld [vmem:[#allocation7 + $0x3e8] sm:$0xff]
    %v1539 = vld [vmem:[#allocation7 + $0x3f0] sm:$0xff]
    %v1540 = vld [vmem:[#allocation7 + $0x3f8] sm:$0xff]
    %1541 = vmatprep.subr.mxu0 %v1414
    %1542 = vmatpush1.msra.mxu0 %v1413
    %1543 = vmatprep.subr.mxu0 %v1416
    %1544 = vmatpush1.msra.mxu0 %v1415
    %1545 = vmatprep.subr.mxu0 %v1418
    %1546 = vmatpush1.msra.mxu0 %v1417
    %1547 = vmatprep.subr.mxu0 %v1420
    %1548 = vmatpush1.msra.mxu0 %v1419
    %1549 = vmatprep.subr.mxu0 %v1422
    %1550 = vmatpush1.msra.mxu0 %v1421
    %1551 = vmatprep.subr.mxu0 %v1424
    %1552 = vmatpush1.msra.mxu0 %v1423
    %1553 = vmatprep.subr.mxu0 %v1426
    %1554 = vmatpush1.msra.mxu0 %v1425
    %1555 = vmatprep.subr.mxu0 %v1428
    %1556 = vmatpush1.msra.mxu0 %v1427
    %1557 = vmatprep.subr.mxu0 %v1430
    %1558 = vmatpush1.msra.mxu0 %v1429
    %1559 = vmatprep.subr.mxu0 %v1432
    %1560 = vmatpush1.msra.mxu0 %v1431
    %1561 = vmatprep.subr.mxu0 %v1434
    %1562 = vmatpush1.msra.mxu0 %v1433
    %1563 = vmatprep.subr.mxu0 %v1436
    %1564 = vmatpush1.msra.mxu0 %v1435
    %1565 = vmatprep.subr.mxu0 %v1438
    %1566 = vmatpush1.msra.mxu0 %v1437
    %1567 = vmatprep.subr.mxu0 %v1440
    %1568 = vmatpush1.msra.mxu0 %v1439
    %1569 = vmatprep.subr.mxu0 %v1442
    %1570 = vmatpush1.msra.mxu0 %v1441
    %1571 = vmatprep.subr.mxu0 %v1444
    %1572 = vmatpush1.msra.mxu0 %v1443
    %1573 = vmatprep.subr.mxu0 %v1446
    %1574 = vmatpush1.msra.mxu0 %v1445
    %1575 = vmatprep.subr.mxu0 %v1448
    %1576 = vmatpush1.msra.mxu0 %v1447
    %1577 = vmatprep.subr.mxu0 %v1450
    %1578 = vmatpush1.msra.mxu0 %v1449
    %1579 = vmatprep.subr.mxu0 %v1452
    %1580 = vmatpush1.msra.mxu0 %v1451
    %1581 = vmatprep.subr.mxu0 %v1454
    %1582 = vmatpush1.msra.mxu0 %v1453
    %1583 = vmatprep.subr.mxu0 %v1456
    %1584 = vmatpush1.msra.mxu0 %v1455
    %1585 = vmatprep.subr.mxu0 %v1458
    %1586 = vmatpush1.msra.mxu0 %v1457
    %1587 = vmatprep.subr.mxu0 %v1460
    %1588 = vmatpush1.msra.mxu0 %v1459
    %1589 = vmatprep.subr.mxu0 %v1462
    %1590 = vmatpush1.msra.mxu0 %v1461
    %1591 = vmatprep.subr.mxu0 %v1464
    %1592 = vmatpush1.msra.mxu0 %v1463
    %1593 = vmatprep.subr.mxu0 %v1466
    %1594 = vmatpush1.msra.mxu0 %v1465
    %1595 = vmatprep.subr.mxu0 %v1468
    %1596 = vmatpush1.msra.mxu0 %v1467
    %1597 = vmatprep.subr.mxu0 %v1470
    %1598 = vmatpush1.msra.mxu0 %v1469
    %1599 = vmatprep.subr.mxu0 %v1472
    %1600 = vmatpush1.msra.mxu0 %v1471
    %1601 = vmatprep.subr.mxu0 %v1474
    %1602 = vmatpush1.msra.mxu0 %v1473
    %1603 = vmatprep.subr.mxu0 %v1476
    %1604 = vmatpush1.msra.mxu0 %v1475
    %1605 = vmatprep.mubr.f32.mxu0 %v1410
    %1606 = vmatmul.mubr.f32.gmra.mrb[0].mxu0 %v1409
    %v1607 = vpop.f32.mrb[0].mxu0
    %v1608 = vadd.f32 0.0, %v1607
    %v1609 = vpop.f32.mrb[0].mxu0
    %v1610 = vadd.f32 0.0, %v1609
    %1611 = vdwg.mxu0
    %1612 = vmatprep.subr.mxu0 %v1478
    %1613 = vmatpush1.msra.mxu0 %v1477
    %1614 = vmatprep.subr.mxu0 %v1480
    %1615 = vmatpush1.msra.mxu0 %v1479
    %1616 = vmatprep.subr.mxu0 %v1482
    %1617 = vmatpush1.msra.mxu0 %v1481
    %1618 = vmatprep.subr.mxu0 %v1484
    %1619 = vmatpush1.msra.mxu0 %v1483
    %1620 = vmatprep.subr.mxu0 %v1486
    %1621 = vmatpush1.msra.mxu0 %v1485
    %1622 = vmatprep.subr.mxu0 %v1488
    %1623 = vmatpush1.msra.mxu0 %v1487
    %1624 = vmatprep.subr.mxu0 %v1490
    %1625 = vmatpush1.msra.mxu0 %v1489
    %1626 = vmatprep.subr.mxu0 %v1492
    %1627 = vmatpush1.msra.mxu0 %v1491
    %1628 = vmatprep.subr.mxu0 %v1494
    %1629 = vmatpush1.msra.mxu0 %v1493
    %1630 = vmatprep.subr.mxu0 %v1496
    %1631 = vmatpush1.msra.mxu0 %v1495
    %1632 = vmatprep.subr.mxu0 %v1498
    %1633 = vmatpush1.msra.mxu0 %v1497
    %1634 = vmatprep.subr.mxu0 %v1500
    %1635 = vmatpush1.msra.mxu0 %v1499
    %1636 = vmatprep.subr.mxu0 %v1502
    %1637 = vmatpush1.msra.mxu0 %v1501
    %1638 = vmatprep.subr.mxu0 %v1504
    %1639 = vmatpush1.msra.mxu0 %v1503
    %1640 = vmatprep.subr.mxu0 %v1506
    %1641 = vmatpush1.msra.mxu0 %v1505
    %1642 = vmatprep.subr.mxu0 %v1508
    %1643 = vmatpush1.msra.mxu0 %v1507
    %1644 = vmatprep.subr.mxu0 %v1510
    %1645 = vmatpush1.msra.mxu0 %v1509
    %1646 = vmatprep.subr.mxu0 %v1512
    %1647 = vmatpush1.msra.mxu0 %v1511
    %1648 = vmatprep.subr.mxu0 %v1514
    %1649 = vmatpush1.msra.mxu0 %v1513
    %1650 = vmatprep.subr.mxu0 %v1516
    %1651 = vmatpush1.msra.mxu0 %v1515
    %1652 = vmatprep.subr.mxu0 %v1518
    %1653 = vmatpush1.msra.mxu0 %v1517
    %1654 = vmatprep.subr.mxu0 %v1520
    %1655 = vmatpush1.msra.mxu0 %v1519
    %1656 = vmatprep.subr.mxu0 %v1522
    %1657 = vmatpush1.msra.mxu0 %v1521
    %1658 = vmatprep.subr.mxu0 %v1524
    %1659 = vmatpush1.msra.mxu0 %v1523
    %1660 = vmatprep.subr.mxu0 %v1526
    %1661 = vmatpush1.msra.mxu0 %v1525
    %1662 = vmatprep.subr.mxu0 %v1528
    %1663 = vmatpush1.msra.mxu0 %v1527
    %1664 = vmatprep.subr.mxu0 %v1530
    %1665 = vmatpush1.msra.mxu0 %v1529
    %1666 = vmatprep.subr.mxu0 %v1532
    %1667 = vmatpush1.msra.mxu0 %v1531
    %1668 = vmatprep.subr.mxu0 %v1534
    %1669 = vmatpush1.msra.mxu0 %v1533
    %1670 = vmatprep.subr.mxu0 %v1536
    %1671 = vmatpush1.msra.mxu0 %v1535
    %1672 = vmatprep.subr.mxu0 %v1538
    %1673 = vmatpush1.msra.mxu0 %v1537
    %1674 = vmatprep.subr.mxu0 %v1540
    %1675 = vmatpush1.msra.mxu0 %v1539
    %1676 = vmatprep.mubr.f32.mxu0 %v1412
    %1677 = vmatmul.mubr.f32.gmra.mrb[0].mxu0 %v1411
    %v1678 = vpop.f32.mrb[0].mxu0
    %v1679 = vadd.f32 %v1608, %v1678
    %v1680 = vpop.f32.mrb[0].mxu0
    %v1681 = vadd.f32 %v1610, %v1680
    %1682 = vdwg.mxu0
    %v1683 = vld [vmem:[#allocation9] sm:$0x3]
    %v1684 = vld [vmem:[#allocation10] sm:$0x3]
    %v1685 = vsel %vm1248, %v1679, 0.0
    %v1686 = vrot.slane %v1685, 4
    %v1687 = vadd.f32 %v1685, %v1686
    %v1688 = vrot.slane %v1687, 2
    %v1689 = vadd.f32 %v1687, %v1688
    %v1690 = vrot.slane %v1689, 1
    %v1691 = vadd.f32 %v1689, %v1690
    %v1692 = vsel %vm1248, %v1681, 0.0
    %v1693 = vrot.slane %v1692, 4
    %v1694 = vadd.f32 %v1692, %v1693
    %v1695 = vrot.slane %v1694, 2
    %v1696 = vadd.f32 %v1694, %v1695
    %v1697 = vrot.slane %v1696, 1
    %v1698 = vadd.f32 %v1696, %v1697
    %v1699 = vmul.f32 %v1691, 0.5
    %v1700 = vmul.f32 %v1698, 0.5
    %v1701 = vsub.f32 %v1679, %v1699
    %v1702 = vsub.f32 %v1681, %v1700
    %v1703 = vmul.f32 %v1701, %v1701
    %v1704 = vmul.f32 %v1702, %v1702
    %v1705 = vsel %vm1248, %v1703, 0.0
    %v1706 = vrot.slane %v1705, 4
    %v1707 = vadd.f32 %v1705, %v1706
    %v1708 = vrot.slane %v1707, 2
    %v1709 = vadd.f32 %v1707, %v1708
    %v1710 = vrot.slane %v1709, 1
    %v1711 = vadd.f32 %v1709, %v1710
    %v1712 = vsel %vm1248, %v1704, 0.0
    %v1713 = vrot.slane %v1712, 4
    %v1714 = vadd.f32 %v1712, %v1713
    %v1715 = vrot.slane %v1714, 2
    %v1716 = vadd.f32 %v1714, %v1715
    %v1717 = vrot.slane %v1716, 1
    %v1718 = vadd.f32 %v1716, %v1717
    %v1719 = vmul.f32 %v1711, 0.5
    %v1720 = vmul.f32 %v1718, 0.5
    %v1721 = vadd.f32 %v1719, 1e-05
    %v1722 = vadd.f32 %v1720, 1e-05
    %v1723 = vrsqrt.pop %v1721
    %v1724 = vrsqrt.pop %v1722
    %v1727 = vcombine.low %v1723, %v1724
    %v1729 = vunpack.c.l.s4 1966171168
    %v1730 = vunpack.c.0.s8 %v1729
    %v1731 = vlaneseq
    %v1732 = vshrl.u32 %v1731, 7
    %v1733 = vsub.s32 %v1730, %v1732
    %v1734 = vrot.slane %v1727, %v1733
    %v1736 = vunpack.c.l.s4 1966171168
    %v1737 = vunpack.c.0.s8 %v1736
    %v1738 = vlaneseq
    %v1739 = vshrl.u32 %v1738, 7
    %v1740 = vsub.s32 %v1737, %v1739
    %v1741 = vrot.slane %v1734, %v1740
    %v1743 = vmul.f32 %v1683, %v1741
    %v1745 = vlaneseq
    %v1746 = vshrl.u32 %v1745, 7
    %v1747 = vsub.s32 0, %v1746
    %v1748 = vrot.slane %v1743, %v1747
    %v1749 = vlaneseq
    %v1750 = vshrl.u32 %v1749, 7
    %v1751 = vsub.s32 1, %v1750
    %v1752 = vrot.slane %v1743, %v1751
    %v1755 = vmul.f32 %v1701, %v1748
    %v1756 = vmul.f32 %v1702, %v1752
    %v1758 = vlaneseq
    %v1759 = vshrl.u32 %v1758, 7
    %v1760 = vsub.s32 0, %v1759
    %v1761 = vrot.slane %v1684, %v1760
    %v1762 = vlaneseq
    %v1763 = vshrl.u32 %v1762, 7
    %v1764 = vsub.s32 1, %v1763
    %v1765 = vrot.slane %v1684, %v1764
    %v1768 = vadd.f32 %v1755, %v1761
    %v1769 = vadd.f32 %v1756, %v1765
    %v1770 = vmax.f32 %v1768, 0.0
    %v1771 = vmax.f32 %v1769, 0.0
    %v1772 = vld [vmem:[%s7] sm:$0xff]
    %v1773 = vld [vmem:[%s7 + $0x8] sm:$0xff]
    %v1774 = vld [vmem:[%s7 + $0x10] sm:$0xff]
    %v1775 = vld [vmem:[%s7 + $0x18] sm:$0xff]
    %v1776 = vld [vmem:[%s7 + $0x20] sm:$0xff]
    %v1777 = vld [vmem:[%s7 + $0x28] sm:$0xff]
    %v1778 = vld [vmem:[%s7 + $0x30] sm:$0xff]
    %v1779 = vld [vmem:[%s7 + $0x38] sm:$0xff]
    %v1780 = vld [vmem:[%s7 + $0x40] sm:$0xff]
    %v1781 = vld [vmem:[%s7 + $0x48] sm:$0xff]
    %v1782 = vld [vmem:[%s7 + $0x50] sm:$0xff]
    %v1783 = vld [vmem:[%s7 + $0x58] sm:$0xff]
    %v1784 = vld [vmem:[%s7 + $0x60] sm:$0xff]
    %v1785 = vld [vmem:[%s7 + $0x68] sm:$0xff]
    %v1786 = vld [vmem:[%s7 + $0x70] sm:$0xff]
    %v1787 = vld [vmem:[%s7 + $0x78] sm:$0xff]
    %v1788 = vld [vmem:[%s7 + $0x80] sm:$0xff]
    %v1789 = vld [vmem:[%s7 + $0x88] sm:$0xff]
    %v1790 = vld [vmem:[%s7 + $0x90] sm:$0xff]
    %v1791 = vld [vmem:[%s7 + $0x98] sm:$0xff]
    %v1792 = vld [vmem:[%s7 + $0xa0] sm:$0xff]
    %v1793 = vld [vmem:[%s7 + $0xa8] sm:$0xff]
    %v1794 = vld [vmem:[%s7 + $0xb0] sm:$0xff]
    %v1795 = vld [vmem:[%s7 + $0xb8] sm:$0xff]
    %v1796 = vld [vmem:[%s7 + $0xc0] sm:$0xff]
    %v1797 = vld [vmem:[%s7 + $0xc8] sm:$0xff]
    %v1798 = vld [vmem:[%s7 + $0xd0] sm:$0xff]
    %v1799 = vld [vmem:[%s7 + $0xd8] sm:$0xff]
    %v1800 = vld [vmem:[%s7 + $0xe0] sm:$0xff]
    %v1801 = vld [vmem:[%s7 + $0xe8] sm:$0xff]
    %v1802 = vld [vmem:[%s7 + $0xf0] sm:$0xff]
    %v1803 = vld [vmem:[%s7 + $0xf8] sm:$0xff]
    %v1804 = vld [vmem:[#allocation12] sm:$0x1]
    %v1806 = vlaneseq
    %v1807 = vshrl.u32 %v1806, 7
    %v1808 = vsub.s32 0, %v1807
    %v1809 = vrot.slane %v1804, %v1808
    %1811 = vmatprep.subr.mxu0 0.0
    %1812 = vmatpush1.msra.mxu0 %v1772
    %1813 = vmatprep.subr.mxu0 0.0
    %1814 = vmatpush1.msra.mxu0 %v1773
    %1815 = vmatprep.subr.mxu0 0.0
    %1816 = vmatpush1.msra.mxu0 %v1774
    %1817 = vmatprep.subr.mxu0 0.0
    %1818 = vmatpush1.msra.mxu0 %v1775
    %1819 = vmatprep.subr.mxu0 0.0
    %1820 = vmatpush1.msra.mxu0 %v1776
    %1821 = vmatprep.subr.mxu0 0.0
    %1822 = vmatpush1.msra.mxu0 %v1777
    %1823 = vmatprep.subr.mxu0 0.0
    %1824 = vmatpush1.msra.mxu0 %v1778
    %1825 = vmatprep.subr.mxu0 0.0
    %1826 = vmatpush1.msra.mxu0 %v1779
    %1827 = vmatprep.subr.mxu0 0.0
    %1828 = vmatpush1.msra.mxu0 %v1780
    %1829 = vmatprep.subr.mxu0 0.0
    %1830 = vmatpush1.msra.mxu0 %v1781
    %1831 = vmatprep.subr.mxu0 0.0
    %1832 = vmatpush1.msra.mxu0 %v1782
    %1833 = vmatprep.subr.mxu0 0.0
    %1834 = vmatpush1.msra.mxu0 %v1783
    %1835 = vmatprep.subr.mxu0 0.0
    %1836 = vmatpush1.msra.mxu0 %v1784
    %1837 = vmatprep.subr.mxu0 0.0
    %1838 = vmatpush1.msra.mxu0 %v1785
    %1839 = vmatprep.subr.mxu0 0.0
    %1840 = vmatpush1.msra.mxu0 %v1786
    %1841 = vmatprep.subr.mxu0 0.0
    %1842 = vmatpush1.msra.mxu0 %v1787
    %1843 = vmatprep.subr.mxu0 0.0
    %1844 = vmatpush1.msra.mxu0 %v1788
    %1845 = vmatprep.subr.mxu0 0.0
    %1846 = vmatpush1.msra.mxu0 %v1789
    %1847 = vmatprep.subr.mxu0 0.0
    %1848 = vmatpush1.msra.mxu0 %v1790
    %1849 = vmatprep.subr.mxu0 0.0
    %1850 = vmatpush1.msra.mxu0 %v1791
    %1851 = vmatprep.subr.mxu0 0.0
    %1852 = vmatpush1.msra.mxu0 %v1792
    %1853 = vmatprep.subr.mxu0 0.0
    %1854 = vmatpush1.msra.mxu0 %v1793
    %1855 = vmatprep.subr.mxu0 0.0
    %1856 = vmatpush1.msra.mxu0 %v1794
    %1857 = vmatprep.subr.mxu0 0.0
    %1858 = vmatpush1.msra.mxu0 %v1795
    %1859 = vmatprep.subr.mxu0 0.0
    %1860 = vmatpush1.msra.mxu0 %v1796
    %1861 = vmatprep.subr.mxu0 0.0
    %1862 = vmatpush1.msra.mxu0 %v1797
    %1863 = vmatprep.subr.mxu0 0.0
    %1864 = vmatpush1.msra.mxu0 %v1798
    %1865 = vmatprep.subr.mxu0 0.0
    %1866 = vmatpush1.msra.mxu0 %v1799
    %1867 = vmatprep.subr.mxu0 0.0
    %1868 = vmatpush1.msra.mxu0 %v1800
    %1869 = vmatprep.subr.mxu0 0.0
    %1870 = vmatpush1.msra.mxu0 %v1801
    %1871 = vmatprep.subr.mxu0 0.0
    %1872 = vmatpush1.msra.mxu0 %v1802
    %1873 = vmatprep.subr.mxu0 0.0
    %1874 = vmatpush1.msra.mxu0 %v1803
    %1875 = vmatprep.mubr.f32.mxu0 %v1771
    %1876 = vmatmul.mubr.f32.gmra.mrb[0].mxu0 %v1770
    %v1877 = vpop.f32.mrb[0].mxu0
    %v1878 = vadd.f32 %v1809, %v1877
    %v1879 = vpop.f32.mrb[0].mxu0
    %1880 = vdwg.mxu0
    %v1881 = vld [vmem:[%s9] sm:$0x1]
    %v1883 = vlaneseq
    %v1884 = vshrl.u32 %v1883, 7
    %v1885 = vsub.s32 0, %v1884
    %v1886 = vrot.slane %v1881, %v1885
    %v1888 = vadd.f32 %v1878, %v1886
    %vm1889 = vcmask 66560
    %1890 = vst.msk [vmem:[%s10] sm:$0x3] %vm1889, %v1888
    // Predicated region
    $region70: #{tnet_forward.5} parent=1 // pred_check
      _
    $region71: #{tnet_forward.5} parent=1 // pred_check_branch
      %1892 = sbr.rel (0) target = $region73
    $region72: #{tnet_forward.5} parent=1 // pred_region
      _
    $region73: #{tnet_forward.5} parent=1 // pred_fallthru
      _
    // Predicated region
    $region74: #{tnet_forward.5} parent=1 // pred_check
      _
    $region75: #{tnet_forward.5} parent=1 // pred_check_branch
      %1894 = sbr.rel (0) target = $region77
    $region76: #{tnet_forward.5} parent=1 // pred_region
      _
    $region77: #{tnet_forward.5} parent=1 // pred_fallthru
      _
    %1895 = vsyncpa [#allocation3], 1
    %1896 = vsyncpa [#allocation5], 1
    %1897 = vsyncpa [#allocation8], 1
    %1898 = vsyncpa [#allocation11], 1

</llo_original>
